<compile_context>
chip_gen: v5e
topology: v5e:2x2
jax: 0.10.0
libtpu: 0.0.40
codegen_flags: <defaults>
</compile_context>

<pallas_src>
import functools

import jax
import jax.numpy as jnp
import numpy as np
from jax import lax
from jax.experimental import pallas as pl
from jax.experimental.pallas import tpu as pltpu

EPS = 1e-5        # BatchNorm1d eps
SEQ_LEN = 500     # forced by the head: Linear(num_channels[-1] * 500, ...)


# ---------------------------------------------------------------------------
# Fused Pallas kernel: TCN blocks + classifier head, TB batch elements per step
# ---------------------------------------------------------------------------
def _fused_tcn_kernel(*refs, blocks, ksize, n_lin, lp, seq, tb, c_last):
    x_ref = refs[0]
    o_ref = refs[-1]
    idx = 1
    f32, bf16 = jnp.float32, jnp.bfloat16
    width = tb * lp

    lane = lax.broadcasted_iota(jnp.int32, (1, width), 1)
    if lp & (lp - 1) == 0:
        lane_t = jnp.bitwise_and(lane, lp - 1)      # per-element time index (lane % lp)
    else:
        lane_t = lane % lp

    def shift_right(v, s):
        # u[:, b*lp + t] = v[:, b*lp + (t - s)], zeros for t < s (causal left zero-pad,
        # per batch element).  Wrapped-in lanes (incl. cross-element wrap) are masked.
        if s == 0:
            return v
        if s >= lp:
            return jnp.zeros_like(v)
        rolled = pltpu.roll(v, s, 1)                # XLU lane rotate
        return jnp.where(lane_t >= s, rolled, 0.0)

    def causal_conv(v, w_ref, b_ref, dilation):
        # w_ref: (C_out, K*C_prev) bf16, taps stacked along the contraction dim.
        cin = w_ref.shape[1] // ksize
        taps = [shift_right(v, (ksize - 1 - k) * dilation) for k in range(ksize)]
        if ksize == 1:
            acc = jnp.dot(w_ref[...], taps[0].astype(bf16), preferred_element_type=f32)
        elif cin % 8 == 0:
            # Merge all K taps into a single MXU push (K-fold fewer pushes, contraction
            # depth K*C_prev).  Sublane-aligned concat only (f32 tile = 8 sublanes).
            stacked = jnp.concatenate(taps, axis=0)
            acc = jnp.dot(w_ref[...], stacked.astype(bf16), preferred_element_type=f32)
        else:
            w = w_ref[...]
            acc = None
            for k in range(ksize):
                part = jnp.dot(w[:, k * cin:(k + 1) * cin], taps[k].astype(bf16),
                               preferred_element_type=f32)
                acc = part if acc is None else acc + part
        return acc + b_ref[...]

    h = x_ref[...]                                  # (C_in, TB*Lp) f32, batch on lanes
    for blk in blocks:
        if blk["has_ds"]:
            sc, sh, w1, b1, w2, b2, wds, bds = refs[idx:idx + 8]
            idx += 8
        else:
            sc, sh, w1, b1, w2, b2 = refs[idx:idx + 6]
            idx += 6
        xb = h * sc[...] + sh[...]                  # BatchNorm1d (running stats, folded)
        o = jnp.maximum(causal_conv(xb, w1, b1, blk["dilation"]), 0.0)  # conv1+relu(+drop=id)
        o = jnp.maximum(causal_conv(o, w2, b2, blk["dilation"]), 0.0)   # conv2+relu(+drop=id)
        if blk["has_ds"]:                           # 1x1 Conv1d downsample on xb
            res = jnp.dot(wds[...], xb.astype(bf16), preferred_element_type=f32) + bds[...]
        else:
            res = xb
        h = jnp.maximum(o + res, 0.0)               # (C_out, TB*Lp)

    # Zero padded time lanes before the head (head weight rows for t >= seq are also
    # zero; this one select makes the pad-lane scheme robust regardless).
    h = jnp.where(lane_t < seq, h, 0.0)

    # Head.  First Linear contracts over (channel, time): one batched MXU matmul with
    # M = TB against the pre-laid-out (c_last, Lp, H1) weight, then a channel sum.
    w0, b0 = refs[idx], refs[idx + 1]
    idx += 2
    h3 = h.reshape(c_last, tb, lp).astype(bf16)     # (c_last, TB, Lp)
    z = jnp.einsum("cbl,clh->cbh", h3, w0[...], preferred_element_type=f32)
    y = jnp.sum(z, axis=0) + b0[...]                # (TB, H1) f32
    if n_lin > 1:
        y = jnp.maximum(y, 0.0)
    for i in range(1, n_lin):
        w, b = refs[idx], refs[idx + 1]
        idx += 2
        y = jnp.dot(y.astype(bf16), w[...], preferred_element_type=f32) + b[...]
        if i != n_lin - 1:
            y = jnp.maximum(y, 0.0)
    o_ref[0] = y                                    # (TB, num_classes)


# ---------------------------------------------------------------------------
# Parameter prep (fold BN -> scale/shift, stack conv taps, bf16 weights, pad head)
# ---------------------------------------------------------------------------
def _const_spec(a):
    n = a.ndim
    return pl.BlockSpec(a.shape, lambda b, _n=n: (0,) * _n)


def prep_params(params, kernel_size, seq=SEQ_LEN):
    lp = int(np.ceil(seq / 128) * 128)
    K = int(kernel_size)
    flat, blocks_meta = [], []

    def stack_conv(w):                              # (K, cout, cin) -> (cout, K*cin) bf16
        k, cout, cin = w.shape
        return jnp.transpose(w, (1, 0, 2)).reshape(cout, k * cin).astype(jnp.bfloat16)

    for blk in params["blocks"]:
        scale = blk["gamma"] * lax.rsqrt(blk["var"] + EPS)       # (C_in, 1) f32
        shift = blk["beta"] - blk["mean"] * scale                # (C_in, 1) f32
        has_ds = "wds" in blk
        flat += [scale, shift, stack_conv(blk["w1"]), blk["b1"],
                 stack_conv(blk["w2"]), blk["b2"]]
        if has_ds:
            flat += [blk["wds"].astype(jnp.bfloat16), blk["bds"]]
        blocks_meta.append({"has_ds": has_ds, "dilation": int(blk["dilation"])})

    c_last = int(params["blocks"][-1]["w2"].shape[1])
    lins = params["linears"]
    w0, b0 = lins[0]["w"], lins[0]["b"]                          # (H1, c_last*seq), (H1,)
    h1 = int(w0.shape[0])
    w0r = jnp.transpose(w0.reshape(h1, c_last, seq), (1, 2, 0))  # (c_last, seq, H1)
    w0p = jnp.zeros((c_last, lp, h1), jnp.float32).at[:, :seq, :].set(w0r)
    flat += [w0p.astype(jnp.bfloat16), b0.reshape(1, h1)]
    for lin in lins[1:]:
        flat += [jnp.asarray(lin["w"]).T.astype(jnp.bfloat16), lin["b"].reshape(1, -1)]

    meta = {"blocks": tuple(blocks_meta), "ksize": K, "n_lin": len(lins),
            "lp": lp, "seq": seq, "c_last": c_last,
            "num_classes": int(lins[-1]["w"].shape[0])}
    return {"flat": flat, "meta": meta}


def tcn_classifier_forward(kparams, x, batch_tile=8):
    """x: (B, num_inputs, SEQ_LEN) float32 -> (B, num_classes)."""
    meta, flat = kparams["meta"], kparams["flat"]
    b_dim, c_in, seq = x.shape
    assert seq == meta["seq"], (seq, meta["seq"])
    lp, ncls = meta["lp"], meta["num_classes"]

    # Batch tile: several elements per grid step (batch laid along lanes inside the
    # kernel), capped so the grid stays >= 2 when B >= 2 (feeds both v7x TensorCores).
    tb = max(1, min(int(batch_tile), (b_dim + 1) // 2))
    nb = pl.cdiv(b_dim, tb)
    bp = nb * tb

    xp = jnp.pad(x, ((0, bp - b_dim), (0, 0), (0, lp - seq)))    # (bp, c_in, lp)
    x_lanes = jnp.transpose(xp, (1, 0, 2)).reshape(c_in, bp * lp)  # batch on lanes

    kern = functools.partial(_fused_tcn_kernel, blocks=meta["blocks"],
                             ksize=meta["ksize"], n_lin=meta["n_lin"],
                             lp=lp, seq=seq, tb=tb, c_last=meta["c_last"])

    in_specs = [pl.BlockSpec((c_in, tb * lp), lambda b: (0, b))]
    in_specs += [_const_spec(a) for a in flat]

    const_bytes = sum(int(np.prod(a.shape)) * a.dtype.itemsize for a in flat)
    io_bytes = c_in * tb * lp * 4 + tb * ncls * 4
    vmem_limit = int(min(64 * 2**20, max(32 * 2**20,
                                         4 * (const_bytes + io_bytes) + 8 * 2**20)))

    out = pl.pallas_call(
        kern,
        grid=(nb,),
        in_specs=in_specs,
        out_specs=pl.BlockSpec((1, tb, ncls), lambda b: (b, 0, 0)),
        out_shape=jax.ShapeDtypeStruct((nb, tb, ncls), jnp.float32),
        compiler_params=pltpu.CompilerParams(
            dimension_semantics=("parallel",),
            vmem_limit_bytes=vmem_limit),
    )(x_lanes, *flat)
    return out.reshape(bp, ncls)[:b_dim]


# ---------------------------------------------------------------------------
# Deterministic parameter construction (mirrors module __init__ shapes)
# ---------------------------------------------------------------------------
def init_params(key, num_inputs, num_channels, num_classes, num_ff, kernel_size):
    keys = list(jax.random.split(key, 256))
    it = iter(keys)
    nxt = lambda: next(it)

    def wn_conv(kv, kg, cout, cin, k):
        # nn.utils.weight_norm(Conv2d(cin, cout, (1, k))): w_eff = g * v / ||v||_{(1,2,3)}
        v = 0.1 * jax.random.normal(kv, (cout, cin, 1, k), jnp.float32)
        g = jax.random.uniform(kg, (cout, 1, 1, 1), jnp.float32, 0.5, 1.5)
        norm = jnp.sqrt(jnp.sum(v * v, axis=(1, 2, 3), keepdims=True))
        w = g * v / norm
        return jnp.transpose(w[:, :, 0, :], (2, 0, 1))   # (K, cout, cin)

    params = {"blocks": [], "linears": []}
    in_c = num_inputs
    for i, out_c in enumerate(num_channels):
        blk = {
            # BatchNorm1d(in_c) inference parameters / running stats
            "gamma": jax.random.uniform(nxt(), (in_c, 1), jnp.float32, 0.5, 1.5),
            "beta": 0.1 * jax.random.normal(nxt(), (in_c, 1), jnp.float32),
            "mean": 0.1 * jax.random.normal(nxt(), (in_c, 1), jnp.float32),
            "var": jax.random.uniform(nxt(), (in_c, 1), jnp.float32, 0.5, 1.5),
            "w1": wn_conv(nxt(), nxt(), out_c, in_c, kernel_size),
            "b1": 0.1 * jax.random.normal(nxt(), (out_c, 1), jnp.float32),
            "w2": wn_conv(nxt(), nxt(), out_c, out_c, kernel_size),
            "b2": 0.1 * jax.random.normal(nxt(), (out_c, 1), jnp.float32),
            "dilation": 2 ** i,
        }
        if in_c != out_c:   # Conv1d(in_c, out_c, 1) downsample
            blk["wds"] = 0.1 * jax.random.normal(nxt(), (out_c, in_c), jnp.float32)
            blk["bds"] = 0.1 * jax.random.normal(nxt(), (out_c, 1), jnp.float32)
        params["blocks"].append(blk)
        in_c = out_c

    c_last = num_channels[-1]
    for i in range(num_ff):
        fin = c_last * (2 ** i) * (SEQ_LEN if i == 0 else 1)
        fout = c_last * (2 ** (i + 1)) if i != num_ff - 1 else num_classes
        params["linears"].append({
            "w": (1.0 / jnp.sqrt(fin)) * jax.random.normal(nxt(), (fout, fin), jnp.float32),
            "b": 0.1 * jax.random.normal(nxt(), (fout,), jnp.float32),
        })
    return params


# ---------------------------------------------------------------------------
# Pure-JAX reference (for correctness check)
# ---------------------------------------------------------------------------
def _ref_causal_conv(v, w, b, d, k):
    seq = v.shape[-1]
    out = jnp.zeros((v.shape[0], w.shape[1], seq), jnp.float32)
    for kk in range(k):
        s = (k - 1 - kk) * d
        vs = jnp.pad(v, ((0, 0), (0, 0), (s, 0)))[:, :, :seq]
        out = out + jnp.einsum("oc,bcl->bol", w[kk], vs)
    return out + b


def ref_forward(params, x, kernel_size):
    b_dim = x.shape[0]
    h = x
    for blk in params["blocks"]:
        d = blk["dilation"]
        scale = blk["gamma"] * lax.rsqrt(blk["var"] + EPS)
        xb = (h - blk["mean"]) * scale + blk["beta"]
        o = jax.nn.relu(_ref_causal_conv(xb, blk["w1"], blk["b1"], d, kernel_size))
        o = jax.nn.relu(_ref_causal_conv(o, blk["w2"], blk["b2"], d, kernel_size))
        res = (jnp.einsum("oc,bcl->bol", blk["wds"], xb) + blk["bds"]) if "wds" in blk else xb
        h = jax.nn.relu(o + res)
    h = h.reshape(b_dim, -1)
    n = len(params["linears"])
    for i, lin in enumerate(params["linears"]):
        h = h @ lin["w"].T + lin["b"]
        if i != n - 1:
            h = jax.nn.relu(h)
    return h


# ---------------------------------------------------------------------------
if __name__ == "__main__":
    key = jax.random.PRNGKey(0)
    B, num_inputs = 2, 4
    num_channels = [8, 8]
    num_classes, num_ff, kernel_size = 3, 2, 2

    kp, kx = jax.random.split(key)
    params = init_params(kp, num_inputs, num_channels, num_classes, num_ff, kernel_size)
    x = jax.random.normal(kx, (B, num_inputs, SEQ_LEN), jnp.float32)

    kparams = prep_params(params, kernel_size)
    out = jax.block_until_ready(tcn_classifier_forward(kparams, x))
    ref = jax.block_until_ready(ref_forward(params, x, kernel_size))

    assert out.shape == (B, num_classes), out.shape
    # bf16 MXU operands (f32 accumulation) widen the tolerance vs the f32 reference.
    np.testing.assert_allclose(np.asarray(out), np.asarray(ref), rtol=1e-1, atol=1e-1)
    print("KERNEL_OK")
</pallas_src>

<mosaic_0001>
module attributes {stable_mosaic.version = 11 : i64} {
  func.func @_fused_tcn_kernel(%arg0: i32, %arg1: memref<4x512xf32, #tpu.memory_space<vmem>>, %arg2: memref<4x1xf32, #tpu.memory_space<vmem>>, %arg3: memref<4x1xf32, #tpu.memory_space<vmem>>, %arg4: memref<8x8xbf16, #tpu.memory_space<vmem>>, %arg5: memref<8x1xf32, #tpu.memory_space<vmem>>, %arg6: memref<8x16xbf16, #tpu.memory_space<vmem>>, %arg7: memref<8x1xf32, #tpu.memory_space<vmem>>, %arg8: memref<8x4xbf16, #tpu.memory_space<vmem>>, %arg9: memref<8x1xf32, #tpu.memory_space<vmem>>, %arg10: memref<8x1xf32, #tpu.memory_space<vmem>>, %arg11: memref<8x1xf32, #tpu.memory_space<vmem>>, %arg12: memref<8x16xbf16, #tpu.memory_space<vmem>>, %arg13: memref<8x1xf32, #tpu.memory_space<vmem>>, %arg14: memref<8x16xbf16, #tpu.memory_space<vmem>>, %arg15: memref<8x1xf32, #tpu.memory_space<vmem>>, %arg16: memref<8x512x16xbf16, #tpu.memory_space<vmem>>, %arg17: memref<1x16xf32, #tpu.memory_space<vmem>>, %arg18: memref<16x3xbf16, #tpu.memory_space<vmem>>, %arg19: memref<1x3xf32, #tpu.memory_space<vmem>>, %arg20: memref<1x1x3xf32, #tpu.memory_space<vmem>>) attributes {dimension_semantics = [#tpu.dimension_semantics<parallel>], iteration_bounds = array<i64: 2>, scalar_prefetch = 0 : i64, scratch_operands = 0 : i64, tpu.core_type = #tpu.core_type<tc>, window_params = [{transform_indices = @transform_0, window_bounds = array<i64: 4, 512>}, {pipeline_mode = #tpu.pipeline_mode<synchronous>, transform_indices = @transform_1, window_bounds = array<i64: 4, 1>}, {pipeline_mode = #tpu.pipeline_mode<synchronous>, transform_indices = @transform_2, window_bounds = array<i64: 4, 1>}, {pipeline_mode = #tpu.pipeline_mode<synchronous>, transform_indices = @transform_3, window_bounds = array<i64: 8, 8>}, {pipeline_mode = #tpu.pipeline_mode<synchronous>, transform_indices = @transform_4, window_bounds = array<i64: 8, 1>}, {pipeline_mode = #tpu.pipeline_mode<synchronous>, transform_indices = @transform_5, window_bounds = array<i64: 8, 16>}, {pipeline_mode = #tpu.pipeline_mode<synchronous>, transform_indices = @transform_6, window_bounds = array<i64: 8, 1>}, {pipeline_mode = #tpu.pipeline_mode<synchronous>, transform_indices = @transform_7, window_bounds = array<i64: 8, 4>}, {pipeline_mode = #tpu.pipeline_mode<synchronous>, transform_indices = @transform_8, window_bounds = array<i64: 8, 1>}, {pipeline_mode = #tpu.pipeline_mode<synchronous>, transform_indices = @transform_9, window_bounds = array<i64: 8, 1>}, {pipeline_mode = #tpu.pipeline_mode<synchronous>, transform_indices = @transform_10, window_bounds = array<i64: 8, 1>}, {pipeline_mode = #tpu.pipeline_mode<synchronous>, transform_indices = @transform_11, window_bounds = array<i64: 8, 16>}, {pipeline_mode = #tpu.pipeline_mode<synchronous>, transform_indices = @transform_12, window_bounds = array<i64: 8, 1>}, {pipeline_mode = #tpu.pipeline_mode<synchronous>, transform_indices = @transform_13, window_bounds = array<i64: 8, 16>}, {pipeline_mode = #tpu.pipeline_mode<synchronous>, transform_indices = @transform_14, window_bounds = array<i64: 8, 1>}, {pipeline_mode = #tpu.pipeline_mode<synchronous>, transform_indices = @transform_15, window_bounds = array<i64: 8, 512, 16>}, {pipeline_mode = #tpu.pipeline_mode<synchronous>, transform_indices = @transform_16, window_bounds = array<i64: 1, 16>}, {pipeline_mode = #tpu.pipeline_mode<synchronous>, transform_indices = @transform_17, window_bounds = array<i64: 16, 3>}, {pipeline_mode = #tpu.pipeline_mode<synchronous>, transform_indices = @transform_18, window_bounds = array<i64: 1, 3>}, {transform_indices = @transform_19, window_bounds = array<i64: 1, 1, 3>}]} {
    %0 = tpu.iota {dimensions = array<i32: 1>} : vector<1x512xi32>
    %c511_i32 = arith.constant 511 : i32
    %1 = vector.broadcast %c511_i32 : i32 to vector<1x512xi32>
    %2 = arith.andi %0, %1 : vector<1x512xi32>
    %c0 = arith.constant 0 : index
    %c0_0 = arith.constant 0 : index
    %3 = vector.load %arg1[%c0, %c0_0] : memref<4x512xf32, #tpu.memory_space<vmem>>, vector<4x512xf32>
    %c0_1 = arith.constant 0 : index
    %c0_2 = arith.constant 0 : index
    %4 = vector.load %arg2[%c0_1, %c0_2] : memref<4x1xf32, #tpu.memory_space<vmem>>, vector<4x1xf32>
    %5 = vector.broadcast %4 : vector<4x1xf32> to vector<4x512xf32>
    %6 = arith.mulf %3, %5 : vector<4x512xf32>
    %c0_3 = arith.constant 0 : index
    %c0_4 = arith.constant 0 : index
    %7 = vector.load %arg3[%c0_3, %c0_4] : memref<4x1xf32, #tpu.memory_space<vmem>>, vector<4x1xf32>
    %8 = vector.broadcast %7 : vector<4x1xf32> to vector<4x512xf32>
    %9 = arith.addf %6, %8 : vector<4x512xf32>
    %c1_i32 = arith.constant 1 : i32
    %10 = tpu.dynamic_rotate %9 by %c1_i32 dim 1 : vector<4x512xf32>, i32 -> vector<4x512xf32>
    %c1_i32_5 = arith.constant 1 : i32
    %11 = vector.broadcast %c1_i32_5 : i32 to vector<1x512xi32>
    %12 = arith.cmpi sge, %2, %11 : vector<1x512xi32>
    %cst = arith.constant 0.000000e+00 : f32
    %13 = vector.shape_cast %12 : vector<1x512xi1> to vector<1x512xi1>
    %14 = vector.broadcast %13 : vector<1x512xi1> to vector<4x512xi1>
    %15 = vector.broadcast %cst : f32 to vector<4x512xf32>
    %16 = arith.select %14, %10, %15 : vector<4x512xi1>, vector<4x512xf32>
    %c0_6 = arith.constant 0 : index
    %c0_7 = arith.constant 0 : index
    %17 = vector.load %arg4[%c0_6, %c0_7] : memref<8x8xbf16, #tpu.memory_space<vmem>>, vector<8x8xbf16>
    %18 = vector.extract_strided_slice %17 {offsets = [0, 0], sizes = [8, 4], strides = [1, 1]} : vector<8x8xbf16> to vector<8x4xbf16>
    %19 = arith.truncf %16 : vector<4x512xf32> to vector<4x512xbf16>
    %cst_8 = arith.constant dense<0.000000e+00> : vector<8x512xf32>
    %20 = tpu.matmul %18, %19, %cst_8 {dimension_numbers = #tpu.dot_dimension_numbers<[1], [0], [0], [1], [0, 0, 1, 1], [], []>} : vector<8x4xbf16>, vector<4x512xbf16>, vector<8x512xf32> -> vector<8x512xf32>
    %21 = vector.extract_strided_slice %17 {offsets = [0, 4], sizes = [8, 4], strides = [1, 1]} : vector<8x8xbf16> to vector<8x4xbf16>
    %22 = arith.truncf %9 : vector<4x512xf32> to vector<4x512xbf16>
    %cst_9 = arith.constant dense<0.000000e+00> : vector<8x512xf32>
    %23 = tpu.matmul %21, %22, %cst_9 {dimension_numbers = #tpu.dot_dimension_numbers<[1], [0], [0], [1], [0, 0, 1, 1], [], []>} : vector<8x4xbf16>, vector<4x512xbf16>, vector<8x512xf32> -> vector<8x512xf32>
    %24 = arith.addf %20, %23 : vector<8x512xf32>
    %c0_10 = arith.constant 0 : index
    %c0_11 = arith.constant 0 : index
    %25 = vector.load %arg5[%c0_10, %c0_11] : memref<8x1xf32, #tpu.memory_space<vmem>>, vector<8x1xf32>
    %26 = vector.broadcast %25 : vector<8x1xf32> to vector<8x512xf32>
    %27 = arith.addf %24, %26 : vector<8x512xf32>
    %cst_12 = arith.constant 0.000000e+00 : f32
    %28 = vector.broadcast %cst_12 : f32 to vector<8x512xf32>
    %29 = arith.maximumf %27, %28 : vector<8x512xf32>
    %c1_i32_13 = arith.constant 1 : i32
    %30 = tpu.dynamic_rotate %29 by %c1_i32_13 dim 1 : vector<8x512xf32>, i32 -> vector<8x512xf32>
    %c1_i32_14 = arith.constant 1 : i32
    %31 = vector.broadcast %c1_i32_14 : i32 to vector<1x512xi32>
    %32 = arith.cmpi sge, %2, %31 : vector<1x512xi32>
    %cst_15 = arith.constant 0.000000e+00 : f32
    %33 = vector.shape_cast %32 : vector<1x512xi1> to vector<1x512xi1>
    %34 = vector.broadcast %33 : vector<1x512xi1> to vector<8x512xi1>
    %35 = vector.broadcast %cst_15 : f32 to vector<8x512xf32>
    %36 = arith.select %34, %30, %35 : vector<8x512xi1>, vector<8x512xf32>
    %37 = tpu.concatenate %36, %29 in 0 : vector<8x512xf32>, vector<8x512xf32> -> vector<16x512xf32>
    %c0_16 = arith.constant 0 : index
    %c0_17 = arith.constant 0 : index
    %38 = vector.load %arg6[%c0_16, %c0_17] : memref<8x16xbf16, #tpu.memory_space<vmem>>, vector<8x16xbf16>
    %39 = arith.truncf %37 : vector<16x512xf32> to vector<16x512xbf16>
    %cst_18 = arith.constant dense<0.000000e+00> : vector<8x512xf32>
    %40 = tpu.matmul %38, %39, %cst_18 {dimension_numbers = #tpu.dot_dimension_numbers<[1], [0], [0], [1], [0, 0, 1, 1], [], []>} : vector<8x16xbf16>, vector<16x512xbf16>, vector<8x512xf32> -> vector<8x512xf32>
    %c0_19 = arith.constant 0 : index
    %c0_20 = arith.constant 0 : index
    %41 = vector.load %arg7[%c0_19, %c0_20] : memref<8x1xf32, #tpu.memory_space<vmem>>, vector<8x1xf32>
    %42 = vector.broadcast %41 : vector<8x1xf32> to vector<8x512xf32>
    %43 = arith.addf %40, %42 : vector<8x512xf32>
    %cst_21 = arith.constant 0.000000e+00 : f32
    %44 = vector.broadcast %cst_21 : f32 to vector<8x512xf32>
    %45 = arith.maximumf %43, %44 : vector<8x512xf32>
    %c0_22 = arith.constant 0 : index
    %c0_23 = arith.constant 0 : index
    %46 = vector.load %arg8[%c0_22, %c0_23] : memref<8x4xbf16, #tpu.memory_space<vmem>>, vector<8x4xbf16>
    %47 = arith.truncf %9 : vector<4x512xf32> to vector<4x512xbf16>
    %cst_24 = arith.constant dense<0.000000e+00> : vector<8x512xf32>
    %48 = tpu.matmul %46, %47, %cst_24 {dimension_numbers = #tpu.dot_dimension_numbers<[1], [0], [0], [1], [0, 0, 1, 1], [], []>} : vector<8x4xbf16>, vector<4x512xbf16>, vector<8x512xf32> -> vector<8x512xf32>
    %c0_25 = arith.constant 0 : index
    %c0_26 = arith.constant 0 : index
    %49 = vector.load %arg9[%c0_25, %c0_26] : memref<8x1xf32, #tpu.memory_space<vmem>>, vector<8x1xf32>
    %50 = vector.broadcast %49 : vector<8x1xf32> to vector<8x512xf32>
    %51 = arith.addf %48, %50 : vector<8x512xf32>
    %52 = arith.addf %45, %51 : vector<8x512xf32>
    %cst_27 = arith.constant 0.000000e+00 : f32
    %53 = vector.broadcast %cst_27 : f32 to vector<8x512xf32>
    %54 = arith.maximumf %52, %53 : vector<8x512xf32>
    %c0_28 = arith.constant 0 : index
    %c0_29 = arith.constant 0 : index
    %55 = vector.load %arg10[%c0_28, %c0_29] : memref<8x1xf32, #tpu.memory_space<vmem>>, vector<8x1xf32>
    %56 = vector.broadcast %55 : vector<8x1xf32> to vector<8x512xf32>
    %57 = arith.mulf %54, %56 : vector<8x512xf32>
    %c0_30 = arith.constant 0 : index
    %c0_31 = arith.constant 0 : index
    %58 = vector.load %arg11[%c0_30, %c0_31] : memref<8x1xf32, #tpu.memory_space<vmem>>, vector<8x1xf32>
    %59 = vector.broadcast %58 : vector<8x1xf32> to vector<8x512xf32>
    %60 = arith.addf %57, %59 : vector<8x512xf32>
    %c2_i32 = arith.constant 2 : i32
    %61 = tpu.dynamic_rotate %60 by %c2_i32 dim 1 : vector<8x512xf32>, i32 -> vector<8x512xf32>
    %c2_i32_32 = arith.constant 2 : i32
    %62 = vector.broadcast %c2_i32_32 : i32 to vector<1x512xi32>
    %63 = arith.cmpi sge, %2, %62 : vector<1x512xi32>
    %cst_33 = arith.constant 0.000000e+00 : f32
    %64 = vector.shape_cast %63 : vector<1x512xi1> to vector<1x512xi1>
    %65 = vector.broadcast %64 : vector<1x512xi1> to vector<8x512xi1>
    %66 = vector.broadcast %cst_33 : f32 to vector<8x512xf32>
    %67 = arith.select %65, %61, %66 : vector<8x512xi1>, vector<8x512xf32>
    %68 = tpu.concatenate %67, %60 in 0 : vector<8x512xf32>, vector<8x512xf32> -> vector<16x512xf32>
    %c0_34 = arith.constant 0 : index
    %c0_35 = arith.constant 0 : index
    %69 = vector.load %arg12[%c0_34, %c0_35] : memref<8x16xbf16, #tpu.memory_space<vmem>>, vector<8x16xbf16>
    %70 = arith.truncf %68 : vector<16x512xf32> to vector<16x512xbf16>
    %cst_36 = arith.constant dense<0.000000e+00> : vector<8x512xf32>
    %71 = tpu.matmul %69, %70, %cst_36 {dimension_numbers = #tpu.dot_dimension_numbers<[1], [0], [0], [1], [0, 0, 1, 1], [], []>} : vector<8x16xbf16>, vector<16x512xbf16>, vector<8x512xf32> -> vector<8x512xf32>
    %c0_37 = arith.constant 0 : index
    %c0_38 = arith.constant 0 : index
    %72 = vector.load %arg13[%c0_37, %c0_38] : memref<8x1xf32, #tpu.memory_space<vmem>>, vector<8x1xf32>
    %73 = vector.broadcast %72 : vector<8x1xf32> to vector<8x512xf32>
    %74 = arith.addf %71, %73 : vector<8x512xf32>
    %cst_39 = arith.constant 0.000000e+00 : f32
    %75 = vector.broadcast %cst_39 : f32 to vector<8x512xf32>
    %76 = arith.maximumf %74, %75 : vector<8x512xf32>
    %c2_i32_40 = arith.constant 2 : i32
    %77 = tpu.dynamic_rotate %76 by %c2_i32_40 dim 1 : vector<8x512xf32>, i32 -> vector<8x512xf32>
    %c2_i32_41 = arith.constant 2 : i32
    %78 = vector.broadcast %c2_i32_41 : i32 to vector<1x512xi32>
    %79 = arith.cmpi sge, %2, %78 : vector<1x512xi32>
    %cst_42 = arith.constant 0.000000e+00 : f32
    %80 = vector.shape_cast %79 : vector<1x512xi1> to vector<1x512xi1>
    %81 = vector.broadcast %80 : vector<1x512xi1> to vector<8x512xi1>
    %82 = vector.broadcast %cst_42 : f32 to vector<8x512xf32>
    %83 = arith.select %81, %77, %82 : vector<8x512xi1>, vector<8x512xf32>
    %84 = tpu.concatenate %83, %76 in 0 : vector<8x512xf32>, vector<8x512xf32> -> vector<16x512xf32>
    %c0_43 = arith.constant 0 : index
    %c0_44 = arith.constant 0 : index
    %85 = vector.load %arg14[%c0_43, %c0_44] : memref<8x16xbf16, #tpu.memory_space<vmem>>, vector<8x16xbf16>
    %86 = arith.truncf %84 : vector<16x512xf32> to vector<16x512xbf16>
    %cst_45 = arith.constant dense<0.000000e+00> : vector<8x512xf32>
    %87 = tpu.matmul %85, %86, %cst_45 {dimension_numbers = #tpu.dot_dimension_numbers<[1], [0], [0], [1], [0, 0, 1, 1], [], []>} : vector<8x16xbf16>, vector<16x512xbf16>, vector<8x512xf32> -> vector<8x512xf32>
    %c0_46 = arith.constant 0 : index
    %c0_47 = arith.constant 0 : index
    %88 = vector.load %arg15[%c0_46, %c0_47] : memref<8x1xf32, #tpu.memory_space<vmem>>, vector<8x1xf32>
    %89 = vector.broadcast %88 : vector<8x1xf32> to vector<8x512xf32>
    %90 = arith.addf %87, %89 : vector<8x512xf32>
    %cst_48 = arith.constant 0.000000e+00 : f32
    %91 = vector.broadcast %cst_48 : f32 to vector<8x512xf32>
    %92 = arith.maximumf %90, %91 : vector<8x512xf32>
    %93 = arith.addf %92, %60 : vector<8x512xf32>
    %cst_49 = arith.constant 0.000000e+00 : f32
    %94 = vector.broadcast %cst_49 : f32 to vector<8x512xf32>
    %95 = arith.maximumf %93, %94 : vector<8x512xf32>
    %c500_i32 = arith.constant 500 : i32
    %96 = vector.broadcast %c500_i32 : i32 to vector<1x512xi32>
    %97 = arith.cmpi slt, %2, %96 : vector<1x512xi32>
    %cst_50 = arith.constant 0.000000e+00 : f32
    %98 = vector.shape_cast %97 : vector<1x512xi1> to vector<1x512xi1>
    %99 = vector.broadcast %98 : vector<1x512xi1> to vector<8x512xi1>
    %100 = vector.broadcast %cst_50 : f32 to vector<8x512xf32>
    %101 = arith.select %99, %95, %100 : vector<8x512xi1>, vector<8x512xf32>
    %102 = vector.shape_cast %101 : vector<8x512xf32> to vector<8x1x512xf32>
    %103 = arith.truncf %102 : vector<8x1x512xf32> to vector<8x1x512xbf16>
    %c0_51 = arith.constant 0 : index
    %c0_52 = arith.constant 0 : index
    %c0_53 = arith.constant 0 : index
    %104 = vector.load %arg16[%c0_51, %c0_52, %c0_53] : memref<8x512x16xbf16, #tpu.memory_space<vmem>>, vector<8x512x16xbf16>
    "tpu.trace_start"() <{level = 10 : i32, message = "cbl,clh->cbh"}> : () -> ()
    %cst_54 = arith.constant dense<0.000000e+00> : vector<8x1x16xf32>
    %105 = tpu.matmul %103, %104, %cst_54 {dimension_numbers = #tpu.dot_dimension_numbers<[2], [1], [1], [2], [0, 0, 0, 1, 1, 2], [0], [0]>} : vector<8x1x512xbf16>, vector<8x512x16xbf16>, vector<8x1x16xf32> -> vector<8x1x16xf32>
    "tpu.trace_stop"() : () -> ()
    %cst_55 = arith.constant dense<0.000000e+00> : vector<1x16xf32>
    %106 = vector.multi_reduction <add>, %105, %cst_55 [0] : vector<8x1x16xf32> to vector<1x16xf32>
    %c0_56 = arith.constant 0 : index
    %c0_57 = arith.constant 0 : index
    %107 = vector.load %arg17[%c0_56, %c0_57] : memref<1x16xf32, #tpu.memory_space<vmem>>, vector<1x16xf32>
    %108 = arith.addf %106, %107 : vector<1x16xf32>
    %cst_58 = arith.constant 0.000000e+00 : f32
    %109 = vector.broadcast %cst_58 : f32 to vector<1x16xf32>
    %110 = arith.maximumf %108, %109 : vector<1x16xf32>
    %111 = arith.truncf %110 : vector<1x16xf32> to vector<1x16xbf16>
    %c0_59 = arith.constant 0 : index
    %c0_60 = arith.constant 0 : index
    %112 = vector.load %arg18[%c0_59, %c0_60] : memref<16x3xbf16, #tpu.memory_space<vmem>>, vector<16x3xbf16>
    %cst_61 = arith.constant dense<0.000000e+00> : vector<1x3xf32>
    %113 = tpu.matmul %111, %112, %cst_61 {dimension_numbers = #tpu.dot_dimension_numbers<[1], [0], [0], [1], [0, 0, 1, 1], [], []>} : vector<1x16xbf16>, vector<16x3xbf16>, vector<1x3xf32> -> vector<1x3xf32>
    %c0_62 = arith.constant 0 : index
    %c0_63 = arith.constant 0 : index
    %114 = vector.load %arg19[%c0_62, %c0_63] : memref<1x3xf32, #tpu.memory_space<vmem>>, vector<1x3xf32>
    %115 = arith.addf %113, %114 : vector<1x3xf32>
    %c0_64 = arith.constant 0 : index
    %c0_65 = arith.constant 0 : index
    %c0_66 = arith.constant 0 : index
    %116 = vector.load %arg20[%c0_64, %c0_65, %c0_66] : memref<1x1x3xf32, #tpu.memory_space<vmem>>, vector<1x1x3xf32>
    %117 = vector.shape_cast %116 : vector<1x1x3xf32> to vector<1x3xf32>
    %118 = vector.shape_cast %115 : vector<1x3xf32> to vector<1x1x3xf32>
    tpu.vector_store %arg20[%c0_64, %c0_65, %c0_66], %118 {strides = array<i32>} : memref<1x1x3xf32, #tpu.memory_space<vmem>>, vector<1x1x3xf32>,
    return
  }
  func.func @transform_0(%arg0: i32) -> (i32, i32) {
    %c0_i32 = arith.constant 0 : i32
    %c0_i32_0 = arith.constant 0 : i32
    return %c0_i32, %arg0 : i32, i32
  }
  func.func @transform_1(%arg0: i32) -> (i32, i32) {
    %c0_i32 = arith.constant 0 : i32
    %c0_i32_0 = arith.constant 0 : i32
    %c0_i32_1 = arith.constant 0 : i32
    return %c0_i32, %c0_i32_0 : i32, i32
  }
  func.func @transform_2(%arg0: i32) -> (i32, i32) {
    %c0_i32 = arith.constant 0 : i32
    %c0_i32_0 = arith.constant 0 : i32
    %c0_i32_1 = arith.constant 0 : i32
    return %c0_i32, %c0_i32_0 : i32, i32
  }
  func.func @transform_3(%arg0: i32) -> (i32, i32) {
    %c0_i32 = arith.constant 0 : i32
    %c0_i32_0 = arith.constant 0 : i32
    %c0_i32_1 = arith.constant 0 : i32
    return %c0_i32, %c0_i32_0 : i32, i32
  }
  func.func @transform_4(%arg0: i32) -> (i32, i32) {
    %c0_i32 = arith.constant 0 : i32
    %c0_i32_0 = arith.constant 0 : i32
    %c0_i32_1 = arith.constant 0 : i32
    return %c0_i32, %c0_i32_0 : i32, i32
  }
  func.func @transform_5(%arg0: i32) -> (i32, i32) {
    %c0_i32 = arith.constant 0 : i32
    %c0_i32_0 = arith.constant 0 : i32
    %c0_i32_1 = arith.constant 0 : i32
    return %c0_i32, %c0_i32_0 : i32, i32
  }
  func.func @transform_6(%arg0: i32) -> (i32, i32) {
    %c0_i32 = arith.constant 0 : i32
    %c0_i32_0 = arith.constant 0 : i32
    %c0_i32_1 = arith.constant 0 : i32
    return %c0_i32, %c0_i32_0 : i32, i32
  }
  func.func @transform_7(%arg0: i32) -> (i32, i32) {
    %c0_i32 = arith.constant 0 : i32
    %c0_i32_0 = arith.constant 0 : i32
    %c0_i32_1 = arith.constant 0 : i32
    return %c0_i32, %c0_i32_0 : i32, i32
  }
  func.func @transform_8(%arg0: i32) -> (i32, i32) {
    %c0_i32 = arith.constant 0 : i32
    %c0_i32_0 = arith.constant 0 : i32
    %c0_i32_1 = arith.constant 0 : i32
    return %c0_i32, %c0_i32_0 : i32, i32
  }
  func.func @transform_9(%arg0: i32) -> (i32, i32) {
    %c0_i32 = arith.constant 0 : i32
    %c0_i32_0 = arith.constant 0 : i32
    %c0_i32_1 = arith.constant 0 : i32
    return %c0_i32, %c0_i32_0 : i32, i32
  }
  func.func @transform_10(%arg0: i32) -> (i32, i32) {
    %c0_i32 = arith.constant 0 : i32
    %c0_i32_0 = arith.constant 0 : i32
    %c0_i32_1 = arith.constant 0 : i32
    return %c0_i32, %c0_i32_0 : i32, i32
  }
  func.func @transform_11(%arg0: i32) -> (i32, i32) {
    %c0_i32 = arith.constant 0 : i32
    %c0_i32_0 = arith.constant 0 : i32
    %c0_i32_1 = arith.constant 0 : i32
    return %c0_i32, %c0_i32_0 : i32, i32
  }
  func.func @transform_12(%arg0: i32) -> (i32, i32) {
    %c0_i32 = arith.constant 0 : i32
    %c0_i32_0 = arith.constant 0 : i32
    %c0_i32_1 = arith.constant 0 : i32
    return %c0_i32, %c0_i32_0 : i32, i32
  }
  func.func @transform_13(%arg0: i32) -> (i32, i32) {
    %c0_i32 = arith.constant 0 : i32
    %c0_i32_0 = arith.constant 0 : i32
    %c0_i32_1 = arith.constant 0 : i32
    return %c0_i32, %c0_i32_0 : i32, i32
  }
  func.func @transform_14(%arg0: i32) -> (i32, i32) {
    %c0_i32 = arith.constant 0 : i32
    %c0_i32_0 = arith.constant 0 : i32
    %c0_i32_1 = arith.constant 0 : i32
    return %c0_i32, %c0_i32_0 : i32, i32
  }
  func.func @transform_15(%arg0: i32) -> (i32, i32, i32) {
    %c0_i32 = arith.constant 0 : i32
    %c0_i32_0 = arith.constant 0 : i32
    %c0_i32_1 = arith.constant 0 : i32
    %c0_i32_2 = arith.constant 0 : i32
    return %c0_i32, %c0_i32_0, %c0_i32_1 : i32, i32, i32
  }
  func.func @transform_16(%arg0: i32) -> (i32, i32) {
    %c0_i32 = arith.constant 0 : i32
    %c0_i32_0 = arith.constant 0 : i32
    %c0_i32_1 = arith.constant 0 : i32
    return %c0_i32, %c0_i32_0 : i32, i32
  }
  func.func @transform_17(%arg0: i32) -> (i32, i32) {
    %c0_i32 = arith.constant 0 : i32
    %c0_i32_0 = arith.constant 0 : i32
    %c0_i32_1 = arith.constant 0 : i32
    return %c0_i32, %c0_i32_0 : i32, i32
  }
  func.func @transform_18(%arg0: i32) -> (i32, i32) {
    %c0_i32 = arith.constant 0 : i32
    %c0_i32_0 = arith.constant 0 : i32
    %c0_i32_1 = arith.constant 0 : i32
    return %c0_i32, %c0_i32_0 : i32, i32
  }
  func.func @transform_19(%arg0: i32) -> (i32, i32, i32) {
    %c0_i32 = arith.constant 0 : i32
    %c0_i32_0 = arith.constant 0 : i32
    %c0_i32_1 = arith.constant 0 : i32
    return %arg0, %c0_i32, %c0_i32_0 : i32, i32, i32
  }
}

</mosaic_0001>

<llo_original>
// kernel: tpu_custom_call.1
$region0: #{tpu_custom_call.1}
  #allocation0 [shape = 'u32[]', space=smem, size = 0x4, offset = 0x4, fixed_abs, tag = 'smem constant byte address 0x4 - core index']
  #allocation1 [shape = 'u32[72,128]{1,0:T(1,128)}', space=vmem, size = 0x9000, scoped, tag = 'internal scratch']
  %s0 = inlined_call_operand.vmem [shape: f32[4,1024], index: 0, kind: input, shape index: {}]
  %s1 = inlined_call_operand.vmem [shape: f32[4,1], index: 1, kind: input, shape index: {}]
  %s2 = inlined_call_operand.vmem [shape: f32[4,1], index: 2, kind: input, shape index: {}]
  %s3 = inlined_call_operand.vmem [shape: bf16[8,8], index: 3, kind: input, shape index: {}]
  %s4 = inlined_call_operand.vmem [shape: f32[8,1], index: 4, kind: input, shape index: {}]
  %s5 = inlined_call_operand.vmem [shape: bf16[8,16], index: 5, kind: input, shape index: {}]
  %s6 = inlined_call_operand.vmem [shape: f32[8,1], index: 6, kind: input, shape index: {}]
  %s7 = inlined_call_operand.vmem [shape: bf16[8,4], index: 7, kind: input, shape index: {}]
  %s8 = inlined_call_operand.vmem [shape: f32[8,1], index: 8, kind: input, shape index: {}]
  %s9 = inlined_call_operand.vmem [shape: f32[8,1], index: 9, kind: input, shape index: {}]
  %s10 = inlined_call_operand.vmem [shape: f32[8,1], index: 10, kind: input, shape index: {}]
  %s11 = inlined_call_operand.vmem [shape: bf16[8,16], index: 11, kind: input, shape index: {}]
  %s12 = inlined_call_operand.vmem [shape: f32[8,1], index: 12, kind: input, shape index: {}]
  %s13 = inlined_call_operand.vmem [shape: bf16[8,16], index: 13, kind: input, shape index: {}]
  %s14 = inlined_call_operand.vmem [shape: f32[8,1], index: 14, kind: input, shape index: {}]
  %s15 = inlined_call_operand.vmem [shape: bf16[8,512,16], index: 15, kind: input, shape index: {}]
  %s16 = inlined_call_operand.vmem [shape: f32[1,16], index: 16, kind: input, shape index: {}]
  %s17 = inlined_call_operand.vmem [shape: bf16[16,3], index: 17, kind: input, shape index: {}]
  %s18 = inlined_call_operand.vmem [shape: f32[1,3], index: 18, kind: input, shape index: {}]
  %s19 = inlined_call_operand.hbm [shape: f32[2,1,3], index: 19, kind: output, shape index: {}]
  %s20 = sld [smem:[#allocation0]]
  $region109: #{tpu_custom_call.1} parent=0
    _
  %s22 = ssub.s32 1, %s20
  %s23 = scalar_select 0, %s22, %s20
  $region1: #{tpu_custom_call.1} parent=0
    #allocation2 [shape = 'u8[1024]{0}', space=vmem, size = 0x400, scoped, tag = 'output window, operand 0']
    #allocation3 [shape = 's32[2]{0}', space=sflag, size = 0x8, scoped, tag = 'scoped memory for tpu_custom_call.1']
    %24 = vsyncpa [#allocation3], 0
    %s25 = scalar_lea.sflag [#allocation3], 1
    %26 = vsyncpa %s25, 0
    loop: start=0, step=1, limit=4
    $region2: #{tpu_custom_call.1} parent=1 // loop_pre_header
      _
    $region3: #{tpu_custom_call.1} parent=1 // loop_header
      %s28 = sphi 0, %s32
      %p29 = scmp.ge.s32.totalorder %s28, 4
      %s38 = sphi 0, %s40
      %s41 = sphi 0, %s38
      %s42 = sphi 0, %s41
      %s58 = sphi 0, %s42
      %s62 = sphi 0, %s62
      %s64 = sphi 0, %s62
      %s65 = sphi 0, %s64
      %s79 = sphi 0, %s65
      %s83 = sphi 0, %s83
      %s85 = sphi 0, %s83
      %s86 = sphi 0, %s85
      %s100 = sphi 0, %s86
      %s104 = sphi 0, %s104
      %s106 = sphi 0, %s104
      %s107 = sphi 0, %s106
      %s121 = sphi 0, %s107
      %s125 = sphi 0, %s125
      %s127 = sphi 0, %s125
      %s128 = sphi 0, %s127
      %s142 = sphi 0, %s128
      %s146 = sphi 0, %s146
      %s148 = sphi 0, %s146
      %s149 = sphi 0, %s148
      %s163 = sphi 0, %s149
      %s167 = sphi 0, %s167
      %s169 = sphi 0, %s167
      %s170 = sphi 0, %s169
      %s184 = sphi 0, %s170
      %s188 = sphi 0, %s188
      %s190 = sphi 0, %s188
      %s191 = sphi 0, %s190
      %s205 = sphi 0, %s191
      %s209 = sphi 0, %s209
      %s211 = sphi 0, %s209
      %s212 = sphi 0, %s211
      %s226 = sphi 0, %s212
      %s230 = sphi 0, %s230
      %s232 = sphi 0, %s230
      %s233 = sphi 0, %s232
      %s247 = sphi 0, %s233
      %s251 = sphi 0, %s251
      %s253 = sphi 0, %s251
      %s254 = sphi 0, %s253
      %s268 = sphi 0, %s254
      %s272 = sphi 0, %s272
      %s274 = sphi 0, %s272
      %s275 = sphi 0, %s274
      %s289 = sphi 0, %s275
      %s293 = sphi 0, %s293
      %s295 = sphi 0, %s293
      %s296 = sphi 0, %s295
      %s310 = sphi 0, %s296
      %s314 = sphi 0, %s314
      %s316 = sphi 0, %s314
      %s317 = sphi 0, %s316
      %s331 = sphi 0, %s317
      %s335 = sphi 0, %s335
      %s337 = sphi 0, %s335
      %s338 = sphi 0, %s337
      %s352 = sphi 0, %s338
      %s356 = sphi 0, %s356
      %s358 = sphi 0, %s356
      %s359 = sphi 0, %s358
      %s373 = sphi 0, %s359
      %s377 = sphi 0, %s377
      %s379 = sphi 0, %s377
      %s380 = sphi 0, %s379
      %s394 = sphi 0, %s380
      %s398 = sphi 0, %s398
      %s400 = sphi 0, %s398
      %s401 = sphi 0, %s400
      %s415 = sphi 0, %s401
      %s419 = sphi 0, %s419
      %s421 = sphi 0, %s419
      %s422 = sphi 0, %s421
      %s436 = sphi 0, %s422
      %s442 = sphi 0, %s444
      %s445 = sphi 0, %s442
      %s446 = sphi 0, %s445
      %s462 = sphi 0, %s446
    $region4: #{tpu_custom_call.1} parent=1 // loop_header_branch
      %31 = sbr.rel (%p29) target = $region8
    $region5: #{tpu_custom_call.1} parent=1 // loop_body
      %s33 = ssub.s32 %s28, 1
      %s34 = ssub.s32 %s28, 2
      %s35 = sadd.s32 %s28, 1
      %s36 = ssub.s32 %s28, %s35
      %p37 = scmp.eq.s32.totalorder %s36, 0
      %s39 = sadd.s32 %s38, 1
      %s40 = scalar_select %p37, %s38, %s39
      %p43 = pneg %p37
      %p44 = scmp.eq.s32.totalorder %s28, 1
      %p45 = por %p43, %p44
      %p46 = scmp.ne.s32.totalorder %s38, %s41
      %p47 = scmp.eq.s32.totalorder %s28, 0
      %p48 = por %p46, %p47
      %p49 = scmp.ne.s32.totalorder %s38, %s41
      %p50 = scmp.eq.s32.totalorder %s33, 1
      %p51 = por %p49, %p50
      %p52 = scmp.ne.s32.totalorder %s41, %s42
      %p53 = scmp.eq.s32.totalorder %s33, 0
      %p54 = por %p52, %p53
      %p55 = scmp.ne.s32.totalorder %s41, %s42
      %p56 = scmp.eq.s32.totalorder %s34, 1
      %p57 = por %p55, %p56
      %p59 = scmp.ne.s32.totalorder %s42, %s58
      %p60 = scmp.eq.s32.totalorder %s34, 0
      %p61 = por %p59, %p60
      %s63 = sadd.s32 %s62, 1
      %p66 = scmp.eq.s32.totalorder %s28, 1
      %p67 = scmp.ne.s32.totalorder %s62, %s64
      %p68 = scmp.eq.s32.totalorder %s28, 0
      %p69 = por %p67, %p68
      %p70 = scmp.ne.s32.totalorder %s62, %s64
      %p71 = scmp.eq.s32.totalorder %s33, 1
      %p72 = por %p70, %p71
      %p73 = scmp.ne.s32.totalorder %s64, %s65
      %p74 = scmp.eq.s32.totalorder %s33, 0
      %p75 = por %p73, %p74
      %p76 = scmp.ne.s32.totalorder %s64, %s65
      %p77 = scmp.eq.s32.totalorder %s34, 1
      %p78 = por %p76, %p77
      %p80 = scmp.ne.s32.totalorder %s65, %s79
      %p81 = scmp.eq.s32.totalorder %s34, 0
      %p82 = por %p80, %p81
      %s84 = sadd.s32 %s83, 1
      %p87 = scmp.eq.s32.totalorder %s28, 1
      %p88 = scmp.ne.s32.totalorder %s83, %s85
      %p89 = scmp.eq.s32.totalorder %s28, 0
      %p90 = por %p88, %p89
      %p91 = scmp.ne.s32.totalorder %s83, %s85
      %p92 = scmp.eq.s32.totalorder %s33, 1
      %p93 = por %p91, %p92
      %p94 = scmp.ne.s32.totalorder %s85, %s86
      %p95 = scmp.eq.s32.totalorder %s33, 0
      %p96 = por %p94, %p95
      %p97 = scmp.ne.s32.totalorder %s85, %s86
      %p98 = scmp.eq.s32.totalorder %s34, 1
      %p99 = por %p97, %p98
      %p101 = scmp.ne.s32.totalorder %s86, %s100
      %p102 = scmp.eq.s32.totalorder %s34, 0
      %p103 = por %p101, %p102
      %s105 = sadd.s32 %s104, 1
      %p108 = scmp.eq.s32.totalorder %s28, 1
      %p109 = scmp.ne.s32.totalorder %s104, %s106
      %p110 = scmp.eq.s32.totalorder %s28, 0
      %p111 = por %p109, %p110
      %p112 = scmp.ne.s32.totalorder %s104, %s106
      %p113 = scmp.eq.s32.totalorder %s33, 1
      %p114 = por %p112, %p113
      %p115 = scmp.ne.s32.totalorder %s106, %s107
      %p116 = scmp.eq.s32.totalorder %s33, 0
      %p117 = por %p115, %p116
      %p118 = scmp.ne.s32.totalorder %s106, %s107
      %p119 = scmp.eq.s32.totalorder %s34, 1
      %p120 = por %p118, %p119
      %p122 = scmp.ne.s32.totalorder %s107, %s121
      %p123 = scmp.eq.s32.totalorder %s34, 0
      %p124 = por %p122, %p123
      %s126 = sadd.s32 %s125, 1
      %p129 = scmp.eq.s32.totalorder %s28, 1
      %p130 = scmp.ne.s32.totalorder %s125, %s127
      %p131 = scmp.eq.s32.totalorder %s28, 0
      %p132 = por %p130, %p131
      %p133 = scmp.ne.s32.totalorder %s125, %s127
      %p134 = scmp.eq.s32.totalorder %s33, 1
      %p135 = por %p133, %p134
      %p136 = scmp.ne.s32.totalorder %s127, %s128
      %p137 = scmp.eq.s32.totalorder %s33, 0
      %p138 = por %p136, %p137
      %p139 = scmp.ne.s32.totalorder %s127, %s128
      %p140 = scmp.eq.s32.totalorder %s34, 1
      %p141 = por %p139, %p140
      %p143 = scmp.ne.s32.totalorder %s128, %s142
      %p144 = scmp.eq.s32.totalorder %s34, 0
      %p145 = por %p143, %p144
      %s147 = sadd.s32 %s146, 1
      %p150 = scmp.eq.s32.totalorder %s28, 1
      %p151 = scmp.ne.s32.totalorder %s146, %s148
      %p152 = scmp.eq.s32.totalorder %s28, 0
      %p153 = por %p151, %p152
      %p154 = scmp.ne.s32.totalorder %s146, %s148
      %p155 = scmp.eq.s32.totalorder %s33, 1
      %p156 = por %p154, %p155
      %p157 = scmp.ne.s32.totalorder %s148, %s149
      %p158 = scmp.eq.s32.totalorder %s33, 0
      %p159 = por %p157, %p158
      %p160 = scmp.ne.s32.totalorder %s148, %s149
      %p161 = scmp.eq.s32.totalorder %s34, 1
      %p162 = por %p160, %p161
      %p164 = scmp.ne.s32.totalorder %s149, %s163
      %p165 = scmp.eq.s32.totalorder %s34, 0
      %p166 = por %p164, %p165
      %s168 = sadd.s32 %s167, 1
      %p171 = scmp.eq.s32.totalorder %s28, 1
      %p172 = scmp.ne.s32.totalorder %s167, %s169
      %p173 = scmp.eq.s32.totalorder %s28, 0
      %p174 = por %p172, %p173
      %p175 = scmp.ne.s32.totalorder %s167, %s169
      %p176 = scmp.eq.s32.totalorder %s33, 1
      %p177 = por %p175, %p176
      %p178 = scmp.ne.s32.totalorder %s169, %s170
      %p179 = scmp.eq.s32.totalorder %s33, 0
      %p180 = por %p178, %p179
      %p181 = scmp.ne.s32.totalorder %s169, %s170
      %p182 = scmp.eq.s32.totalorder %s34, 1
      %p183 = por %p181, %p182
      %p185 = scmp.ne.s32.totalorder %s170, %s184
      %p186 = scmp.eq.s32.totalorder %s34, 0
      %p187 = por %p185, %p186
      %s189 = sadd.s32 %s188, 1
      %p192 = scmp.eq.s32.totalorder %s28, 1
      %p193 = scmp.ne.s32.totalorder %s188, %s190
      %p194 = scmp.eq.s32.totalorder %s28, 0
      %p195 = por %p193, %p194
      %p196 = scmp.ne.s32.totalorder %s188, %s190
      %p197 = scmp.eq.s32.totalorder %s33, 1
      %p198 = por %p196, %p197
      %p199 = scmp.ne.s32.totalorder %s190, %s191
      %p200 = scmp.eq.s32.totalorder %s33, 0
      %p201 = por %p199, %p200
      %p202 = scmp.ne.s32.totalorder %s190, %s191
      %p203 = scmp.eq.s32.totalorder %s34, 1
      %p204 = por %p202, %p203
      %p206 = scmp.ne.s32.totalorder %s191, %s205
      %p207 = scmp.eq.s32.totalorder %s34, 0
      %p208 = por %p206, %p207
      %s210 = sadd.s32 %s209, 1
      %p213 = scmp.eq.s32.totalorder %s28, 1
      %p214 = scmp.ne.s32.totalorder %s209, %s211
      %p215 = scmp.eq.s32.totalorder %s28, 0
      %p216 = por %p214, %p215
      %p217 = scmp.ne.s32.totalorder %s209, %s211
      %p218 = scmp.eq.s32.totalorder %s33, 1
      %p219 = por %p217, %p218
      %p220 = scmp.ne.s32.totalorder %s211, %s212
      %p221 = scmp.eq.s32.totalorder %s33, 0
      %p222 = por %p220, %p221
      %p223 = scmp.ne.s32.totalorder %s211, %s212
      %p224 = scmp.eq.s32.totalorder %s34, 1
      %p225 = por %p223, %p224
      %p227 = scmp.ne.s32.totalorder %s212, %s226
      %p228 = scmp.eq.s32.totalorder %s34, 0
      %p229 = por %p227, %p228
      %s231 = sadd.s32 %s230, 1
      %p234 = scmp.eq.s32.totalorder %s28, 1
      %p235 = scmp.ne.s32.totalorder %s230, %s232
      %p236 = scmp.eq.s32.totalorder %s28, 0
      %p237 = por %p235, %p236
      %p238 = scmp.ne.s32.totalorder %s230, %s232
      %p239 = scmp.eq.s32.totalorder %s33, 1
      %p240 = por %p238, %p239
      %p241 = scmp.ne.s32.totalorder %s232, %s233
      %p242 = scmp.eq.s32.totalorder %s33, 0
      %p243 = por %p241, %p242
      %p244 = scmp.ne.s32.totalorder %s232, %s233
      %p245 = scmp.eq.s32.totalorder %s34, 1
      %p246 = por %p244, %p245
      %p248 = scmp.ne.s32.totalorder %s233, %s247
      %p249 = scmp.eq.s32.totalorder %s34, 0
      %p250 = por %p248, %p249
      %s252 = sadd.s32 %s251, 1
      %p255 = scmp.eq.s32.totalorder %s28, 1
      %p256 = scmp.ne.s32.totalorder %s251, %s253
      %p257 = scmp.eq.s32.totalorder %s28, 0
      %p258 = por %p256, %p257
      %p259 = scmp.ne.s32.totalorder %s251, %s253
      %p260 = scmp.eq.s32.totalorder %s33, 1
      %p261 = por %p259, %p260
      %p262 = scmp.ne.s32.totalorder %s253, %s254
      %p263 = scmp.eq.s32.totalorder %s33, 0
      %p264 = por %p262, %p263
      %p265 = scmp.ne.s32.totalorder %s253, %s254
      %p266 = scmp.eq.s32.totalorder %s34, 1
      %p267 = por %p265, %p266
      %p269 = scmp.ne.s32.totalorder %s254, %s268
      %p270 = scmp.eq.s32.totalorder %s34, 0
      %p271 = por %p269, %p270
      %s273 = sadd.s32 %s272, 1
      %p276 = scmp.eq.s32.totalorder %s28, 1
      %p277 = scmp.ne.s32.totalorder %s272, %s274
      %p278 = scmp.eq.s32.totalorder %s28, 0
      %p279 = por %p277, %p278
      %p280 = scmp.ne.s32.totalorder %s272, %s274
      %p281 = scmp.eq.s32.totalorder %s33, 1
      %p282 = por %p280, %p281
      %p283 = scmp.ne.s32.totalorder %s274, %s275
      %p284 = scmp.eq.s32.totalorder %s33, 0
      %p285 = por %p283, %p284
      %p286 = scmp.ne.s32.totalorder %s274, %s275
      %p287 = scmp.eq.s32.totalorder %s34, 1
      %p288 = por %p286, %p287
      %p290 = scmp.ne.s32.totalorder %s275, %s289
      %p291 = scmp.eq.s32.totalorder %s34, 0
      %p292 = por %p290, %p291
      %s294 = sadd.s32 %s293, 1
      %p297 = scmp.eq.s32.totalorder %s28, 1
      %p298 = scmp.ne.s32.totalorder %s293, %s295
      %p299 = scmp.eq.s32.totalorder %s28, 0
      %p300 = por %p298, %p299
      %p301 = scmp.ne.s32.totalorder %s293, %s295
      %p302 = scmp.eq.s32.totalorder %s33, 1
      %p303 = por %p301, %p302
      %p304 = scmp.ne.s32.totalorder %s295, %s296
      %p305 = scmp.eq.s32.totalorder %s33, 0
      %p306 = por %p304, %p305
      %p307 = scmp.ne.s32.totalorder %s295, %s296
      %p308 = scmp.eq.s32.totalorder %s34, 1
      %p309 = por %p307, %p308
      %p311 = scmp.ne.s32.totalorder %s296, %s310
      %p312 = scmp.eq.s32.totalorder %s34, 0
      %p313 = por %p311, %p312
      %s315 = sadd.s32 %s314, 1
      %p318 = scmp.eq.s32.totalorder %s28, 1
      %p319 = scmp.ne.s32.totalorder %s314, %s316
      %p320 = scmp.eq.s32.totalorder %s28, 0
      %p321 = por %p319, %p320
      %p322 = scmp.ne.s32.totalorder %s314, %s316
      %p323 = scmp.eq.s32.totalorder %s33, 1
      %p324 = por %p322, %p323
      %p325 = scmp.ne.s32.totalorder %s316, %s317
      %p326 = scmp.eq.s32.totalorder %s33, 0
      %p327 = por %p325, %p326
      %p328 = scmp.ne.s32.totalorder %s316, %s317
      %p329 = scmp.eq.s32.totalorder %s34, 1
      %p330 = por %p328, %p329
      %p332 = scmp.ne.s32.totalorder %s317, %s331
      %p333 = scmp.eq.s32.totalorder %s34, 0
      %p334 = por %p332, %p333
      %s336 = sadd.s32 %s335, 1
      %p339 = scmp.eq.s32.totalorder %s28, 1
      %p340 = scmp.ne.s32.totalorder %s335, %s337
      %p341 = scmp.eq.s32.totalorder %s28, 0
      %p342 = por %p340, %p341
      %p343 = scmp.ne.s32.totalorder %s335, %s337
      %p344 = scmp.eq.s32.totalorder %s33, 1
      %p345 = por %p343, %p344
      %p346 = scmp.ne.s32.totalorder %s337, %s338
      %p347 = scmp.eq.s32.totalorder %s33, 0
      %p348 = por %p346, %p347
      %p349 = scmp.ne.s32.totalorder %s337, %s338
      %p350 = scmp.eq.s32.totalorder %s34, 1
      %p351 = por %p349, %p350
      %p353 = scmp.ne.s32.totalorder %s338, %s352
      %p354 = scmp.eq.s32.totalorder %s34, 0
      %p355 = por %p353, %p354
      %s357 = sadd.s32 %s356, 1
      %p360 = scmp.eq.s32.totalorder %s28, 1
      %p361 = scmp.ne.s32.totalorder %s356, %s358
      %p362 = scmp.eq.s32.totalorder %s28, 0
      %p363 = por %p361, %p362
      %p364 = scmp.ne.s32.totalorder %s356, %s358
      %p365 = scmp.eq.s32.totalorder %s33, 1
      %p366 = por %p364, %p365
      %p367 = scmp.ne.s32.totalorder %s358, %s359
      %p368 = scmp.eq.s32.totalorder %s33, 0
      %p369 = por %p367, %p368
      %p370 = scmp.ne.s32.totalorder %s358, %s359
      %p371 = scmp.eq.s32.totalorder %s34, 1
      %p372 = por %p370, %p371
      %p374 = scmp.ne.s32.totalorder %s359, %s373
      %p375 = scmp.eq.s32.totalorder %s34, 0
      %p376 = por %p374, %p375
      %s378 = sadd.s32 %s377, 1
      %p381 = scmp.eq.s32.totalorder %s28, 1
      %p382 = scmp.ne.s32.totalorder %s377, %s379
      %p383 = scmp.eq.s32.totalorder %s28, 0
      %p384 = por %p382, %p383
      %p385 = scmp.ne.s32.totalorder %s377, %s379
      %p386 = scmp.eq.s32.totalorder %s33, 1
      %p387 = por %p385, %p386
      %p388 = scmp.ne.s32.totalorder %s379, %s380
      %p389 = scmp.eq.s32.totalorder %s33, 0
      %p390 = por %p388, %p389
      %p391 = scmp.ne.s32.totalorder %s379, %s380
      %p392 = scmp.eq.s32.totalorder %s34, 1
      %p393 = por %p391, %p392
      %p395 = scmp.ne.s32.totalorder %s380, %s394
      %p396 = scmp.eq.s32.totalorder %s34, 0
      %p397 = por %p395, %p396
      %s399 = sadd.s32 %s398, 1
      %p402 = scmp.eq.s32.totalorder %s28, 1
      %p403 = scmp.ne.s32.totalorder %s398, %s400
      %p404 = scmp.eq.s32.totalorder %s28, 0
      %p405 = por %p403, %p404
      %p406 = scmp.ne.s32.totalorder %s398, %s400
      %p407 = scmp.eq.s32.totalorder %s33, 1
      %p408 = por %p406, %p407
      %p409 = scmp.ne.s32.totalorder %s400, %s401
      %p410 = scmp.eq.s32.totalorder %s33, 0
      %p411 = por %p409, %p410
      %p412 = scmp.ne.s32.totalorder %s400, %s401
      %p413 = scmp.eq.s32.totalorder %s34, 1
      %p414 = por %p412, %p413
      %p416 = scmp.ne.s32.totalorder %s401, %s415
      %p417 = scmp.eq.s32.totalorder %s34, 0
      %p418 = por %p416, %p417
      %s420 = sadd.s32 %s419, 1
      %p423 = scmp.eq.s32.totalorder %s28, 1
      %p424 = scmp.ne.s32.totalorder %s419, %s421
      %p425 = scmp.eq.s32.totalorder %s28, 0
      %p426 = por %p424, %p425
      %p427 = scmp.ne.s32.totalorder %s419, %s421
      %p428 = scmp.eq.s32.totalorder %s33, 1
      %p429 = por %p427, %p428
      %p430 = scmp.ne.s32.totalorder %s421, %s422
      %p431 = scmp.eq.s32.totalorder %s33, 0
      %p432 = por %p430, %p431
      %p433 = scmp.ne.s32.totalorder %s421, %s422
      %p434 = scmp.eq.s32.totalorder %s34, 1
      %p435 = por %p433, %p434
      %p437 = scmp.ne.s32.totalorder %s422, %s436
      %p438 = scmp.eq.s32.totalorder %s34, 0
      %p439 = por %p437, %p438
      %s440 = ssub.s32 %s28, %s35
      %p441 = scmp.eq.s32.totalorder %s440, 0
      %s443 = sadd.s32 %s442, 1
      %s444 = scalar_select %p441, %s442, %s443
      %p447 = pneg %p441
      %p448 = scmp.eq.s32.totalorder %s28, 1
      %p449 = por %p447, %p448
      %p450 = scmp.ne.s32.totalorder %s442, %s445
      %p451 = scmp.eq.s32.totalorder %s28, 0
      %p452 = por %p450, %p451
      %p453 = scmp.ne.s32.totalorder %s442, %s445
      %p454 = scmp.eq.s32.totalorder %s33, 1
      %p455 = por %p453, %p454
      %p456 = scmp.ne.s32.totalorder %s445, %s446
      %p457 = scmp.eq.s32.totalorder %s33, 0
      %p458 = por %p456, %p457
      %p459 = scmp.ne.s32.totalorder %s445, %s446
      %p460 = scmp.eq.s32.totalorder %s34, 1
      %p461 = por %p459, %p460
      %p463 = scmp.ne.s32.totalorder %s446, %s462
      %p464 = scmp.eq.s32.totalorder %s34, 0
      %p465 = por %p463, %p464
      %p466 = scmp.le.s32.totalorder 1, %s28
      %p467 = scmp.lt.s32.totalorder %s28, 3
      %p468 = pnand %p466, %p467
      %p469 = pneg %p468
      // Predicated region
      $region9: #{tpu_custom_call.1} parent=5 // pred_check
        _
      $region10: #{tpu_custom_call.1} parent=5 // pred_check_branch
        %471 = sbr.rel (%p468) target = $region12
      $region11: #{tpu_custom_call.1} parent=5 // pred_region
        %s472 = ssub.s32 %s28, 1
        // Predicated region
        $region13: #{tpu_custom_call.1} parent=11 // pred_check
          %p473 = pneg %p75
        $region14: #{tpu_custom_call.1} parent=11 // pred_check_branch
          %475 = sbr.rel (%p473) target = $region16
        $region15: #{tpu_custom_call.1} parent=11 // pred_region
          _
        $region16: #{tpu_custom_call.1} parent=11 // pred_fallthru
          _
        // Predicated region
        $region17: #{tpu_custom_call.1} parent=11 // pred_check
          %p476 = pneg %p96
        $region18: #{tpu_custom_call.1} parent=11 // pred_check_branch
          %478 = sbr.rel (%p476) target = $region20
        $region19: #{tpu_custom_call.1} parent=11 // pred_region
          _
        $region20: #{tpu_custom_call.1} parent=11 // pred_fallthru
          _
        // Predicated region
        $region21: #{tpu_custom_call.1} parent=11 // pred_check
          %p479 = pneg %p117
        $region22: #{tpu_custom_call.1} parent=11 // pred_check_branch
          %481 = sbr.rel (%p479) target = $region24
        $region23: #{tpu_custom_call.1} parent=11 // pred_region
          _
        $region24: #{tpu_custom_call.1} parent=11 // pred_fallthru
          _
        // Predicated region
        $region25: #{tpu_custom_call.1} parent=11 // pred_check
          %p482 = pneg %p138
        $region26: #{tpu_custom_call.1} parent=11 // pred_check_branch
          %484 = sbr.rel (%p482) target = $region28
        $region27: #{tpu_custom_call.1} parent=11 // pred_region
          _
        $region28: #{tpu_custom_call.1} parent=11 // pred_fallthru
          _
        // Predicated region
        $region29: #{tpu_custom_call.1} parent=11 // pred_check
          %p485 = pneg %p159
        $region30: #{tpu_custom_call.1} parent=11 // pred_check_branch
          %487 = sbr.rel (%p485) target = $region32
        $region31: #{tpu_custom_call.1} parent=11 // pred_region
          _
        $region32: #{tpu_custom_call.1} parent=11 // pred_fallthru
          _
        // Predicated region
        $region33: #{tpu_custom_call.1} parent=11 // pred_check
          %p488 = pneg %p180
        $region34: #{tpu_custom_call.1} parent=11 // pred_check_branch
          %490 = sbr.rel (%p488) target = $region36
        $region35: #{tpu_custom_call.1} parent=11 // pred_region
          _
        $region36: #{tpu_custom_call.1} parent=11 // pred_fallthru
          _
        // Predicated region
        $region37: #{tpu_custom_call.1} parent=11 // pred_check
          %p491 = pneg %p201
        $region38: #{tpu_custom_call.1} parent=11 // pred_check_branch
          %493 = sbr.rel (%p491) target = $region40
        $region39: #{tpu_custom_call.1} parent=11 // pred_region
          _
        $region40: #{tpu_custom_call.1} parent=11 // pred_fallthru
          _
        // Predicated region
        $region41: #{tpu_custom_call.1} parent=11 // pred_check
          %p494 = pneg %p222
        $region42: #{tpu_custom_call.1} parent=11 // pred_check_branch
          %496 = sbr.rel (%p494) target = $region44
        $region43: #{tpu_custom_call.1} parent=11 // pred_region
          _
        $region44: #{tpu_custom_call.1} parent=11 // pred_fallthru
          _
        // Predicated region
        $region45: #{tpu_custom_call.1} parent=11 // pred_check
          %p497 = pneg %p243
        $region46: #{tpu_custom_call.1} parent=11 // pred_check_branch
          %499 = sbr.rel (%p497) target = $region48
        $region47: #{tpu_custom_call.1} parent=11 // pred_region
          _
        $region48: #{tpu_custom_call.1} parent=11 // pred_fallthru
          _
        // Predicated region
        $region49: #{tpu_custom_call.1} parent=11 // pred_check
          %p500 = pneg %p264
        $region50: #{tpu_custom_call.1} parent=11 // pred_check_branch
          %502 = sbr.rel (%p500) target = $region52
        $region51: #{tpu_custom_call.1} parent=11 // pred_region
          _
        $region52: #{tpu_custom_call.1} parent=11 // pred_fallthru
          _
        // Predicated region
        $region53: #{tpu_custom_call.1} parent=11 // pred_check
          %p503 = pneg %p285
        $region54: #{tpu_custom_call.1} parent=11 // pred_check_branch
          %505 = sbr.rel (%p503) target = $region56
        $region55: #{tpu_custom_call.1} parent=11 // pred_region
          _
        $region56: #{tpu_custom_call.1} parent=11 // pred_fallthru
          _
        // Predicated region
        $region57: #{tpu_custom_call.1} parent=11 // pred_check
          %p506 = pneg %p306
        $region58: #{tpu_custom_call.1} parent=11 // pred_check_branch
          %508 = sbr.rel (%p506) target = $region60
        $region59: #{tpu_custom_call.1} parent=11 // pred_region
          _
        $region60: #{tpu_custom_call.1} parent=11 // pred_fallthru
          _
        // Predicated region
        $region61: #{tpu_custom_call.1} parent=11 // pred_check
          %p509 = pneg %p327
        $region62: #{tpu_custom_call.1} parent=11 // pred_check_branch
          %511 = sbr.rel (%p509) target = $region64
        $region63: #{tpu_custom_call.1} parent=11 // pred_region
          _
        $region64: #{tpu_custom_call.1} parent=11 // pred_fallthru
          _
        // Predicated region
        $region65: #{tpu_custom_call.1} parent=11 // pred_check
          %p512 = pneg %p348
        $region66: #{tpu_custom_call.1} parent=11 // pred_check_branch
          %514 = sbr.rel (%p512) target = $region68
        $region67: #{tpu_custom_call.1} parent=11 // pred_region
          _
        $region68: #{tpu_custom_call.1} parent=11 // pred_fallthru
          _
        // Predicated region
        $region69: #{tpu_custom_call.1} parent=11 // pred_check
          %p515 = pneg %p369
        $region70: #{tpu_custom_call.1} parent=11 // pred_check_branch
          %517 = sbr.rel (%p515) target = $region72
        $region71: #{tpu_custom_call.1} parent=11 // pred_region
          _
        $region72: #{tpu_custom_call.1} parent=11 // pred_fallthru
          _
        // Predicated region
        $region73: #{tpu_custom_call.1} parent=11 // pred_check
          %p518 = pneg %p390
        $region74: #{tpu_custom_call.1} parent=11 // pred_check_branch
          %520 = sbr.rel (%p518) target = $region76
        $region75: #{tpu_custom_call.1} parent=11 // pred_region
          _
        $region76: #{tpu_custom_call.1} parent=11 // pred_fallthru
          _
        // Predicated region
        $region77: #{tpu_custom_call.1} parent=11 // pred_check
          %p521 = pneg %p411
        $region78: #{tpu_custom_call.1} parent=11 // pred_check_branch
          %523 = sbr.rel (%p521) target = $region80
        $region79: #{tpu_custom_call.1} parent=11 // pred_region
          _
        $region80: #{tpu_custom_call.1} parent=11 // pred_fallthru
          _
        // Predicated region
        $region81: #{tpu_custom_call.1} parent=11 // pred_check
          %p524 = pneg %p432
        $region82: #{tpu_custom_call.1} parent=11 // pred_check_branch
          %526 = sbr.rel (%p524) target = $region84
        $region83: #{tpu_custom_call.1} parent=11 // pred_region
          _
        $region84: #{tpu_custom_call.1} parent=11 // pred_fallthru
          _
      $region12: #{tpu_custom_call.1} parent=5 // pred_fallthru
        _
      %p527 = scmp.lt.s32.totalorder %s28, 2
      // Predicated region
      $region85: #{tpu_custom_call.1} parent=5 // pred_check
        %p528 = pneg %p527
      $region86: #{tpu_custom_call.1} parent=5 // pred_check_branch
        %530 = sbr.rel (%p528) target = $region88
      $region87: #{tpu_custom_call.1} parent=5 // pred_region
        // Predicated region
        $region89: #{tpu_custom_call.1} parent=87 // pred_check
          %p531 = pneg %p48
        $region90: #{tpu_custom_call.1} parent=87 // pred_check_branch
          %533 = sbr.rel (%p531) target = $region92
        $region91: #{tpu_custom_call.1} parent=87 // pred_region
          %s534 = smul.u32 4, %s28
          %p535 = scmp.lt.s32.totalorder %s534, 7
          %s536 = scalar_select %p535, %s534, 7
          %s537 = smul.addr %s536, 4
          %s538 = scalar_lea.vmem %s0, %s537
          %s539 = smul.u32 4, %s28
        $region92: #{tpu_custom_call.1} parent=87 // pred_fallthru
          _
      $region88: #{tpu_custom_call.1} parent=5 // pred_fallthru
        _
      %p540 = scmp.le.s32.totalorder 1, %s28
      %p541 = scmp.lt.s32.totalorder %s28, 3
      %p542 = pnand %p540, %p541
      %p543 = pneg %p542
      // Predicated region
      $region93: #{tpu_custom_call.1} parent=5 // pred_check
        _
      $region94: #{tpu_custom_call.1} parent=5 // pred_check_branch
        %545 = sbr.rel (%p542) target = $region96
      $region95: #{tpu_custom_call.1} parent=5 // pred_region
        %s546 = ssub.s32 %s28, 1
        %s547 = smul.u32 4, %s33
        %p548 = scmp.lt.s32.totalorder %s547, 7
        %s549 = scalar_select %p548, %s547, 7
        %s550 = smul.addr %s549, 4
        %s551 = scalar_lea.vmem %s0, %s550
        %p552 = pneg %p54
        %p553 = pneg %p51
        %p554 = pneg %p75
        %p555 = pneg %p72
        %p556 = pneg %p96
        %p557 = pneg %p93
        %p558 = pneg %p117
        %p559 = pneg %p114
        %p560 = pneg %p138
        %p561 = pneg %p135
        %p562 = pneg %p159
        %p563 = pneg %p156
        %p564 = pneg %p180
        %p565 = pneg %p177
        %p566 = pneg %p201
        %p567 = pneg %p198
        %p568 = pneg %p222
        %p569 = pneg %p219
        %p570 = pneg %p243
        %p571 = pneg %p240
        %p572 = pneg %p264
        %p573 = pneg %p261
        %p574 = pneg %p285
        %p575 = pneg %p282
        %p576 = pneg %p306
        %p577 = pneg %p303
        %p578 = pneg %p327
        %p579 = pneg %p324
        %p580 = pneg %p348
        %p581 = pneg %p345
        %p582 = pneg %p369
        %p583 = pneg %p366
        %p584 = pneg %p390
        %p585 = pneg %p387
        %p586 = pneg %p411
        %p587 = pneg %p408
        %p588 = pneg %p432
        %p589 = pneg %p429
        %p590 = pneg %p458
        %p591 = pneg %p455
        %s592 = sand.u32 %s445, 1
        %s593 = scalar_lea.sflag [#allocation3], %s592
        %s594 = sand.u32 %s445, 1
        %s595 = scalar_lea.vmem [#allocation2], %s594
        %s596 = smul.u32 4, %s33
        %p597 = scmp.lt.s32.totalorder %s596, 7
        %s598 = scalar_select %p597, %s596, 7
        %s599 = smul.addr %s598, 4
        %s600 = scalar_lea.vmem %s0, %s599
        %s601 = smul.u32 4, %s33
        %v603 = vlaneseq
        %v604 = vand.u32 %v603, 127
        %v605 = vadd.s32 %v604, 128
        %v606 = vadd.s32 %v604, 256
        %v607 = vadd.s32 %v604, 384
        %v608 = vand.u32 %v604, 511
        %v609 = vand.u32 %v605, 511
        %v610 = vand.u32 %v606, 511
        %v611 = vand.u32 %v607, 511
        %v612 = vld [vmem:[%s600] sm:$0xff]
        %v613 = vld [vmem:[%s600 + $0x8] sm:$0xff]
        %v614 = vld [vmem:[%s1] sm:$0xf]
        %616 = vset.pattern.permute.xlu0 0
        %617 = vperm.xlu0 %616, %v614
        %v618 = vpop.permute.xlu0 %617
        %v620 = vunpack.c.l.s4 839922192
        %v621 = vunpack.c.0.s8 %v620
        %v622 = vperm.slane %v618, %v621
        %v624 = vmul.f32 %v612, %v622
        %v625 = vmul.f32 %v613, %v622
        %v626 = vld [vmem:[%s2] sm:$0xf]
        %628 = vset.pattern.permute.xlu0 0
        %629 = vperm.xlu0 %628, %v626
        %v630 = vpop.permute.xlu0 %629
        %v632 = vunpack.c.l.s4 839922192
        %v633 = vunpack.c.0.s8 %v632
        %v634 = vperm.slane %v630, %v633
        %v636 = vadd.f32 %v624, %v634
        %v637 = vadd.f32 %v625, %v634
        %640 = vst [vmem:[#allocation1] ss:$2 sm:$0xff] %v636
        %s641 = scalar_lea.vmem [#allocation1], 16
        %642 = vst [vmem:[%s641] ss:$2 sm:$0xff] %v637
        %v643 = vld.sshfl [vmem:[#allocation1] sm:$0xff pattern:$0x75316420]
        %v644 = vld.sshfl [vmem:[#allocation1 + $0x8] sm:$0xff pattern:$0x75316420]
        %v645 = vld.sshfl [vmem:[#allocation1 + $0x10] sm:$0xff pattern:$0x75316420]
        %v646 = vld.sshfl [vmem:[#allocation1 + $0x18] sm:$0xff pattern:$0x75316420]
        %651 = vrot.lane.b32.xlu0 %v643, 1
        %v652 = vpop.permute.xlu0 %651
        %653 = vrot.lane.b32.xlu0 %v644, 1
        %v654 = vpop.permute.xlu0 %653
        %655 = vrot.lane.b32.xlu0 %v645, 1
        %v656 = vpop.permute.xlu0 %655
        %657 = vrot.lane.b32.xlu0 %v646, 1
        %v658 = vpop.permute.xlu0 %657
        %vm659 = vcmp.lt.s32.totalorder %v604, 1
        %v660 = vsel %vm659, %v656, %v658
        %v661 = vsel %vm659, %v654, %v656
        %v662 = vsel %vm659, %v652, %v654
        %v663 = vsel %vm659, %v658, %v652
        %vm664 = vcmp.ge.s32.totalorder %v608, 1
        %vm665 = vcmp.ge.s32.totalorder %v609, 1
        %vm666 = vcmp.ge.s32.totalorder %v610, 1
        %vm667 = vcmp.ge.s32.totalorder %v611, 1
        %v668 = vsel %vm664, 1, 0
        %v669 = vsel %vm665, 1, 0
        %v670 = vsel %vm666, 1, 0
        %v671 = vsel %vm667, 1, 0
        %vm672 = vcmp.eq.s32.totalorder %v668, 1
        %vm673 = vcmp.eq.s32.totalorder %v669, 1
        %vm674 = vcmp.eq.s32.totalorder %v670, 1
        %vm675 = vcmp.eq.s32.totalorder %v671, 1
        %v676 = vsel %vm672, %v663, 0.0
        %v677 = vsel %vm673, %v662, 0.0
        %v678 = vsel %vm674, %v661, 0.0
        %v679 = vsel %vm675, %v660, 0.0
        %v680 = vld [vmem:[%s3] sm:$0xf]
        %v681 = vpack.c.bf16 %v676, %v676
        %v682 = vpack.c.bf16 %v677, %v677
        %v683 = vpack.c.bf16 %v678, %v678
        %v684 = vpack.c.bf16 %v679, %v679
        %685 = vst [vmem:[#allocation1] ss:$2 sm:$0xff] %v636
        %s686 = scalar_lea.vmem [#allocation1], 16
        %687 = vst [vmem:[%s686] ss:$2 sm:$0xff] %v637
        %v688 = vld.sshfl [vmem:[#allocation1] sm:$0xff pattern:$0x75316420]
        %v689 = vld.sshfl [vmem:[#allocation1 + $0x8] sm:$0xff pattern:$0x75316420]
        %v690 = vld.sshfl [vmem:[#allocation1 + $0x10] sm:$0xff pattern:$0x75316420]
        %v691 = vld.sshfl [vmem:[#allocation1 + $0x18] sm:$0xff pattern:$0x75316420]
        %v696 = vpack.c.bf16 %v688, %v688
        %v697 = vpack.c.bf16 %v689, %v689
        %v698 = vpack.c.bf16 %v690, %v690
        %v699 = vpack.c.bf16 %v691, %v691
        %v701 = vunpack.c.l.b16 %v680
        %v702 = vpack.c.b16 %v701, %v701
        %703 = vrot.lane.b32.xlu0 %v702, 124
        %v704 = vpop.permute.xlu0 %703
        %vm705 = vcmask 31744
        %v707 = vsel %vm705, %v704, 0
        %vm709 = vcmask 1041408
        %v711 = vsel %vm709, %v696, 0
        %v714 = vsel %vm709, %v697, 0
        %v717 = vsel %vm709, %v698, 0
        %v720 = vsel %vm709, %v699, 0
        %722 = vmatpush.bf16.msra.mxu0 0
        %723 = vmatpush.bf16.msra.mxu0 0
        %724 = vmatpush.bf16.msra.mxu0 0
        %725 = vmatpush.bf16.msra.mxu0 0
        %726 = vmatpush.bf16.msra.mxu0 0
        %727 = vmatpush.bf16.msra.mxu0 0
        %728 = vmatpush.bf16.msra.mxu0 0
        %729 = vmatpush.bf16.msra.mxu0 %v711
        %730 = vmatmul.bf16.gmra.mxu0 %v707
        %v731 = vpop.f32.mrf.mxu0
        %v732 = vadd.f32 0.0, %v731
        %v733 = vpop.f32.mrf.mxu0
        %734 = vdwg.mxu0
        %735 = vmatpush.bf16.msra.mxu0 0
        %736 = vmatpush.bf16.msra.mxu0 0
        %737 = vmatpush.bf16.msra.mxu0 0
        %738 = vmatpush.bf16.msra.mxu0 0
        %739 = vmatpush.bf16.msra.mxu0 0
        %740 = vmatpush.bf16.msra.mxu0 0
        %741 = vmatpush.bf16.msra.mxu0 0
        %742 = vmatpush.bf16.msra.mxu0 %v714
        %743 = vmatmul.bf16.gmra.mxu0 %v707
        %v744 = vpop.f32.mrf.mxu0
        %v745 = vadd.f32 0.0, %v744
        %v746 = vpop.f32.mrf.mxu0
        %747 = vdwg.mxu0
        %748 = vmatpush.bf16.msra.mxu0 0
        %749 = vmatpush.bf16.msra.mxu0 0
        %750 = vmatpush.bf16.msra.mxu0 0
        %751 = vmatpush.bf16.msra.mxu0 0
        %752 = vmatpush.bf16.msra.mxu0 0
        %753 = vmatpush.bf16.msra.mxu0 0
        %754 = vmatpush.bf16.msra.mxu0 0
        %755 = vmatpush.bf16.msra.mxu0 %v717
        %756 = vmatmul.bf16.gmra.mxu0 %v707
        %v757 = vpop.f32.mrf.mxu0
        %v758 = vadd.f32 0.0, %v757
        %v759 = vpop.f32.mrf.mxu0
        %760 = vdwg.mxu0
        %761 = vmatpush.bf16.msra.mxu0 0
        %762 = vmatpush.bf16.msra.mxu0 0
        %763 = vmatpush.bf16.msra.mxu0 0
        %764 = vmatpush.bf16.msra.mxu0 0
        %765 = vmatpush.bf16.msra.mxu0 0
        %766 = vmatpush.bf16.msra.mxu0 0
        %767 = vmatpush.bf16.msra.mxu0 0
        %768 = vmatpush.bf16.msra.mxu0 %v720
        %769 = vmatmul.bf16.gmra.mxu0 %v707
        %v770 = vpop.f32.mrf.mxu0
        %v771 = vadd.f32 0.0, %v770
        %v772 = vpop.f32.mrf.mxu0
        %773 = vdwg.mxu0
        %v775 = vsel %vm705, %v680, 0
        %v778 = vsel %vm709, %v681, 0
        %v781 = vsel %vm709, %v682, 0
        %v784 = vsel %vm709, %v683, 0
        %v787 = vsel %vm709, %v684, 0
        %789 = vmatpush.bf16.msra.mxu0 0
        %790 = vmatpush.bf16.msra.mxu0 0
        %791 = vmatpush.bf16.msra.mxu0 0
        %792 = vmatpush.bf16.msra.mxu0 0
        %793 = vmatpush.bf16.msra.mxu0 0
        %794 = vmatpush.bf16.msra.mxu0 0
        %795 = vmatpush.bf16.msra.mxu0 0
        %796 = vmatpush.bf16.msra.mxu0 %v778
        %797 = vmatmul.bf16.gmra.mxu0 %v775
        %v798 = vpop.f32.mrf.mxu0
        %v799 = vadd.f32 %v732, %v798
        %v800 = vpop.f32.mrf.mxu0
        %801 = vdwg.mxu0
        %802 = vmatpush.bf16.msra.mxu0 0
        %803 = vmatpush.bf16.msra.mxu0 0
        %804 = vmatpush.bf16.msra.mxu0 0
        %805 = vmatpush.bf16.msra.mxu0 0
        %806 = vmatpush.bf16.msra.mxu0 0
        %807 = vmatpush.bf16.msra.mxu0 0
        %808 = vmatpush.bf16.msra.mxu0 0
        %809 = vmatpush.bf16.msra.mxu0 %v781
        %810 = vmatmul.bf16.gmra.mxu0 %v775
        %v811 = vpop.f32.mrf.mxu0
        %v812 = vadd.f32 %v745, %v811
        %v813 = vpop.f32.mrf.mxu0
        %814 = vdwg.mxu0
        %815 = vmatpush.bf16.msra.mxu0 0
        %816 = vmatpush.bf16.msra.mxu0 0
        %817 = vmatpush.bf16.msra.mxu0 0
        %818 = vmatpush.bf16.msra.mxu0 0
        %819 = vmatpush.bf16.msra.mxu0 0
        %820 = vmatpush.bf16.msra.mxu0 0
        %821 = vmatpush.bf16.msra.mxu0 0
        %822 = vmatpush.bf16.msra.mxu0 %v784
        %823 = vmatmul.bf16.gmra.mxu0 %v775
        %v824 = vpop.f32.mrf.mxu0
        %v825 = vadd.f32 %v758, %v824
        %v826 = vpop.f32.mrf.mxu0
        %827 = vdwg.mxu0
        %828 = vmatpush.bf16.msra.mxu0 0
        %829 = vmatpush.bf16.msra.mxu0 0
        %830 = vmatpush.bf16.msra.mxu0 0
        %831 = vmatpush.bf16.msra.mxu0 0
        %832 = vmatpush.bf16.msra.mxu0 0
        %833 = vmatpush.bf16.msra.mxu0 0
        %834 = vmatpush.bf16.msra.mxu0 0
        %835 = vmatpush.bf16.msra.mxu0 %v787
        %836 = vmatmul.bf16.gmra.mxu0 %v775
        %v837 = vpop.f32.mrf.mxu0
        %v838 = vadd.f32 %v771, %v837
        %v839 = vpop.f32.mrf.mxu0
        %840 = vdwg.mxu0
        %v841 = vld [vmem:[%s4] sm:$0xff]
        %843 = vset.pattern.permute.xlu0 0
        %844 = vperm.xlu0 %843, %v841
        %v845 = vpop.permute.xlu0 %844
        %v847 = vadd.f32 %v799, %v845
        %v848 = vadd.f32 %v812, %v845
        %v849 = vadd.f32 %v825, %v845
        %v850 = vadd.f32 %v838, %v845
        %v851 = vmax.f32 %v847, 0.0
        %v852 = vmax.f32 %v848, 0.0
        %v853 = vmax.f32 %v849, 0.0
        %v854 = vmax.f32 %v850, 0.0
        %855 = vrot.lane.b32.xlu0 %v851, 1
        %v856 = vpop.permute.xlu0 %855
        %857 = vrot.lane.b32.xlu0 %v852, 1
        %v858 = vpop.permute.xlu0 %857
        %859 = vrot.lane.b32.xlu0 %v853, 1
        %v860 = vpop.permute.xlu0 %859
        %861 = vrot.lane.b32.xlu0 %v854, 1
        %v862 = vpop.permute.xlu0 %861
        %v863 = vsel %vm659, %v860, %v862
        %v864 = vsel %vm659, %v858, %v860
        %v865 = vsel %vm659, %v856, %v858
        %v866 = vsel %vm659, %v862, %v856
        %v867 = vsel %vm672, %v866, 0.0
        %v868 = vsel %vm673, %v865, 0.0
        %v869 = vsel %vm674, %v864, 0.0
        %v870 = vsel %vm675, %v863, 0.0
        %v871 = vld [vmem:[%s5] sm:$0xf]
        %v872 = vpack.c.bf16 %v851, %v867
        %v873 = vpack.c.bf16 %v852, %v868
        %v874 = vpack.c.bf16 %v853, %v869
        %v875 = vpack.c.bf16 %v854, %v870
        %v876 = vld [vmem:[%s6] sm:$0xff]
        %878 = vset.pattern.permute.xlu0 0
        %879 = vperm.xlu0 %878, %v876
        %v880 = vpop.permute.xlu0 %879
        %vm882 = vcmask 130048
        %v884 = vsel %vm882, %v871, 0
        %886 = vmatpush.bf16.msra.mxu0 0
        %887 = vmatpush.bf16.msra.mxu0 0
        %888 = vmatpush.bf16.msra.mxu0 0
        %889 = vmatpush.bf16.msra.mxu0 0
        %890 = vmatpush.bf16.msra.mxu0 0
        %891 = vmatpush.bf16.msra.mxu0 0
        %892 = vmatpush.bf16.msra.mxu0 0
        %893 = vmatpush.bf16.msra.mxu0 %v872
        %894 = vmatmul.bf16.gmra.mxu0 %v884
        %v895 = vpop.f32.mrf.mxu0
        %v896 = vadd.f32 %v880, %v895
        %v897 = vpop.f32.mrf.mxu0
        %898 = vdwg.mxu0
        %899 = vmatpush.bf16.msra.mxu0 0
        %900 = vmatpush.bf16.msra.mxu0 0
        %901 = vmatpush.bf16.msra.mxu0 0
        %902 = vmatpush.bf16.msra.mxu0 0
        %903 = vmatpush.bf16.msra.mxu0 0
        %904 = vmatpush.bf16.msra.mxu0 0
        %905 = vmatpush.bf16.msra.mxu0 0
        %906 = vmatpush.bf16.msra.mxu0 %v873
        %907 = vmatmul.bf16.gmra.mxu0 %v884
        %v908 = vpop.f32.mrf.mxu0
        %v909 = vadd.f32 %v880, %v908
        %v910 = vpop.f32.mrf.mxu0
        %911 = vdwg.mxu0
        %912 = vmatpush.bf16.msra.mxu0 0
        %913 = vmatpush.bf16.msra.mxu0 0
        %914 = vmatpush.bf16.msra.mxu0 0
        %915 = vmatpush.bf16.msra.mxu0 0
        %916 = vmatpush.bf16.msra.mxu0 0
        %917 = vmatpush.bf16.msra.mxu0 0
        %918 = vmatpush.bf16.msra.mxu0 0
        %919 = vmatpush.bf16.msra.mxu0 %v874
        %920 = vmatmul.bf16.gmra.mxu0 %v884
        %v921 = vpop.f32.mrf.mxu0
        %v922 = vadd.f32 %v880, %v921
        %v923 = vpop.f32.mrf.mxu0
        %924 = vdwg.mxu0
        %925 = vmatpush.bf16.msra.mxu0 0
        %926 = vmatpush.bf16.msra.mxu0 0
        %927 = vmatpush.bf16.msra.mxu0 0
        %928 = vmatpush.bf16.msra.mxu0 0
        %929 = vmatpush.bf16.msra.mxu0 0
        %930 = vmatpush.bf16.msra.mxu0 0
        %931 = vmatpush.bf16.msra.mxu0 0
        %932 = vmatpush.bf16.msra.mxu0 %v875
        %933 = vmatmul.bf16.gmra.mxu0 %v884
        %v934 = vpop.f32.mrf.mxu0
        %v935 = vadd.f32 %v880, %v934
        %v936 = vpop.f32.mrf.mxu0
        %937 = vdwg.mxu0
        %v938 = vmax.f32 %v896, 0.0
        %v939 = vmax.f32 %v909, 0.0
        %v940 = vmax.f32 %v922, 0.0
        %v941 = vmax.f32 %v935, 0.0
        %v942 = vld [vmem:[%s7] sm:$0xf]
        %v943 = vld [vmem:[%s8] sm:$0xff]
        %945 = vset.pattern.permute.xlu0 0
        %946 = vperm.xlu0 %945, %v943
        %v947 = vpop.permute.xlu0 %946
        %v950 = vsel %vm705, %v942, 0
        %952 = vmatpush.bf16.msra.mxu0 0
        %953 = vmatpush.bf16.msra.mxu0 0
        %954 = vmatpush.bf16.msra.mxu0 0
        %955 = vmatpush.bf16.msra.mxu0 0
        %956 = vmatpush.bf16.msra.mxu0 0
        %957 = vmatpush.bf16.msra.mxu0 0
        %958 = vmatpush.bf16.msra.mxu0 0
        %959 = vmatpush.bf16.msra.mxu0 %v711
        %960 = vmatmul.bf16.gmra.mxu0 %v950
        %v961 = vpop.f32.mrf.mxu0
        %v962 = vadd.f32 %v947, %v961
        %v963 = vpop.f32.mrf.mxu0
        %964 = vdwg.mxu0
        %965 = vmatpush.bf16.msra.mxu0 0
        %966 = vmatpush.bf16.msra.mxu0 0
        %967 = vmatpush.bf16.msra.mxu0 0
        %968 = vmatpush.bf16.msra.mxu0 0
        %969 = vmatpush.bf16.msra.mxu0 0
        %970 = vmatpush.bf16.msra.mxu0 0
        %971 = vmatpush.bf16.msra.mxu0 0
        %972 = vmatpush.bf16.msra.mxu0 %v714
        %973 = vmatmul.bf16.gmra.mxu0 %v950
        %v974 = vpop.f32.mrf.mxu0
        %v975 = vadd.f32 %v947, %v974
        %v976 = vpop.f32.mrf.mxu0
        %977 = vdwg.mxu0
        %978 = vmatpush.bf16.msra.mxu0 0
        %979 = vmatpush.bf16.msra.mxu0 0
        %980 = vmatpush.bf16.msra.mxu0 0
        %981 = vmatpush.bf16.msra.mxu0 0
        %982 = vmatpush.bf16.msra.mxu0 0
        %983 = vmatpush.bf16.msra.mxu0 0
        %984 = vmatpush.bf16.msra.mxu0 0
        %985 = vmatpush.bf16.msra.mxu0 %v717
        %986 = vmatmul.bf16.gmra.mxu0 %v950
        %v987 = vpop.f32.mrf.mxu0
        %v988 = vadd.f32 %v947, %v987
        %v989 = vpop.f32.mrf.mxu0
        %990 = vdwg.mxu0
        %991 = vmatpush.bf16.msra.mxu0 0
        %992 = vmatpush.bf16.msra.mxu0 0
        %993 = vmatpush.bf16.msra.mxu0 0
        %994 = vmatpush.bf16.msra.mxu0 0
        %995 = vmatpush.bf16.msra.mxu0 0
        %996 = vmatpush.bf16.msra.mxu0 0
        %997 = vmatpush.bf16.msra.mxu0 0
        %998 = vmatpush.bf16.msra.mxu0 %v720
        %999 = vmatmul.bf16.gmra.mxu0 %v950
        %v1000 = vpop.f32.mrf.mxu0
        %v1001 = vadd.f32 %v947, %v1000
        %v1002 = vpop.f32.mrf.mxu0
        %1003 = vdwg.mxu0
        %v1004 = vadd.f32 %v938, %v962
        %v1005 = vadd.f32 %v939, %v975
        %v1006 = vadd.f32 %v940, %v988
        %v1007 = vadd.f32 %v941, %v1001
        %v1008 = vmax.f32 %v1004, 0.0
        %v1009 = vmax.f32 %v1005, 0.0
        %v1010 = vmax.f32 %v1006, 0.0
        %v1011 = vmax.f32 %v1007, 0.0
        %v1012 = vld [vmem:[%s9] sm:$0xff]
        %1014 = vset.pattern.permute.xlu0 0
        %1015 = vperm.xlu0 %1014, %v1012
        %v1016 = vpop.permute.xlu0 %1015
        %v1018 = vmul.f32 %v1008, %v1016
        %v1019 = vmul.f32 %v1009, %v1016
        %v1020 = vmul.f32 %v1010, %v1016
        %v1021 = vmul.f32 %v1011, %v1016
        %v1022 = vld [vmem:[%s10] sm:$0xff]
        %1024 = vset.pattern.permute.xlu0 0
        %1025 = vperm.xlu0 %1024, %v1022
        %v1026 = vpop.permute.xlu0 %1025
        %v1028 = vadd.f32 %v1018, %v1026
        %v1029 = vadd.f32 %v1019, %v1026
        %v1030 = vadd.f32 %v1020, %v1026
        %v1031 = vadd.f32 %v1021, %v1026
        %1032 = vrot.lane.b32.xlu0 %v1028, 2
        %v1033 = vpop.permute.xlu0 %1032
        %1034 = vrot.lane.b32.xlu0 %v1029, 2
        %v1035 = vpop.permute.xlu0 %1034
        %1036 = vrot.lane.b32.xlu0 %v1030, 2
        %v1037 = vpop.permute.xlu0 %1036
        %1038 = vrot.lane.b32.xlu0 %v1031, 2
        %v1039 = vpop.permute.xlu0 %1038
        %vm1040 = vcmp.lt.s32.totalorder %v604, 2
        %v1041 = vsel %vm1040, %v1037, %v1039
        %v1042 = vsel %vm1040, %v1035, %v1037
        %v1043 = vsel %vm1040, %v1033, %v1035
        %v1044 = vsel %vm1040, %v1039, %v1033
        %vm1045 = vcmp.ge.s32.totalorder %v608, 2
        %vm1046 = vcmp.ge.s32.totalorder %v609, 2
        %vm1047 = vcmp.ge.s32.totalorder %v610, 2
        %vm1048 = vcmp.ge.s32.totalorder %v611, 2
        %v1049 = vsel %vm1045, 1, 0
        %v1050 = vsel %vm1046, 1, 0
        %v1051 = vsel %vm1047, 1, 0
        %v1052 = vsel %vm1048, 1, 0
        %vm1053 = vcmp.eq.s32.totalorder %v1049, 1
        %vm1054 = vcmp.eq.s32.totalorder %v1050, 1
        %vm1055 = vcmp.eq.s32.totalorder %v1051, 1
        %vm1056 = vcmp.eq.s32.totalorder %v1052, 1
        %v1057 = vsel %vm1053, %v1044, 0.0
        %v1058 = vsel %vm1054, %v1043, 0.0
        %v1059 = vsel %vm1055, %v1042, 0.0
        %v1060 = vsel %vm1056, %v1041, 0.0
        %v1061 = vld [vmem:[%s11] sm:$0xf]
        %v1062 = vpack.c.bf16 %v1028, %v1057
        %v1063 = vpack.c.bf16 %v1029, %v1058
        %v1064 = vpack.c.bf16 %v1030, %v1059
        %v1065 = vpack.c.bf16 %v1031, %v1060
        %v1066 = vld [vmem:[%s12] sm:$0xff]
        %1068 = vset.pattern.permute.xlu0 0
        %1069 = vperm.xlu0 %1068, %v1066
        %v1070 = vpop.permute.xlu0 %1069
        %v1073 = vsel %vm882, %v1061, 0
        %1075 = vmatpush.bf16.msra.mxu0 0
        %1076 = vmatpush.bf16.msra.mxu0 0
        %1077 = vmatpush.bf16.msra.mxu0 0
        %1078 = vmatpush.bf16.msra.mxu0 0
        %1079 = vmatpush.bf16.msra.mxu0 0
        %1080 = vmatpush.bf16.msra.mxu0 0
        %1081 = vmatpush.bf16.msra.mxu0 0
        %1082 = vmatpush.bf16.msra.mxu0 %v1062
        %1083 = vmatmul.bf16.gmra.mxu0 %v1073
        %v1084 = vpop.f32.mrf.mxu0
        %v1085 = vadd.f32 %v1070, %v1084
        %v1086 = vpop.f32.mrf.mxu0
        %1087 = vdwg.mxu0
        %1088 = vmatpush.bf16.msra.mxu0 0
        %1089 = vmatpush.bf16.msra.mxu0 0
        %1090 = vmatpush.bf16.msra.mxu0 0
        %1091 = vmatpush.bf16.msra.mxu0 0
        %1092 = vmatpush.bf16.msra.mxu0 0
        %1093 = vmatpush.bf16.msra.mxu0 0
        %1094 = vmatpush.bf16.msra.mxu0 0
        %1095 = vmatpush.bf16.msra.mxu0 %v1063
        %1096 = vmatmul.bf16.gmra.mxu0 %v1073
        %v1097 = vpop.f32.mrf.mxu0
        %v1098 = vadd.f32 %v1070, %v1097
        %v1099 = vpop.f32.mrf.mxu0
        %1100 = vdwg.mxu0
        %1101 = vmatpush.bf16.msra.mxu0 0
        %1102 = vmatpush.bf16.msra.mxu0 0
        %1103 = vmatpush.bf16.msra.mxu0 0
        %1104 = vmatpush.bf16.msra.mxu0 0
        %1105 = vmatpush.bf16.msra.mxu0 0
        %1106 = vmatpush.bf16.msra.mxu0 0
        %1107 = vmatpush.bf16.msra.mxu0 0
        %1108 = vmatpush.bf16.msra.mxu0 %v1064
        %1109 = vmatmul.bf16.gmra.mxu0 %v1073
        %v1110 = vpop.f32.mrf.mxu0
        %v1111 = vadd.f32 %v1070, %v1110
        %v1112 = vpop.f32.mrf.mxu0
        %1113 = vdwg.mxu0
        %1114 = vmatpush.bf16.msra.mxu0 0
        %1115 = vmatpush.bf16.msra.mxu0 0
        %1116 = vmatpush.bf16.msra.mxu0 0
        %1117 = vmatpush.bf16.msra.mxu0 0
        %1118 = vmatpush.bf16.msra.mxu0 0
        %1119 = vmatpush.bf16.msra.mxu0 0
        %1120 = vmatpush.bf16.msra.mxu0 0
        %1121 = vmatpush.bf16.msra.mxu0 %v1065
        %1122 = vmatmul.bf16.gmra.mxu0 %v1073
        %v1123 = vpop.f32.mrf.mxu0
        %v1124 = vadd.f32 %v1070, %v1123
        %v1125 = vpop.f32.mrf.mxu0
        %1126 = vdwg.mxu0
        %v1127 = vmax.f32 %v1085, 0.0
        %v1128 = vmax.f32 %v1098, 0.0
        %v1129 = vmax.f32 %v1111, 0.0
        %v1130 = vmax.f32 %v1124, 0.0
        %1131 = vrot.lane.b32.xlu0 %v1127, 2
        %v1132 = vpop.permute.xlu0 %1131
        %1133 = vrot.lane.b32.xlu0 %v1128, 2
        %v1134 = vpop.permute.xlu0 %1133
        %1135 = vrot.lane.b32.xlu0 %v1129, 2
        %v1136 = vpop.permute.xlu0 %1135
        %1137 = vrot.lane.b32.xlu0 %v1130, 2
        %v1138 = vpop.permute.xlu0 %1137
        %v1139 = vsel %vm1040, %v1136, %v1138
        %v1140 = vsel %vm1040, %v1134, %v1136
        %v1141 = vsel %vm1040, %v1132, %v1134
        %v1142 = vsel %vm1040, %v1138, %v1132
        %v1143 = vsel %vm1053, %v1142, 0.0
        %v1144 = vsel %vm1054, %v1141, 0.0
        %v1145 = vsel %vm1055, %v1140, 0.0
        %v1146 = vsel %vm1056, %v1139, 0.0
        %v1147 = vld [vmem:[%s13] sm:$0xf]
        %v1148 = vpack.c.bf16 %v1127, %v1143
        %v1149 = vpack.c.bf16 %v1128, %v1144
        %v1150 = vpack.c.bf16 %v1129, %v1145
        %v1151 = vpack.c.bf16 %v1130, %v1146
        %v1152 = vld [vmem:[%s14] sm:$0xff]
        %1154 = vset.pattern.permute.xlu0 0
        %1155 = vperm.xlu0 %1154, %v1152
        %v1156 = vpop.permute.xlu0 %1155
        %v1159 = vsel %vm882, %v1147, 0
        %1161 = vmatpush.bf16.msra.mxu0 0
        %1162 = vmatpush.bf16.msra.mxu0 0
        %1163 = vmatpush.bf16.msra.mxu0 0
        %1164 = vmatpush.bf16.msra.mxu0 0
        %1165 = vmatpush.bf16.msra.mxu0 0
        %1166 = vmatpush.bf16.msra.mxu0 0
        %1167 = vmatpush.bf16.msra.mxu0 0
        %1168 = vmatpush.bf16.msra.mxu0 %v1148
        %1169 = vmatmul.bf16.gmra.mxu0 %v1159
        %v1170 = vpop.f32.mrf.mxu0
        %v1171 = vadd.f32 %v1156, %v1170
        %v1172 = vpop.f32.mrf.mxu0
        %1173 = vdwg.mxu0
        %1174 = vmatpush.bf16.msra.mxu0 0
        %1175 = vmatpush.bf16.msra.mxu0 0
        %1176 = vmatpush.bf16.msra.mxu0 0
        %1177 = vmatpush.bf16.msra.mxu0 0
        %1178 = vmatpush.bf16.msra.mxu0 0
        %1179 = vmatpush.bf16.msra.mxu0 0
        %1180 = vmatpush.bf16.msra.mxu0 0
        %1181 = vmatpush.bf16.msra.mxu0 %v1149
        %1182 = vmatmul.bf16.gmra.mxu0 %v1159
        %v1183 = vpop.f32.mrf.mxu0
        %v1184 = vadd.f32 %v1156, %v1183
        %v1185 = vpop.f32.mrf.mxu0
        %1186 = vdwg.mxu0
        %1187 = vmatpush.bf16.msra.mxu0 0
        %1188 = vmatpush.bf16.msra.mxu0 0
        %1189 = vmatpush.bf16.msra.mxu0 0
        %1190 = vmatpush.bf16.msra.mxu0 0
        %1191 = vmatpush.bf16.msra.mxu0 0
        %1192 = vmatpush.bf16.msra.mxu0 0
        %1193 = vmatpush.bf16.msra.mxu0 0
        %1194 = vmatpush.bf16.msra.mxu0 %v1150
        %1195 = vmatmul.bf16.gmra.mxu0 %v1159
        %v1196 = vpop.f32.mrf.mxu0
        %v1197 = vadd.f32 %v1156, %v1196
        %v1198 = vpop.f32.mrf.mxu0
        %1199 = vdwg.mxu0
        %1200 = vmatpush.bf16.msra.mxu0 0
        %1201 = vmatpush.bf16.msra.mxu0 0
        %1202 = vmatpush.bf16.msra.mxu0 0
        %1203 = vmatpush.bf16.msra.mxu0 0
        %1204 = vmatpush.bf16.msra.mxu0 0
        %1205 = vmatpush.bf16.msra.mxu0 0
        %1206 = vmatpush.bf16.msra.mxu0 0
        %1207 = vmatpush.bf16.msra.mxu0 %v1151
        %1208 = vmatmul.bf16.gmra.mxu0 %v1159
        %v1209 = vpop.f32.mrf.mxu0
        %v1210 = vadd.f32 %v1156, %v1209
        %v1211 = vpop.f32.mrf.mxu0
        %1212 = vdwg.mxu0
        %v1213 = vmax.f32 %v1171, 0.0
        %v1214 = vmax.f32 %v1184, 0.0
        %v1215 = vmax.f32 %v1197, 0.0
        %v1216 = vmax.f32 %v1210, 0.0
        %v1217 = vadd.f32 %v1213, %v1028
        %v1218 = vadd.f32 %v1214, %v1029
        %v1219 = vadd.f32 %v1215, %v1030
        %v1220 = vadd.f32 %v1216, %v1031
        %v1221 = vmax.f32 %v1217, 0.0
        %v1222 = vmax.f32 %v1218, 0.0
        %v1223 = vmax.f32 %v1219, 0.0
        %v1224 = vmax.f32 %v1220, 0.0
        %vm1225 = vcmp.lt.s32.totalorder %v608, 500
        %vm1226 = vcmp.lt.s32.totalorder %v609, 500
        %vm1227 = vcmp.lt.s32.totalorder %v610, 500
        %vm1228 = vcmp.lt.s32.totalorder %v611, 500
        %v1229 = vsel %vm1225, 1, 0
        %v1230 = vsel %vm1226, 1, 0
        %v1231 = vsel %vm1227, 1, 0
        %v1232 = vsel %vm1228, 1, 0
        %vm1233 = vcmp.eq.s32.totalorder %v1229, 1
        %vm1234 = vcmp.eq.s32.totalorder %v1230, 1
        %vm1235 = vcmp.eq.s32.totalorder %v1231, 1
        %vm1236 = vcmp.eq.s32.totalorder %v1232, 1
        %v1237 = vsel %vm1233, %v1221, 0.0
        %v1238 = vsel %vm1234, %v1222, 0.0
        %v1239 = vsel %vm1235, %v1223, 0.0
        %v1240 = vsel %vm1236, %v1224, 0.0
        %v1245 = vrot.slane %v1238, 7
        %v1246 = vrot.slane %v1239, 6
        %v1247 = vrot.slane %v1240, 5
        %vm1248 = vcmask 1040384
        %v1249 = vsel %vm1248, %v1237, %v1245
        %vm1250 = vcmask 1042434
        %v1251 = vsel %vm1250, %v1246, %v1247
        %v1252 = vsel %vm709, %v1249, %v1251
        %vm1253 = vcmask 1041409
        %v1254 = vsel %vm1253, %v1237, %v1245
        %vm1255 = vcmask 1043459
        %v1256 = vsel %vm1255, %v1246, %v1247
        %vm1257 = vcmask 1042433
        %v1258 = vsel %vm1257, %v1254, %v1256
        %v1259 = vrot.slane %v1258, 1
        %v1260 = vsel %vm1250, %v1237, %v1245
        %vm1261 = vcmask 1044484
        %v1262 = vsel %vm1261, %v1246, %v1247
        %vm1263 = vcmask 1043458
        %v1264 = vsel %vm1263, %v1260, %v1262
        %v1265 = vrot.slane %v1264, 2
        %v1266 = vsel %vm1255, %v1237, %v1245
        %vm1267 = vcmask 1045509
        %v1268 = vsel %vm1267, %v1246, %v1247
        %vm1269 = vcmask 1044483
        %v1270 = vsel %vm1269, %v1266, %v1268
        %v1271 = vrot.slane %v1270, 3
        %v1272 = vsel %vm1261, %v1237, %v1245
        %vm1273 = vcmask 1046534
        %v1274 = vsel %vm1273, %v1246, %v1247
        %vm1275 = vcmask 1045508
        %v1276 = vsel %vm1275, %v1272, %v1274
        %v1277 = vrot.slane %v1276, 4
        %v1278 = vsel %vm1267, %v1237, %v1245
        %vm1279 = vcmask 1046528
        %v1280 = vsel %vm1279, %v1247, %v1246
        %vm1281 = vcmask 1046533
        %v1282 = vsel %vm1281, %v1278, %v1280
        %v1283 = vrot.slane %v1282, 5
        %v1284 = vsel %vm1273, %v1237, %v1245
        %v1285 = vsel %vm1248, %v1246, %v1247
        %vm1286 = vcmask 1045504
        %v1287 = vsel %vm1286, %v1285, %v1284
        %v1288 = vrot.slane %v1287, 6
        %v1289 = vsel %vm1279, %v1245, %v1237
        %v1290 = vsel %vm1253, %v1246, %v1247
        %vm1291 = vcmask 1046529
        %v1292 = vsel %vm1291, %v1290, %v1289
        %v1293 = vrot.slane %v1292, 7
        %v1294 = vperm.slane %v1252, 0
        %v1295 = vperm.slane %v1252, 1
        %v1296 = vperm.slane %v1252, 2
        %v1297 = vperm.slane %v1252, 3
        %v1298 = vperm.slane %v1259, 0
        %v1299 = vperm.slane %v1259, 1
        %v1300 = vperm.slane %v1259, 2
        %v1301 = vperm.slane %v1259, 3
        %v1302 = vperm.slane %v1265, 0
        %v1303 = vperm.slane %v1265, 1
        %v1304 = vperm.slane %v1265, 2
        %v1305 = vperm.slane %v1265, 3
        %v1306 = vperm.slane %v1271, 0
        %v1307 = vperm.slane %v1271, 1
        %v1308 = vperm.slane %v1271, 2
        %v1309 = vperm.slane %v1271, 3
        %v1310 = vperm.slane %v1277, 0
        %v1311 = vperm.slane %v1277, 1
        %v1312 = vperm.slane %v1277, 2
        %v1313 = vperm.slane %v1277, 3
        %v1314 = vperm.slane %v1283, 0
        %v1315 = vperm.slane %v1283, 1
        %v1316 = vperm.slane %v1283, 2
        %v1317 = vperm.slane %v1283, 3
        %v1318 = vperm.slane %v1288, 0
        %v1319 = vperm.slane %v1288, 1
        %v1320 = vperm.slane %v1288, 2
        %v1321 = vperm.slane %v1288, 3
        %v1322 = vperm.slane %v1293, 0
        %v1323 = vperm.slane %v1293, 1
        %v1324 = vperm.slane %v1293, 2
        %v1325 = vperm.slane %v1293, 3
        %v1358 = vpack.c.bf16 %v1295, %v1294
        %v1359 = vpack.c.bf16 %v1297, %v1296
        %v1360 = vpack.c.bf16 %v1299, %v1298
        %v1361 = vpack.c.bf16 %v1301, %v1300
        %v1362 = vpack.c.bf16 %v1303, %v1302
        %v1363 = vpack.c.bf16 %v1305, %v1304
        %v1364 = vpack.c.bf16 %v1307, %v1306
        %v1365 = vpack.c.bf16 %v1309, %v1308
        %v1366 = vpack.c.bf16 %v1311, %v1310
        %v1367 = vpack.c.bf16 %v1313, %v1312
        %v1368 = vpack.c.bf16 %v1315, %v1314
        %v1369 = vpack.c.bf16 %v1317, %v1316
        %v1370 = vpack.c.bf16 %v1319, %v1318
        %v1371 = vpack.c.bf16 %v1321, %v1320
        %v1372 = vpack.c.bf16 %v1323, %v1322
        %v1373 = vpack.c.bf16 %v1325, %v1324
        %v1374 = vld [vmem:[%s15] sm:$0xf]
        %v1375 = vld [vmem:[%s15 + $0x4] sm:$0xf]
        %v1376 = vld [vmem:[%s15 + $0x8] sm:$0xf]
        %v1377 = vld [vmem:[%s15 + $0xc] sm:$0xf]
        %v1378 = vld [vmem:[%s15 + $0x10] sm:$0xf]
        %v1379 = vld [vmem:[%s15 + $0x14] sm:$0xf]
        %v1380 = vld [vmem:[%s15 + $0x18] sm:$0xf]
        %v1381 = vld [vmem:[%s15 + $0x1c] sm:$0xf]
        %v1382 = vld [vmem:[%s15 + $0x20] sm:$0xf]
        %v1383 = vld [vmem:[%s15 + $0x24] sm:$0xf]
        %v1384 = vld [vmem:[%s15 + $0x28] sm:$0xf]
        %v1385 = vld [vmem:[%s15 + $0x2c] sm:$0xf]
        %v1386 = vld [vmem:[%s15 + $0x30] sm:$0xf]
        %v1387 = vld [vmem:[%s15 + $0x34] sm:$0xf]
        %v1388 = vld [vmem:[%s15 + $0x38] sm:$0xf]
        %v1389 = vld [vmem:[%s15 + $0x3c] sm:$0xf]
        %v1390 = vld [vmem:[%s15 + $0x40] sm:$0xf]
        %v1391 = vld [vmem:[%s15 + $0x44] sm:$0xf]
        %v1392 = vld [vmem:[%s15 + $0x48] sm:$0xf]
        %v1393 = vld [vmem:[%s15 + $0x4c] sm:$0xf]
        %v1394 = vld [vmem:[%s15 + $0x50] sm:$0xf]
        %v1395 = vld [vmem:[%s15 + $0x54] sm:$0xf]
        %v1396 = vld [vmem:[%s15 + $0x58] sm:$0xf]
        %v1397 = vld [vmem:[%s15 + $0x5c] sm:$0xf]
        %v1398 = vld [vmem:[%s15 + $0x60] sm:$0xf]
        %v1399 = vld [vmem:[%s15 + $0x64] sm:$0xf]
        %v1400 = vld [vmem:[%s15 + $0x68] sm:$0xf]
        %v1401 = vld [vmem:[%s15 + $0x6c] sm:$0xf]
        %v1402 = vld [vmem:[%s15 + $0x70] sm:$0xf]
        %v1403 = vld [vmem:[%s15 + $0x74] sm:$0xf]
        %v1404 = vld [vmem:[%s15 + $0x78] sm:$0xf]
        %v1405 = vld [vmem:[%s15 + $0x7c] sm:$0xf]
        %v1406 = vld [vmem:[%s15 + $0x80] sm:$0xf]
        %v1407 = vld [vmem:[%s15 + $0x84] sm:$0xf]
        %v1408 = vld [vmem:[%s15 + $0x88] sm:$0xf]
        %v1409 = vld [vmem:[%s15 + $0x8c] sm:$0xf]
        %v1410 = vld [vmem:[%s15 + $0x90] sm:$0xf]
        %v1411 = vld [vmem:[%s15 + $0x94] sm:$0xf]
        %v1412 = vld [vmem:[%s15 + $0x98] sm:$0xf]
        %v1413 = vld [vmem:[%s15 + $0x9c] sm:$0xf]
        %v1414 = vld [vmem:[%s15 + $0xa0] sm:$0xf]
        %v1415 = vld [vmem:[%s15 + $0xa4] sm:$0xf]
        %v1416 = vld [vmem:[%s15 + $0xa8] sm:$0xf]
        %v1417 = vld [vmem:[%s15 + $0xac] sm:$0xf]
        %v1418 = vld [vmem:[%s15 + $0xb0] sm:$0xf]
        %v1419 = vld [vmem:[%s15 + $0xb4] sm:$0xf]
        %v1420 = vld [vmem:[%s15 + $0xb8] sm:$0xf]
        %v1421 = vld [vmem:[%s15 + $0xbc] sm:$0xf]
        %v1422 = vld [vmem:[%s15 + $0xc0] sm:$0xf]
        %v1423 = vld [vmem:[%s15 + $0xc4] sm:$0xf]
        %v1424 = vld [vmem:[%s15 + $0xc8] sm:$0xf]
        %v1425 = vld [vmem:[%s15 + $0xcc] sm:$0xf]
        %v1426 = vld [vmem:[%s15 + $0xd0] sm:$0xf]
        %v1427 = vld [vmem:[%s15 + $0xd4] sm:$0xf]
        %v1428 = vld [vmem:[%s15 + $0xd8] sm:$0xf]
        %v1429 = vld [vmem:[%s15 + $0xdc] sm:$0xf]
        %v1430 = vld [vmem:[%s15 + $0xe0] sm:$0xf]
        %v1431 = vld [vmem:[%s15 + $0xe4] sm:$0xf]
        %v1432 = vld [vmem:[%s15 + $0xe8] sm:$0xf]
        %v1433 = vld [vmem:[%s15 + $0xec] sm:$0xf]
        %v1434 = vld [vmem:[%s15 + $0xf0] sm:$0xf]
        %v1435 = vld [vmem:[%s15 + $0xf4] sm:$0xf]
        %v1436 = vld [vmem:[%s15 + $0xf8] sm:$0xf]
        %v1437 = vld [vmem:[%s15 + $0xfc] sm:$0xf]
        %v1438 = vld [vmem:[%s15 + $0x100] sm:$0xf]
        %v1439 = vld [vmem:[%s15 + $0x104] sm:$0xf]
        %v1440 = vld [vmem:[%s15 + $0x108] sm:$0xf]
        %v1441 = vld [vmem:[%s15 + $0x10c] sm:$0xf]
        %v1442 = vld [vmem:[%s15 + $0x110] sm:$0xf]
        %v1443 = vld [vmem:[%s15 + $0x114] sm:$0xf]
        %v1444 = vld [vmem:[%s15 + $0x118] sm:$0xf]
        %v1445 = vld [vmem:[%s15 + $0x11c] sm:$0xf]
        %v1446 = vld [vmem:[%s15 + $0x120] sm:$0xf]
        %v1447 = vld [vmem:[%s15 + $0x124] sm:$0xf]
        %v1448 = vld [vmem:[%s15 + $0x128] sm:$0xf]
        %v1449 = vld [vmem:[%s15 + $0x12c] sm:$0xf]
        %v1450 = vld [vmem:[%s15 + $0x130] sm:$0xf]
        %v1451 = vld [vmem:[%s15 + $0x134] sm:$0xf]
        %v1452 = vld [vmem:[%s15 + $0x138] sm:$0xf]
        %v1453 = vld [vmem:[%s15 + $0x13c] sm:$0xf]
        %v1454 = vld [vmem:[%s15 + $0x140] sm:$0xf]
        %v1455 = vld [vmem:[%s15 + $0x144] sm:$0xf]
        %v1456 = vld [vmem:[%s15 + $0x148] sm:$0xf]
        %v1457 = vld [vmem:[%s15 + $0x14c] sm:$0xf]
        %v1458 = vld [vmem:[%s15 + $0x150] sm:$0xf]
        %v1459 = vld [vmem:[%s15 + $0x154] sm:$0xf]
        %v1460 = vld [vmem:[%s15 + $0x158] sm:$0xf]
        %v1461 = vld [vmem:[%s15 + $0x15c] sm:$0xf]
        %v1462 = vld [vmem:[%s15 + $0x160] sm:$0xf]
        %v1463 = vld [vmem:[%s15 + $0x164] sm:$0xf]
        %v1464 = vld [vmem:[%s15 + $0x168] sm:$0xf]
        %v1465 = vld [vmem:[%s15 + $0x16c] sm:$0xf]
        %v1466 = vld [vmem:[%s15 + $0x170] sm:$0xf]
        %v1467 = vld [vmem:[%s15 + $0x174] sm:$0xf]
        %v1468 = vld [vmem:[%s15 + $0x178] sm:$0xf]
        %v1469 = vld [vmem:[%s15 + $0x17c] sm:$0xf]
        %v1470 = vld [vmem:[%s15 + $0x180] sm:$0xf]
        %v1471 = vld [vmem:[%s15 + $0x184] sm:$0xf]
        %v1472 = vld [vmem:[%s15 + $0x188] sm:$0xf]
        %v1473 = vld [vmem:[%s15 + $0x18c] sm:$0xf]
        %v1474 = vld [vmem:[%s15 + $0x190] sm:$0xf]
        %v1475 = vld [vmem:[%s15 + $0x194] sm:$0xf]
        %v1476 = vld [vmem:[%s15 + $0x198] sm:$0xf]
        %v1477 = vld [vmem:[%s15 + $0x19c] sm:$0xf]
        %v1478 = vld [vmem:[%s15 + $0x1a0] sm:$0xf]
        %v1479 = vld [vmem:[%s15 + $0x1a4] sm:$0xf]
        %v1480 = vld [vmem:[%s15 + $0x1a8] sm:$0xf]
        %v1481 = vld [vmem:[%s15 + $0x1ac] sm:$0xf]
        %v1482 = vld [vmem:[%s15 + $0x1b0] sm:$0xf]
        %v1483 = vld [vmem:[%s15 + $0x1b4] sm:$0xf]
        %v1484 = vld [vmem:[%s15 + $0x1b8] sm:$0xf]
        %v1485 = vld [vmem:[%s15 + $0x1bc] sm:$0xf]
        %v1486 = vld [vmem:[%s15 + $0x1c0] sm:$0xf]
        %v1487 = vld [vmem:[%s15 + $0x1c4] sm:$0xf]
        %v1488 = vld [vmem:[%s15 + $0x1c8] sm:$0xf]
        %v1489 = vld [vmem:[%s15 + $0x1cc] sm:$0xf]
        %v1490 = vld [vmem:[%s15 + $0x1d0] sm:$0xf]
        %v1491 = vld [vmem:[%s15 + $0x1d4] sm:$0xf]
        %v1492 = vld [vmem:[%s15 + $0x1d8] sm:$0xf]
        %v1493 = vld [vmem:[%s15 + $0x1dc] sm:$0xf]
        %v1494 = vld [vmem:[%s15 + $0x1e0] sm:$0xf]
        %v1495 = vld [vmem:[%s15 + $0x1e4] sm:$0xf]
        %v1496 = vld [vmem:[%s15 + $0x1e8] sm:$0xf]
        %v1497 = vld [vmem:[%s15 + $0x1ec] sm:$0xf]
        %v1498 = vld [vmem:[%s15 + $0x1f0] sm:$0xf]
        %v1499 = vld [vmem:[%s15 + $0x1f4] sm:$0xf]
        %v1500 = vld [vmem:[%s15 + $0x1f8] sm:$0xf]
        %v1501 = vld [vmem:[%s15 + $0x1fc] sm:$0xf]
        %v1502 = vld [vmem:[%s15 + $0x200] sm:$0xf]
        %v1503 = vld [vmem:[%s15 + $0x204] sm:$0xf]
        %v1504 = vld [vmem:[%s15 + $0x208] sm:$0xf]
        %v1505 = vld [vmem:[%s15 + $0x20c] sm:$0xf]
        %v1506 = vld [vmem:[%s15 + $0x210] sm:$0xf]
        %v1507 = vld [vmem:[%s15 + $0x214] sm:$0xf]
        %v1508 = vld [vmem:[%s15 + $0x218] sm:$0xf]
        %v1509 = vld [vmem:[%s15 + $0x21c] sm:$0xf]
        %v1510 = vld [vmem:[%s15 + $0x220] sm:$0xf]
        %v1511 = vld [vmem:[%s15 + $0x224] sm:$0xf]
        %v1512 = vld [vmem:[%s15 + $0x228] sm:$0xf]
        %v1513 = vld [vmem:[%s15 + $0x22c] sm:$0xf]
        %v1514 = vld [vmem:[%s15 + $0x230] sm:$0xf]
        %v1515 = vld [vmem:[%s15 + $0x234] sm:$0xf]
        %v1516 = vld [vmem:[%s15 + $0x238] sm:$0xf]
        %v1517 = vld [vmem:[%s15 + $0x23c] sm:$0xf]
        %v1518 = vld [vmem:[%s15 + $0x240] sm:$0xf]
        %v1519 = vld [vmem:[%s15 + $0x244] sm:$0xf]
        %v1520 = vld [vmem:[%s15 + $0x248] sm:$0xf]
        %v1521 = vld [vmem:[%s15 + $0x24c] sm:$0xf]
        %v1522 = vld [vmem:[%s15 + $0x250] sm:$0xf]
        %v1523 = vld [vmem:[%s15 + $0x254] sm:$0xf]
        %v1524 = vld [vmem:[%s15 + $0x258] sm:$0xf]
        %v1525 = vld [vmem:[%s15 + $0x25c] sm:$0xf]
        %v1526 = vld [vmem:[%s15 + $0x260] sm:$0xf]
        %v1527 = vld [vmem:[%s15 + $0x264] sm:$0xf]
        %v1528 = vld [vmem:[%s15 + $0x268] sm:$0xf]
        %v1529 = vld [vmem:[%s15 + $0x26c] sm:$0xf]
        %v1530 = vld [vmem:[%s15 + $0x270] sm:$0xf]
        %v1531 = vld [vmem:[%s15 + $0x274] sm:$0xf]
        %v1532 = vld [vmem:[%s15 + $0x278] sm:$0xf]
        %v1533 = vld [vmem:[%s15 + $0x27c] sm:$0xf]
        %v1534 = vld [vmem:[%s15 + $0x280] sm:$0xf]
        %v1535 = vld [vmem:[%s15 + $0x284] sm:$0xf]
        %v1536 = vld [vmem:[%s15 + $0x288] sm:$0xf]
        %v1537 = vld [vmem:[%s15 + $0x28c] sm:$0xf]
        %v1538 = vld [vmem:[%s15 + $0x290] sm:$0xf]
        %v1539 = vld [vmem:[%s15 + $0x294] sm:$0xf]
        %v1540 = vld [vmem:[%s15 + $0x298] sm:$0xf]
        %v1541 = vld [vmem:[%s15 + $0x29c] sm:$0xf]
        %v1542 = vld [vmem:[%s15 + $0x2a0] sm:$0xf]
        %v1543 = vld [vmem:[%s15 + $0x2a4] sm:$0xf]
        %v1544 = vld [vmem:[%s15 + $0x2a8] sm:$0xf]
        %v1545 = vld [vmem:[%s15 + $0x2ac] sm:$0xf]
        %v1546 = vld [vmem:[%s15 + $0x2b0] sm:$0xf]
        %v1547 = vld [vmem:[%s15 + $0x2b4] sm:$0xf]
        %v1548 = vld [vmem:[%s15 + $0x2b8] sm:$0xf]
        %v1549 = vld [vmem:[%s15 + $0x2bc] sm:$0xf]
        %v1550 = vld [vmem:[%s15 + $0x2c0] sm:$0xf]
        %v1551 = vld [vmem:[%s15 + $0x2c4] sm:$0xf]
        %v1552 = vld [vmem:[%s15 + $0x2c8] sm:$0xf]
        %v1553 = vld [vmem:[%s15 + $0x2cc] sm:$0xf]
        %v1554 = vld [vmem:[%s15 + $0x2d0] sm:$0xf]
        %v1555 = vld [vmem:[%s15 + $0x2d4] sm:$0xf]
        %v1556 = vld [vmem:[%s15 + $0x2d8] sm:$0xf]
        %v1557 = vld [vmem:[%s15 + $0x2dc] sm:$0xf]
        %v1558 = vld [vmem:[%s15 + $0x2e0] sm:$0xf]
        %v1559 = vld [vmem:[%s15 + $0x2e4] sm:$0xf]
        %v1560 = vld [vmem:[%s15 + $0x2e8] sm:$0xf]
        %v1561 = vld [vmem:[%s15 + $0x2ec] sm:$0xf]
        %v1562 = vld [vmem:[%s15 + $0x2f0] sm:$0xf]
        %v1563 = vld [vmem:[%s15 + $0x2f4] sm:$0xf]
        %v1564 = vld [vmem:[%s15 + $0x2f8] sm:$0xf]
        %v1565 = vld [vmem:[%s15 + $0x2fc] sm:$0xf]
        %v1566 = vld [vmem:[%s15 + $0x300] sm:$0xf]
        %v1567 = vld [vmem:[%s15 + $0x304] sm:$0xf]
        %v1568 = vld [vmem:[%s15 + $0x308] sm:$0xf]
        %v1569 = vld [vmem:[%s15 + $0x30c] sm:$0xf]
        %v1570 = vld [vmem:[%s15 + $0x310] sm:$0xf]
        %v1571 = vld [vmem:[%s15 + $0x314] sm:$0xf]
        %v1572 = vld [vmem:[%s15 + $0x318] sm:$0xf]
        %v1573 = vld [vmem:[%s15 + $0x31c] sm:$0xf]
        %v1574 = vld [vmem:[%s15 + $0x320] sm:$0xf]
        %v1575 = vld [vmem:[%s15 + $0x324] sm:$0xf]
        %v1576 = vld [vmem:[%s15 + $0x328] sm:$0xf]
        %v1577 = vld [vmem:[%s15 + $0x32c] sm:$0xf]
        %v1578 = vld [vmem:[%s15 + $0x330] sm:$0xf]
        %v1579 = vld [vmem:[%s15 + $0x334] sm:$0xf]
        %v1580 = vld [vmem:[%s15 + $0x338] sm:$0xf]
        %v1581 = vld [vmem:[%s15 + $0x33c] sm:$0xf]
        %v1582 = vld [vmem:[%s15 + $0x340] sm:$0xf]
        %v1583 = vld [vmem:[%s15 + $0x344] sm:$0xf]
        %v1584 = vld [vmem:[%s15 + $0x348] sm:$0xf]
        %v1585 = vld [vmem:[%s15 + $0x34c] sm:$0xf]
        %v1586 = vld [vmem:[%s15 + $0x350] sm:$0xf]
        %v1587 = vld [vmem:[%s15 + $0x354] sm:$0xf]
        %v1588 = vld [vmem:[%s15 + $0x358] sm:$0xf]
        %v1589 = vld [vmem:[%s15 + $0x35c] sm:$0xf]
        %v1590 = vld [vmem:[%s15 + $0x360] sm:$0xf]
        %v1591 = vld [vmem:[%s15 + $0x364] sm:$0xf]
        %v1592 = vld [vmem:[%s15 + $0x368] sm:$0xf]
        %v1593 = vld [vmem:[%s15 + $0x36c] sm:$0xf]
        %v1594 = vld [vmem:[%s15 + $0x370] sm:$0xf]
        %v1595 = vld [vmem:[%s15 + $0x374] sm:$0xf]
        %v1596 = vld [vmem:[%s15 + $0x378] sm:$0xf]
        %v1597 = vld [vmem:[%s15 + $0x37c] sm:$0xf]
        %v1598 = vld [vmem:[%s15 + $0x380] sm:$0xf]
        %v1599 = vld [vmem:[%s15 + $0x384] sm:$0xf]
        %v1600 = vld [vmem:[%s15 + $0x388] sm:$0xf]
        %v1601 = vld [vmem:[%s15 + $0x38c] sm:$0xf]
        %v1602 = vld [vmem:[%s15 + $0x390] sm:$0xf]
        %v1603 = vld [vmem:[%s15 + $0x394] sm:$0xf]
        %v1604 = vld [vmem:[%s15 + $0x398] sm:$0xf]
        %v1605 = vld [vmem:[%s15 + $0x39c] sm:$0xf]
        %v1606 = vld [vmem:[%s15 + $0x3a0] sm:$0xf]
        %v1607 = vld [vmem:[%s15 + $0x3a4] sm:$0xf]
        %v1608 = vld [vmem:[%s15 + $0x3a8] sm:$0xf]
        %v1609 = vld [vmem:[%s15 + $0x3ac] sm:$0xf]
        %v1610 = vld [vmem:[%s15 + $0x3b0] sm:$0xf]
        %v1611 = vld [vmem:[%s15 + $0x3b4] sm:$0xf]
        %v1612 = vld [vmem:[%s15 + $0x3b8] sm:$0xf]
        %v1613 = vld [vmem:[%s15 + $0x3bc] sm:$0xf]
        %v1614 = vld [vmem:[%s15 + $0x3c0] sm:$0xf]
        %v1615 = vld [vmem:[%s15 + $0x3c4] sm:$0xf]
        %v1616 = vld [vmem:[%s15 + $0x3c8] sm:$0xf]
        %v1617 = vld [vmem:[%s15 + $0x3cc] sm:$0xf]
        %v1618 = vld [vmem:[%s15 + $0x3d0] sm:$0xf]
        %v1619 = vld [vmem:[%s15 + $0x3d4] sm:$0xf]
        %v1620 = vld [vmem:[%s15 + $0x3d8] sm:$0xf]
        %v1621 = vld [vmem:[%s15 + $0x3dc] sm:$0xf]
        %v1622 = vld [vmem:[%s15 + $0x3e0] sm:$0xf]
        %v1623 = vld [vmem:[%s15 + $0x3e4] sm:$0xf]
        %v1624 = vld [vmem:[%s15 + $0x3e8] sm:$0xf]
        %v1625 = vld [vmem:[%s15 + $0x3ec] sm:$0xf]
        %v1626 = vld [vmem:[%s15 + $0x3f0] sm:$0xf]
        %v1627 = vld [vmem:[%s15 + $0x3f4] sm:$0xf]
        %v1628 = vld [vmem:[%s15 + $0x3f8] sm:$0xf]
        %v1629 = vld [vmem:[%s15 + $0x3fc] sm:$0xf]
        %v1630 = vld [vmem:[%s15 + $0x400] sm:$0xf]
        %v1631 = vld [vmem:[%s15 + $0x404] sm:$0xf]
        %v1632 = vld [vmem:[%s15 + $0x408] sm:$0xf]
        %v1633 = vld [vmem:[%s15 + $0x40c] sm:$0xf]
        %v1634 = vld [vmem:[%s15 + $0x410] sm:$0xf]
        %v1635 = vld [vmem:[%s15 + $0x414] sm:$0xf]
        %v1636 = vld [vmem:[%s15 + $0x418] sm:$0xf]
        %v1637 = vld [vmem:[%s15 + $0x41c] sm:$0xf]
        %v1638 = vld [vmem:[%s15 + $0x420] sm:$0xf]
        %v1639 = vld [vmem:[%s15 + $0x424] sm:$0xf]
        %v1640 = vld [vmem:[%s15 + $0x428] sm:$0xf]
        %v1641 = vld [vmem:[%s15 + $0x42c] sm:$0xf]
        %v1642 = vld [vmem:[%s15 + $0x430] sm:$0xf]
        %v1643 = vld [vmem:[%s15 + $0x434] sm:$0xf]
        %v1644 = vld [vmem:[%s15 + $0x438] sm:$0xf]
        %v1645 = vld [vmem:[%s15 + $0x43c] sm:$0xf]
        %v1646 = vld [vmem:[%s15 + $0x440] sm:$0xf]
        %v1647 = vld [vmem:[%s15 + $0x444] sm:$0xf]
        %v1648 = vld [vmem:[%s15 + $0x448] sm:$0xf]
        %v1649 = vld [vmem:[%s15 + $0x44c] sm:$0xf]
        %v1650 = vld [vmem:[%s15 + $0x450] sm:$0xf]
        %v1651 = vld [vmem:[%s15 + $0x454] sm:$0xf]
        %v1652 = vld [vmem:[%s15 + $0x458] sm:$0xf]
        %v1653 = vld [vmem:[%s15 + $0x45c] sm:$0xf]
        %v1654 = vld [vmem:[%s15 + $0x460] sm:$0xf]
        %v1655 = vld [vmem:[%s15 + $0x464] sm:$0xf]
        %v1656 = vld [vmem:[%s15 + $0x468] sm:$0xf]
        %v1657 = vld [vmem:[%s15 + $0x46c] sm:$0xf]
        %v1658 = vld [vmem:[%s15 + $0x470] sm:$0xf]
        %v1659 = vld [vmem:[%s15 + $0x474] sm:$0xf]
        %v1660 = vld [vmem:[%s15 + $0x478] sm:$0xf]
        %v1661 = vld [vmem:[%s15 + $0x47c] sm:$0xf]
        %v1662 = vld [vmem:[%s15 + $0x480] sm:$0xf]
        %v1663 = vld [vmem:[%s15 + $0x484] sm:$0xf]
        %v1664 = vld [vmem:[%s15 + $0x488] sm:$0xf]
        %v1665 = vld [vmem:[%s15 + $0x48c] sm:$0xf]
        %v1666 = vld [vmem:[%s15 + $0x490] sm:$0xf]
        %v1667 = vld [vmem:[%s15 + $0x494] sm:$0xf]
        %v1668 = vld [vmem:[%s15 + $0x498] sm:$0xf]
        %v1669 = vld [vmem:[%s15 + $0x49c] sm:$0xf]
        %v1670 = vld [vmem:[%s15 + $0x4a0] sm:$0xf]
        %v1671 = vld [vmem:[%s15 + $0x4a4] sm:$0xf]
        %v1672 = vld [vmem:[%s15 + $0x4a8] sm:$0xf]
        %v1673 = vld [vmem:[%s15 + $0x4ac] sm:$0xf]
        %v1674 = vld [vmem:[%s15 + $0x4b0] sm:$0xf]
        %v1675 = vld [vmem:[%s15 + $0x4b4] sm:$0xf]
        %v1676 = vld [vmem:[%s15 + $0x4b8] sm:$0xf]
        %v1677 = vld [vmem:[%s15 + $0x4bc] sm:$0xf]
        %v1678 = vld [vmem:[%s15 + $0x4c0] sm:$0xf]
        %v1679 = vld [vmem:[%s15 + $0x4c4] sm:$0xf]
        %v1680 = vld [vmem:[%s15 + $0x4c8] sm:$0xf]
        %v1681 = vld [vmem:[%s15 + $0x4cc] sm:$0xf]
        %v1682 = vld [vmem:[%s15 + $0x4d0] sm:$0xf]
        %v1683 = vld [vmem:[%s15 + $0x4d4] sm:$0xf]
        %v1684 = vld [vmem:[%s15 + $0x4d8] sm:$0xf]
        %v1685 = vld [vmem:[%s15 + $0x4dc] sm:$0xf]
        %v1686 = vld [vmem:[%s15 + $0x4e0] sm:$0xf]
        %v1687 = vld [vmem:[%s15 + $0x4e4] sm:$0xf]
        %v1688 = vld [vmem:[%s15 + $0x4e8] sm:$0xf]
        %v1689 = vld [vmem:[%s15 + $0x4ec] sm:$0xf]
        %v1690 = vld [vmem:[%s15 + $0x4f0] sm:$0xf]
        %v1691 = vld [vmem:[%s15 + $0x4f4] sm:$0xf]
        %v1692 = vld [vmem:[%s15 + $0x4f8] sm:$0xf]
        %v1693 = vld [vmem:[%s15 + $0x4fc] sm:$0xf]
        %v1694 = vld [vmem:[%s15 + $0x500] sm:$0xf]
        %v1695 = vld [vmem:[%s15 + $0x504] sm:$0xf]
        %v1696 = vld [vmem:[%s15 + $0x508] sm:$0xf]
        %v1697 = vld [vmem:[%s15 + $0x50c] sm:$0xf]
        %v1698 = vld [vmem:[%s15 + $0x510] sm:$0xf]
        %v1699 = vld [vmem:[%s15 + $0x514] sm:$0xf]
        %v1700 = vld [vmem:[%s15 + $0x518] sm:$0xf]
        %v1701 = vld [vmem:[%s15 + $0x51c] sm:$0xf]
        %v1702 = vld [vmem:[%s15 + $0x520] sm:$0xf]
        %v1703 = vld [vmem:[%s15 + $0x524] sm:$0xf]
        %v1704 = vld [vmem:[%s15 + $0x528] sm:$0xf]
        %v1705 = vld [vmem:[%s15 + $0x52c] sm:$0xf]
        %v1706 = vld [vmem:[%s15 + $0x530] sm:$0xf]
        %v1707 = vld [vmem:[%s15 + $0x534] sm:$0xf]
        %v1708 = vld [vmem:[%s15 + $0x538] sm:$0xf]
        %v1709 = vld [vmem:[%s15 + $0x53c] sm:$0xf]
        %v1710 = vld [vmem:[%s15 + $0x540] sm:$0xf]
        %v1711 = vld [vmem:[%s15 + $0x544] sm:$0xf]
        %v1712 = vld [vmem:[%s15 + $0x548] sm:$0xf]
        %v1713 = vld [vmem:[%s15 + $0x54c] sm:$0xf]
        %v1714 = vld [vmem:[%s15 + $0x550] sm:$0xf]
        %v1715 = vld [vmem:[%s15 + $0x554] sm:$0xf]
        %v1716 = vld [vmem:[%s15 + $0x558] sm:$0xf]
        %v1717 = vld [vmem:[%s15 + $0x55c] sm:$0xf]
        %v1718 = vld [vmem:[%s15 + $0x560] sm:$0xf]
        %v1719 = vld [vmem:[%s15 + $0x564] sm:$0xf]
        %v1720 = vld [vmem:[%s15 + $0x568] sm:$0xf]
        %v1721 = vld [vmem:[%s15 + $0x56c] sm:$0xf]
        %v1722 = vld [vmem:[%s15 + $0x570] sm:$0xf]
        %v1723 = vld [vmem:[%s15 + $0x574] sm:$0xf]
        %v1724 = vld [vmem:[%s15 + $0x578] sm:$0xf]
        %v1725 = vld [vmem:[%s15 + $0x57c] sm:$0xf]
        %v1726 = vld [vmem:[%s15 + $0x580] sm:$0xf]
        %v1727 = vld [vmem:[%s15 + $0x584] sm:$0xf]
        %v1728 = vld [vmem:[%s15 + $0x588] sm:$0xf]
        %v1729 = vld [vmem:[%s15 + $0x58c] sm:$0xf]
        %v1730 = vld [vmem:[%s15 + $0x590] sm:$0xf]
        %v1731 = vld [vmem:[%s15 + $0x594] sm:$0xf]
        %v1732 = vld [vmem:[%s15 + $0x598] sm:$0xf]
        %v1733 = vld [vmem:[%s15 + $0x59c] sm:$0xf]
        %v1734 = vld [vmem:[%s15 + $0x5a0] sm:$0xf]
        %v1735 = vld [vmem:[%s15 + $0x5a4] sm:$0xf]
        %v1736 = vld [vmem:[%s15 + $0x5a8] sm:$0xf]
        %v1737 = vld [vmem:[%s15 + $0x5ac] sm:$0xf]
        %v1738 = vld [vmem:[%s15 + $0x5b0] sm:$0xf]
        %v1739 = vld [vmem:[%s15 + $0x5b4] sm:$0xf]
        %v1740 = vld [vmem:[%s15 + $0x5b8] sm:$0xf]
        %v1741 = vld [vmem:[%s15 + $0x5bc] sm:$0xf]
        %v1742 = vld [vmem:[%s15 + $0x5c0] sm:$0xf]
        %v1743 = vld [vmem:[%s15 + $0x5c4] sm:$0xf]
        %v1744 = vld [vmem:[%s15 + $0x5c8] sm:$0xf]
        %v1745 = vld [vmem:[%s15 + $0x5cc] sm:$0xf]
        %v1746 = vld [vmem:[%s15 + $0x5d0] sm:$0xf]
        %v1747 = vld [vmem:[%s15 + $0x5d4] sm:$0xf]
        %v1748 = vld [vmem:[%s15 + $0x5d8] sm:$0xf]
        %v1749 = vld [vmem:[%s15 + $0x5dc] sm:$0xf]
        %v1750 = vld [vmem:[%s15 + $0x5e0] sm:$0xf]
        %v1751 = vld [vmem:[%s15 + $0x5e4] sm:$0xf]
        %v1752 = vld [vmem:[%s15 + $0x5e8] sm:$0xf]
        %v1753 = vld [vmem:[%s15 + $0x5ec] sm:$0xf]
        %v1754 = vld [vmem:[%s15 + $0x5f0] sm:$0xf]
        %v1755 = vld [vmem:[%s15 + $0x5f4] sm:$0xf]
        %v1756 = vld [vmem:[%s15 + $0x5f8] sm:$0xf]
        %v1757 = vld [vmem:[%s15 + $0x5fc] sm:$0xf]
        %v1758 = vld [vmem:[%s15 + $0x600] sm:$0xf]
        %v1759 = vld [vmem:[%s15 + $0x604] sm:$0xf]
        %v1760 = vld [vmem:[%s15 + $0x608] sm:$0xf]
        %v1761 = vld [vmem:[%s15 + $0x60c] sm:$0xf]
        %v1762 = vld [vmem:[%s15 + $0x610] sm:$0xf]
        %v1763 = vld [vmem:[%s15 + $0x614] sm:$0xf]
        %v1764 = vld [vmem:[%s15 + $0x618] sm:$0xf]
        %v1765 = vld [vmem:[%s15 + $0x61c] sm:$0xf]
        %v1766 = vld [vmem:[%s15 + $0x620] sm:$0xf]
        %v1767 = vld [vmem:[%s15 + $0x624] sm:$0xf]
        %v1768 = vld [vmem:[%s15 + $0x628] sm:$0xf]
        %v1769 = vld [vmem:[%s15 + $0x62c] sm:$0xf]
        %v1770 = vld [vmem:[%s15 + $0x630] sm:$0xf]
        %v1771 = vld [vmem:[%s15 + $0x634] sm:$0xf]
        %v1772 = vld [vmem:[%s15 + $0x638] sm:$0xf]
        %v1773 = vld [vmem:[%s15 + $0x63c] sm:$0xf]
        %v1774 = vld [vmem:[%s15 + $0x640] sm:$0xf]
        %v1775 = vld [vmem:[%s15 + $0x644] sm:$0xf]
        %v1776 = vld [vmem:[%s15 + $0x648] sm:$0xf]
        %v1777 = vld [vmem:[%s15 + $0x64c] sm:$0xf]
        %v1778 = vld [vmem:[%s15 + $0x650] sm:$0xf]
        %v1779 = vld [vmem:[%s15 + $0x654] sm:$0xf]
        %v1780 = vld [vmem:[%s15 + $0x658] sm:$0xf]
        %v1781 = vld [vmem:[%s15 + $0x65c] sm:$0xf]
        %v1782 = vld [vmem:[%s15 + $0x660] sm:$0xf]
        %v1783 = vld [vmem:[%s15 + $0x664] sm:$0xf]
        %v1784 = vld [vmem:[%s15 + $0x668] sm:$0xf]
        %v1785 = vld [vmem:[%s15 + $0x66c] sm:$0xf]
        %v1786 = vld [vmem:[%s15 + $0x670] sm:$0xf]
        %v1787 = vld [vmem:[%s15 + $0x674] sm:$0xf]
        %v1788 = vld [vmem:[%s15 + $0x678] sm:$0xf]
        %v1789 = vld [vmem:[%s15 + $0x67c] sm:$0xf]
        %v1790 = vld [vmem:[%s15 + $0x680] sm:$0xf]
        %v1791 = vld [vmem:[%s15 + $0x684] sm:$0xf]
        %v1792 = vld [vmem:[%s15 + $0x688] sm:$0xf]
        %v1793 = vld [vmem:[%s15 + $0x68c] sm:$0xf]
        %v1794 = vld [vmem:[%s15 + $0x690] sm:$0xf]
        %v1795 = vld [vmem:[%s15 + $0x694] sm:$0xf]
        %v1796 = vld [vmem:[%s15 + $0x698] sm:$0xf]
        %v1797 = vld [vmem:[%s15 + $0x69c] sm:$0xf]
        %v1798 = vld [vmem:[%s15 + $0x6a0] sm:$0xf]
        %v1799 = vld [vmem:[%s15 + $0x6a4] sm:$0xf]
        %v1800 = vld [vmem:[%s15 + $0x6a8] sm:$0xf]
        %v1801 = vld [vmem:[%s15 + $0x6ac] sm:$0xf]
        %v1802 = vld [vmem:[%s15 + $0x6b0] sm:$0xf]
        %v1803 = vld [vmem:[%s15 + $0x6b4] sm:$0xf]
        %v1804 = vld [vmem:[%s15 + $0x6b8] sm:$0xf]
        %v1805 = vld [vmem:[%s15 + $0x6bc] sm:$0xf]
        %v1806 = vld [vmem:[%s15 + $0x6c0] sm:$0xf]
        %v1807 = vld [vmem:[%s15 + $0x6c4] sm:$0xf]
        %v1808 = vld [vmem:[%s15 + $0x6c8] sm:$0xf]
        %v1809 = vld [vmem:[%s15 + $0x6cc] sm:$0xf]
        %v1810 = vld [vmem:[%s15 + $0x6d0] sm:$0xf]
        %v1811 = vld [vmem:[%s15 + $0x6d4] sm:$0xf]
        %v1812 = vld [vmem:[%s15 + $0x6d8] sm:$0xf]
        %v1813 = vld [vmem:[%s15 + $0x6dc] sm:$0xf]
        %v1814 = vld [vmem:[%s15 + $0x6e0] sm:$0xf]
        %v1815 = vld [vmem:[%s15 + $0x6e4] sm:$0xf]
        %v1816 = vld [vmem:[%s15 + $0x6e8] sm:$0xf]
        %v1817 = vld [vmem:[%s15 + $0x6ec] sm:$0xf]
        %v1818 = vld [vmem:[%s15 + $0x6f0] sm:$0xf]
        %v1819 = vld [vmem:[%s15 + $0x6f4] sm:$0xf]
        %v1820 = vld [vmem:[%s15 + $0x6f8] sm:$0xf]
        %v1821 = vld [vmem:[%s15 + $0x6fc] sm:$0xf]
        %v1822 = vld [vmem:[%s15 + $0x700] sm:$0xf]
        %v1823 = vld [vmem:[%s15 + $0x704] sm:$0xf]
        %v1824 = vld [vmem:[%s15 + $0x708] sm:$0xf]
        %v1825 = vld [vmem:[%s15 + $0x70c] sm:$0xf]
        %v1826 = vld [vmem:[%s15 + $0x710] sm:$0xf]
        %v1827 = vld [vmem:[%s15 + $0x714] sm:$0xf]
        %v1828 = vld [vmem:[%s15 + $0x718] sm:$0xf]
        %v1829 = vld [vmem:[%s15 + $0x71c] sm:$0xf]
        %v1830 = vld [vmem:[%s15 + $0x720] sm:$0xf]
        %v1831 = vld [vmem:[%s15 + $0x724] sm:$0xf]
        %v1832 = vld [vmem:[%s15 + $0x728] sm:$0xf]
        %v1833 = vld [vmem:[%s15 + $0x72c] sm:$0xf]
        %v1834 = vld [vmem:[%s15 + $0x730] sm:$0xf]
        %v1835 = vld [vmem:[%s15 + $0x734] sm:$0xf]
        %v1836 = vld [vmem:[%s15 + $0x738] sm:$0xf]
        %v1837 = vld [vmem:[%s15 + $0x73c] sm:$0xf]
        %v1838 = vld [vmem:[%s15 + $0x740] sm:$0xf]
        %v1839 = vld [vmem:[%s15 + $0x744] sm:$0xf]
        %v1840 = vld [vmem:[%s15 + $0x748] sm:$0xf]
        %v1841 = vld [vmem:[%s15 + $0x74c] sm:$0xf]
        %v1842 = vld [vmem:[%s15 + $0x750] sm:$0xf]
        %v1843 = vld [vmem:[%s15 + $0x754] sm:$0xf]
        %v1844 = vld [vmem:[%s15 + $0x758] sm:$0xf]
        %v1845 = vld [vmem:[%s15 + $0x75c] sm:$0xf]
        %v1846 = vld [vmem:[%s15 + $0x760] sm:$0xf]
        %v1847 = vld [vmem:[%s15 + $0x764] sm:$0xf]
        %v1848 = vld [vmem:[%s15 + $0x768] sm:$0xf]
        %v1849 = vld [vmem:[%s15 + $0x76c] sm:$0xf]
        %v1850 = vld [vmem:[%s15 + $0x770] sm:$0xf]
        %v1851 = vld [vmem:[%s15 + $0x774] sm:$0xf]
        %v1852 = vld [vmem:[%s15 + $0x778] sm:$0xf]
        %v1853 = vld [vmem:[%s15 + $0x77c] sm:$0xf]
        %v1854 = vld [vmem:[%s15 + $0x780] sm:$0xf]
        %v1855 = vld [vmem:[%s15 + $0x784] sm:$0xf]
        %v1856 = vld [vmem:[%s15 + $0x788] sm:$0xf]
        %v1857 = vld [vmem:[%s15 + $0x78c] sm:$0xf]
        %v1858 = vld [vmem:[%s15 + $0x790] sm:$0xf]
        %v1859 = vld [vmem:[%s15 + $0x794] sm:$0xf]
        %v1860 = vld [vmem:[%s15 + $0x798] sm:$0xf]
        %v1861 = vld [vmem:[%s15 + $0x79c] sm:$0xf]
        %v1862 = vld [vmem:[%s15 + $0x7a0] sm:$0xf]
        %v1863 = vld [vmem:[%s15 + $0x7a4] sm:$0xf]
        %v1864 = vld [vmem:[%s15 + $0x7a8] sm:$0xf]
        %v1865 = vld [vmem:[%s15 + $0x7ac] sm:$0xf]
        %v1866 = vld [vmem:[%s15 + $0x7b0] sm:$0xf]
        %v1867 = vld [vmem:[%s15 + $0x7b4] sm:$0xf]
        %v1868 = vld [vmem:[%s15 + $0x7b8] sm:$0xf]
        %v1869 = vld [vmem:[%s15 + $0x7bc] sm:$0xf]
        %v1870 = vld [vmem:[%s15 + $0x7c0] sm:$0xf]
        %v1871 = vld [vmem:[%s15 + $0x7c4] sm:$0xf]
        %v1872 = vld [vmem:[%s15 + $0x7c8] sm:$0xf]
        %v1873 = vld [vmem:[%s15 + $0x7cc] sm:$0xf]
        %v1874 = vld [vmem:[%s15 + $0x7d0] sm:$0xf]
        %v1875 = vld [vmem:[%s15 + $0x7d4] sm:$0xf]
        %v1876 = vld [vmem:[%s15 + $0x7d8] sm:$0xf]
        %v1877 = vld [vmem:[%s15 + $0x7dc] sm:$0xf]
        %v1878 = vld [vmem:[%s15 + $0x7e0] sm:$0xf]
        %v1879 = vld [vmem:[%s15 + $0x7e4] sm:$0xf]
        %v1880 = vld [vmem:[%s15 + $0x7e8] sm:$0xf]
        %v1881 = vld [vmem:[%s15 + $0x7ec] sm:$0xf]
        %v1882 = vld [vmem:[%s15 + $0x7f0] sm:$0xf]
        %v1883 = vld [vmem:[%s15 + $0x7f4] sm:$0xf]
        %v1884 = vld [vmem:[%s15 + $0x7f8] sm:$0xf]
        %v1885 = vld [vmem:[%s15 + $0x7fc] sm:$0xf]
        %v1888 = vunpack.c.l.b16 %v1358
        %v1889 = vunpack.c.h.b16 %v1358
        %v1890 = vunpack.c.l.b16 %v1359
        %v1891 = vunpack.c.h.b16 %v1359
        %v1892 = vpack.c.b16 %v1888, %v1888
        %v1893 = vpack.c.b16 %v1889, %v1889
        %v1894 = vpack.c.b16 %v1890, %v1890
        %v1895 = vpack.c.b16 %v1891, %v1891
        %v1964 = vunpack.c.l.b16 %v1374
        %v1965 = vunpack.c.l.b16 %v1375
        %v1966 = vunpack.c.l.b16 %v1376
        %v1967 = vunpack.c.l.b16 %v1377
        %v1968 = vunpack.c.l.b16 %v1378
        %v1969 = vunpack.c.l.b16 %v1379
        %v1970 = vunpack.c.l.b16 %v1380
        %v1971 = vunpack.c.l.b16 %v1381
        %v1972 = vunpack.c.l.b16 %v1382
        %v1973 = vunpack.c.l.b16 %v1383
        %v1974 = vunpack.c.l.b16 %v1384
        %v1975 = vunpack.c.l.b16 %v1385
        %v1976 = vunpack.c.l.b16 %v1386
        %v1977 = vunpack.c.l.b16 %v1387
        %v1978 = vunpack.c.l.b16 %v1388
        %v1979 = vunpack.c.l.b16 %v1389
        %v1980 = vunpack.c.l.b16 %v1390
        %v1981 = vunpack.c.l.b16 %v1391
        %v1982 = vunpack.c.l.b16 %v1392
        %v1983 = vunpack.c.l.b16 %v1393
        %v1984 = vunpack.c.l.b16 %v1394
        %v1985 = vunpack.c.l.b16 %v1395
        %v1986 = vunpack.c.l.b16 %v1396
        %v1987 = vunpack.c.l.b16 %v1397
        %v1988 = vunpack.c.l.b16 %v1398
        %v1989 = vunpack.c.l.b16 %v1399
        %v1990 = vunpack.c.l.b16 %v1400
        %v1991 = vunpack.c.l.b16 %v1401
        %v1992 = vunpack.c.l.b16 %v1402
        %v1993 = vunpack.c.l.b16 %v1403
        %v1994 = vunpack.c.l.b16 %v1404
        %v1995 = vunpack.c.l.b16 %v1405
        %v1996 = vunpack.c.l.b16 %v1406
        %v1997 = vunpack.c.l.b16 %v1407
        %v1998 = vunpack.c.l.b16 %v1408
        %v1999 = vunpack.c.l.b16 %v1409
        %v2000 = vunpack.c.l.b16 %v1410
        %v2001 = vunpack.c.l.b16 %v1411
        %v2002 = vunpack.c.l.b16 %v1412
        %v2003 = vunpack.c.l.b16 %v1413
        %v2004 = vunpack.c.l.b16 %v1414
        %v2005 = vunpack.c.l.b16 %v1415
        %v2006 = vunpack.c.l.b16 %v1416
        %v2007 = vunpack.c.l.b16 %v1417
        %v2008 = vunpack.c.l.b16 %v1418
        %v2009 = vunpack.c.l.b16 %v1419
        %v2010 = vunpack.c.l.b16 %v1420
        %v2011 = vunpack.c.l.b16 %v1421
        %v2012 = vunpack.c.l.b16 %v1422
        %v2013 = vunpack.c.l.b16 %v1423
        %v2014 = vunpack.c.l.b16 %v1424
        %v2015 = vunpack.c.l.b16 %v1425
        %v2016 = vunpack.c.l.b16 %v1426
        %v2017 = vunpack.c.l.b16 %v1427
        %v2018 = vunpack.c.l.b16 %v1428
        %v2019 = vunpack.c.l.b16 %v1429
        %v2020 = vunpack.c.l.b16 %v1430
        %v2021 = vunpack.c.l.b16 %v1431
        %v2022 = vunpack.c.l.b16 %v1432
        %v2023 = vunpack.c.l.b16 %v1433
        %v2024 = vunpack.c.l.b16 %v1434
        %v2025 = vunpack.c.l.b16 %v1435
        %v2026 = vunpack.c.l.b16 %v1436
        %v2027 = vunpack.c.l.b16 %v1437
        %v2028 = vpack.c.b16 %v1965, %v1964
        %v2029 = vpack.c.b16 %v1967, %v1966
        %v2030 = vpack.c.b16 %v1969, %v1968
        %v2031 = vpack.c.b16 %v1971, %v1970
        %v2032 = vpack.c.b16 %v1973, %v1972
        %v2033 = vpack.c.b16 %v1975, %v1974
        %v2034 = vpack.c.b16 %v1977, %v1976
        %v2035 = vpack.c.b16 %v1979, %v1978
        %v2036 = vpack.c.b16 %v1981, %v1980
        %v2037 = vpack.c.b16 %v1983, %v1982
        %v2038 = vpack.c.b16 %v1985, %v1984
        %v2039 = vpack.c.b16 %v1987, %v1986
        %v2040 = vpack.c.b16 %v1989, %v1988
        %v2041 = vpack.c.b16 %v1991, %v1990
        %v2042 = vpack.c.b16 %v1993, %v1992
        %v2043 = vpack.c.b16 %v1995, %v1994
        %v2044 = vpack.c.b16 %v1997, %v1996
        %v2045 = vpack.c.b16 %v1999, %v1998
        %v2046 = vpack.c.b16 %v2001, %v2000
        %v2047 = vpack.c.b16 %v2003, %v2002
        %v2048 = vpack.c.b16 %v2005, %v2004
        %v2049 = vpack.c.b16 %v2007, %v2006
        %v2050 = vpack.c.b16 %v2009, %v2008
        %v2051 = vpack.c.b16 %v2011, %v2010
        %v2052 = vpack.c.b16 %v2013, %v2012
        %v2053 = vpack.c.b16 %v2015, %v2014
        %v2054 = vpack.c.b16 %v2017, %v2016
        %v2055 = vpack.c.b16 %v2019, %v2018
        %v2056 = vpack.c.b16 %v2021, %v2020
        %v2057 = vpack.c.b16 %v2023, %v2022
        %v2058 = vpack.c.b16 %v2025, %v2024
        %v2059 = vpack.c.b16 %v2027, %v2026
        %2092 = vmatpush.bf16.msra.mxu0 %v2035
        %2093 = vmatpush.bf16.msra.mxu0 %v2034
        %2094 = vmatpush.bf16.msra.mxu0 %v2033
        %2095 = vmatpush.bf16.msra.mxu0 %v2032
        %2096 = vmatpush.bf16.msra.mxu0 %v2031
        %2097 = vmatpush.bf16.msra.mxu0 %v2030
        %2098 = vmatpush.bf16.msra.mxu0 %v2029
        %2099 = vmatpush.bf16.msra.mxu0 %v2028
        %2100 = vmatmul.bf16.gmra.mxu0 %v1892
        %v2101 = vpop.f32.mrf.mxu0
        %v2102 = vadd.f32 0.0, %v2101
        %v2103 = vpop.f32.mrf.mxu0
        %2104 = vdwg.mxu0
        %2105 = vmatpush.bf16.msra.mxu0 %v2043
        %2106 = vmatpush.bf16.msra.mxu0 %v2042
        %2107 = vmatpush.bf16.msra.mxu0 %v2041
        %2108 = vmatpush.bf16.msra.mxu0 %v2040
        %2109 = vmatpush.bf16.msra.mxu0 %v2039
        %2110 = vmatpush.bf16.msra.mxu0 %v2038
        %2111 = vmatpush.bf16.msra.mxu0 %v2037
        %2112 = vmatpush.bf16.msra.mxu0 %v2036
        %2113 = vmatmul.bf16.gmra.mxu0 %v1893
        %v2114 = vpop.f32.mrf.mxu0
        %v2115 = vadd.f32 %v2102, %v2114
        %v2116 = vpop.f32.mrf.mxu0
        %2117 = vdwg.mxu0
        %2118 = vmatpush.bf16.msra.mxu0 %v2051
        %2119 = vmatpush.bf16.msra.mxu0 %v2050
        %2120 = vmatpush.bf16.msra.mxu0 %v2049
        %2121 = vmatpush.bf16.msra.mxu0 %v2048
        %2122 = vmatpush.bf16.msra.mxu0 %v2047
        %2123 = vmatpush.bf16.msra.mxu0 %v2046
        %2124 = vmatpush.bf16.msra.mxu0 %v2045
        %2125 = vmatpush.bf16.msra.mxu0 %v2044
        %2126 = vmatmul.bf16.gmra.mxu0 %v1894
        %v2127 = vpop.f32.mrf.mxu0
        %v2128 = vadd.f32 %v2115, %v2127
        %v2129 = vpop.f32.mrf.mxu0
        %2130 = vdwg.mxu0
        %2131 = vmatpush.bf16.msra.mxu0 %v2059
        %2132 = vmatpush.bf16.msra.mxu0 %v2058
        %2133 = vmatpush.bf16.msra.mxu0 %v2057
        %2134 = vmatpush.bf16.msra.mxu0 %v2056
        %2135 = vmatpush.bf16.msra.mxu0 %v2055
        %2136 = vmatpush.bf16.msra.mxu0 %v2054
        %2137 = vmatpush.bf16.msra.mxu0 %v2053
        %2138 = vmatpush.bf16.msra.mxu0 %v2052
        %2139 = vmatmul.bf16.gmra.mxu0 %v1895
        %v2140 = vpop.f32.mrf.mxu0
        %v2141 = vadd.f32 %v2128, %v2140
        %v2142 = vpop.f32.mrf.mxu0
        %2143 = vdwg.mxu0
        %v2146 = vunpack.c.l.b16 %v1360
        %v2147 = vunpack.c.h.b16 %v1360
        %v2148 = vunpack.c.l.b16 %v1361
        %v2149 = vunpack.c.h.b16 %v1361
        %v2150 = vpack.c.b16 %v2146, %v2146
        %v2151 = vpack.c.b16 %v2147, %v2147
        %v2152 = vpack.c.b16 %v2148, %v2148
        %v2153 = vpack.c.b16 %v2149, %v2149
        %v2222 = vunpack.c.l.b16 %v1438
        %v2223 = vunpack.c.l.b16 %v1439
        %v2224 = vunpack.c.l.b16 %v1440
        %v2225 = vunpack.c.l.b16 %v1441
        %v2226 = vunpack.c.l.b16 %v1442
        %v2227 = vunpack.c.l.b16 %v1443
        %v2228 = vunpack.c.l.b16 %v1444
        %v2229 = vunpack.c.l.b16 %v1445
        %v2230 = vunpack.c.l.b16 %v1446
        %v2231 = vunpack.c.l.b16 %v1447
        %v2232 = vunpack.c.l.b16 %v1448
        %v2233 = vunpack.c.l.b16 %v1449
        %v2234 = vunpack.c.l.b16 %v1450
        %v2235 = vunpack.c.l.b16 %v1451
        %v2236 = vunpack.c.l.b16 %v1452
        %v2237 = vunpack.c.l.b16 %v1453
        %v2238 = vunpack.c.l.b16 %v1454
        %v2239 = vunpack.c.l.b16 %v1455
        %v2240 = vunpack.c.l.b16 %v1456
        %v2241 = vunpack.c.l.b16 %v1457
        %v2242 = vunpack.c.l.b16 %v1458
        %v2243 = vunpack.c.l.b16 %v1459
        %v2244 = vunpack.c.l.b16 %v1460
        %v2245 = vunpack.c.l.b16 %v1461
        %v2246 = vunpack.c.l.b16 %v1462
        %v2247 = vunpack.c.l.b16 %v1463
        %v2248 = vunpack.c.l.b16 %v1464
        %v2249 = vunpack.c.l.b16 %v1465
        %v2250 = vunpack.c.l.b16 %v1466
        %v2251 = vunpack.c.l.b16 %v1467
        %v2252 = vunpack.c.l.b16 %v1468
        %v2253 = vunpack.c.l.b16 %v1469
        %v2254 = vunpack.c.l.b16 %v1470
        %v2255 = vunpack.c.l.b16 %v1471
        %v2256 = vunpack.c.l.b16 %v1472
        %v2257 = vunpack.c.l.b16 %v1473
        %v2258 = vunpack.c.l.b16 %v1474
        %v2259 = vunpack.c.l.b16 %v1475
        %v2260 = vunpack.c.l.b16 %v1476
        %v2261 = vunpack.c.l.b16 %v1477
        %v2262 = vunpack.c.l.b16 %v1478
        %v2263 = vunpack.c.l.b16 %v1479
        %v2264 = vunpack.c.l.b16 %v1480
        %v2265 = vunpack.c.l.b16 %v1481
        %v2266 = vunpack.c.l.b16 %v1482
        %v2267 = vunpack.c.l.b16 %v1483
        %v2268 = vunpack.c.l.b16 %v1484
        %v2269 = vunpack.c.l.b16 %v1485
        %v2270 = vunpack.c.l.b16 %v1486
        %v2271 = vunpack.c.l.b16 %v1487
        %v2272 = vunpack.c.l.b16 %v1488
        %v2273 = vunpack.c.l.b16 %v1489
        %v2274 = vunpack.c.l.b16 %v1490
        %v2275 = vunpack.c.l.b16 %v1491
        %v2276 = vunpack.c.l.b16 %v1492
        %v2277 = vunpack.c.l.b16 %v1493
        %v2278 = vunpack.c.l.b16 %v1494
        %v2279 = vunpack.c.l.b16 %v1495
        %v2280 = vunpack.c.l.b16 %v1496
        %v2281 = vunpack.c.l.b16 %v1497
        %v2282 = vunpack.c.l.b16 %v1498
        %v2283 = vunpack.c.l.b16 %v1499
        %v2284 = vunpack.c.l.b16 %v1500
        %v2285 = vunpack.c.l.b16 %v1501
        %v2286 = vpack.c.b16 %v2223, %v2222
        %v2287 = vpack.c.b16 %v2225, %v2224
        %v2288 = vpack.c.b16 %v2227, %v2226
        %v2289 = vpack.c.b16 %v2229, %v2228
        %v2290 = vpack.c.b16 %v2231, %v2230
        %v2291 = vpack.c.b16 %v2233, %v2232
        %v2292 = vpack.c.b16 %v2235, %v2234
        %v2293 = vpack.c.b16 %v2237, %v2236
        %v2294 = vpack.c.b16 %v2239, %v2238
        %v2295 = vpack.c.b16 %v2241, %v2240
        %v2296 = vpack.c.b16 %v2243, %v2242
        %v2297 = vpack.c.b16 %v2245, %v2244
        %v2298 = vpack.c.b16 %v2247, %v2246
        %v2299 = vpack.c.b16 %v2249, %v2248
        %v2300 = vpack.c.b16 %v2251, %v2250
        %v2301 = vpack.c.b16 %v2253, %v2252
        %v2302 = vpack.c.b16 %v2255, %v2254
        %v2303 = vpack.c.b16 %v2257, %v2256
        %v2304 = vpack.c.b16 %v2259, %v2258
        %v2305 = vpack.c.b16 %v2261, %v2260
        %v2306 = vpack.c.b16 %v2263, %v2262
        %v2307 = vpack.c.b16 %v2265, %v2264
        %v2308 = vpack.c.b16 %v2267, %v2266
        %v2309 = vpack.c.b16 %v2269, %v2268
        %v2310 = vpack.c.b16 %v2271, %v2270
        %v2311 = vpack.c.b16 %v2273, %v2272
        %v2312 = vpack.c.b16 %v2275, %v2274
        %v2313 = vpack.c.b16 %v2277, %v2276
        %v2314 = vpack.c.b16 %v2279, %v2278
        %v2315 = vpack.c.b16 %v2281, %v2280
        %v2316 = vpack.c.b16 %v2283, %v2282
        %v2317 = vpack.c.b16 %v2285, %v2284
        %2350 = vmatpush.bf16.msra.mxu0 %v2293
        %2351 = vmatpush.bf16.msra.mxu0 %v2292
        %2352 = vmatpush.bf16.msra.mxu0 %v2291
        %2353 = vmatpush.bf16.msra.mxu0 %v2290
        %2354 = vmatpush.bf16.msra.mxu0 %v2289
        %2355 = vmatpush.bf16.msra.mxu0 %v2288
        %2356 = vmatpush.bf16.msra.mxu0 %v2287
        %2357 = vmatpush.bf16.msra.mxu0 %v2286
        %2358 = vmatmul.bf16.gmra.mxu0 %v2150
        %v2359 = vpop.f32.mrf.mxu0
        %v2360 = vadd.f32 0.0, %v2359
        %v2361 = vpop.f32.mrf.mxu0
        %2362 = vdwg.mxu0
        %2363 = vmatpush.bf16.msra.mxu0 %v2301
        %2364 = vmatpush.bf16.msra.mxu0 %v2300
        %2365 = vmatpush.bf16.msra.mxu0 %v2299
        %2366 = vmatpush.bf16.msra.mxu0 %v2298
        %2367 = vmatpush.bf16.msra.mxu0 %v2297
        %2368 = vmatpush.bf16.msra.mxu0 %v2296
        %2369 = vmatpush.bf16.msra.mxu0 %v2295
        %2370 = vmatpush.bf16.msra.mxu0 %v2294
        %2371 = vmatmul.bf16.gmra.mxu0 %v2151
        %v2372 = vpop.f32.mrf.mxu0
        %v2373 = vadd.f32 %v2360, %v2372
        %v2374 = vpop.f32.mrf.mxu0
        %2375 = vdwg.mxu0
        %2376 = vmatpush.bf16.msra.mxu0 %v2309
        %2377 = vmatpush.bf16.msra.mxu0 %v2308
        %2378 = vmatpush.bf16.msra.mxu0 %v2307
        %2379 = vmatpush.bf16.msra.mxu0 %v2306
        %2380 = vmatpush.bf16.msra.mxu0 %v2305
        %2381 = vmatpush.bf16.msra.mxu0 %v2304
        %2382 = vmatpush.bf16.msra.mxu0 %v2303
        %2383 = vmatpush.bf16.msra.mxu0 %v2302
        %2384 = vmatmul.bf16.gmra.mxu0 %v2152
        %v2385 = vpop.f32.mrf.mxu0
        %v2386 = vadd.f32 %v2373, %v2385
        %v2387 = vpop.f32.mrf.mxu0
        %2388 = vdwg.mxu0
        %2389 = vmatpush.bf16.msra.mxu0 %v2317
        %2390 = vmatpush.bf16.msra.mxu0 %v2316
        %2391 = vmatpush.bf16.msra.mxu0 %v2315
        %2392 = vmatpush.bf16.msra.mxu0 %v2314
        %2393 = vmatpush.bf16.msra.mxu0 %v2313
        %2394 = vmatpush.bf16.msra.mxu0 %v2312
        %2395 = vmatpush.bf16.msra.mxu0 %v2311
        %2396 = vmatpush.bf16.msra.mxu0 %v2310
        %2397 = vmatmul.bf16.gmra.mxu0 %v2153
        %v2398 = vpop.f32.mrf.mxu0
        %v2399 = vadd.f32 %v2386, %v2398
        %v2400 = vpop.f32.mrf.mxu0
        %2401 = vdwg.mxu0
        %v2404 = vunpack.c.l.b16 %v1362
        %v2405 = vunpack.c.h.b16 %v1362
        %v2406 = vunpack.c.l.b16 %v1363
        %v2407 = vunpack.c.h.b16 %v1363
        %v2408 = vpack.c.b16 %v2404, %v2404
        %v2409 = vpack.c.b16 %v2405, %v2405
        %v2410 = vpack.c.b16 %v2406, %v2406
        %v2411 = vpack.c.b16 %v2407, %v2407
        %v2480 = vunpack.c.l.b16 %v1502
        %v2481 = vunpack.c.l.b16 %v1503
        %v2482 = vunpack.c.l.b16 %v1504
        %v2483 = vunpack.c.l.b16 %v1505
        %v2484 = vunpack.c.l.b16 %v1506
        %v2485 = vunpack.c.l.b16 %v1507
        %v2486 = vunpack.c.l.b16 %v1508
        %v2487 = vunpack.c.l.b16 %v1509
        %v2488 = vunpack.c.l.b16 %v1510
        %v2489 = vunpack.c.l.b16 %v1511
        %v2490 = vunpack.c.l.b16 %v1512
        %v2491 = vunpack.c.l.b16 %v1513
        %v2492 = vunpack.c.l.b16 %v1514
        %v2493 = vunpack.c.l.b16 %v1515
        %v2494 = vunpack.c.l.b16 %v1516
        %v2495 = vunpack.c.l.b16 %v1517
        %v2496 = vunpack.c.l.b16 %v1518
        %v2497 = vunpack.c.l.b16 %v1519
        %v2498 = vunpack.c.l.b16 %v1520
        %v2499 = vunpack.c.l.b16 %v1521
        %v2500 = vunpack.c.l.b16 %v1522
        %v2501 = vunpack.c.l.b16 %v1523
        %v2502 = vunpack.c.l.b16 %v1524
        %v2503 = vunpack.c.l.b16 %v1525
        %v2504 = vunpack.c.l.b16 %v1526
        %v2505 = vunpack.c.l.b16 %v1527
        %v2506 = vunpack.c.l.b16 %v1528
        %v2507 = vunpack.c.l.b16 %v1529
        %v2508 = vunpack.c.l.b16 %v1530
        %v2509 = vunpack.c.l.b16 %v1531
        %v2510 = vunpack.c.l.b16 %v1532
        %v2511 = vunpack.c.l.b16 %v1533
        %v2512 = vunpack.c.l.b16 %v1534
        %v2513 = vunpack.c.l.b16 %v1535
        %v2514 = vunpack.c.l.b16 %v1536
        %v2515 = vunpack.c.l.b16 %v1537
        %v2516 = vunpack.c.l.b16 %v1538
        %v2517 = vunpack.c.l.b16 %v1539
        %v2518 = vunpack.c.l.b16 %v1540
        %v2519 = vunpack.c.l.b16 %v1541
        %v2520 = vunpack.c.l.b16 %v1542
        %v2521 = vunpack.c.l.b16 %v1543
        %v2522 = vunpack.c.l.b16 %v1544
        %v2523 = vunpack.c.l.b16 %v1545
        %v2524 = vunpack.c.l.b16 %v1546
        %v2525 = vunpack.c.l.b16 %v1547
        %v2526 = vunpack.c.l.b16 %v1548
        %v2527 = vunpack.c.l.b16 %v1549
        %v2528 = vunpack.c.l.b16 %v1550
        %v2529 = vunpack.c.l.b16 %v1551
        %v2530 = vunpack.c.l.b16 %v1552
        %v2531 = vunpack.c.l.b16 %v1553
        %v2532 = vunpack.c.l.b16 %v1554
        %v2533 = vunpack.c.l.b16 %v1555
        %v2534 = vunpack.c.l.b16 %v1556
        %v2535 = vunpack.c.l.b16 %v1557
        %v2536 = vunpack.c.l.b16 %v1558
        %v2537 = vunpack.c.l.b16 %v1559
        %v2538 = vunpack.c.l.b16 %v1560
        %v2539 = vunpack.c.l.b16 %v1561
        %v2540 = vunpack.c.l.b16 %v1562
        %v2541 = vunpack.c.l.b16 %v1563
        %v2542 = vunpack.c.l.b16 %v1564
        %v2543 = vunpack.c.l.b16 %v1565
        %v2544 = vpack.c.b16 %v2481, %v2480
        %v2545 = vpack.c.b16 %v2483, %v2482
        %v2546 = vpack.c.b16 %v2485, %v2484
        %v2547 = vpack.c.b16 %v2487, %v2486
        %v2548 = vpack.c.b16 %v2489, %v2488
        %v2549 = vpack.c.b16 %v2491, %v2490
        %v2550 = vpack.c.b16 %v2493, %v2492
        %v2551 = vpack.c.b16 %v2495, %v2494
        %v2552 = vpack.c.b16 %v2497, %v2496
        %v2553 = vpack.c.b16 %v2499, %v2498
        %v2554 = vpack.c.b16 %v2501, %v2500
        %v2555 = vpack.c.b16 %v2503, %v2502
        %v2556 = vpack.c.b16 %v2505, %v2504
        %v2557 = vpack.c.b16 %v2507, %v2506
        %v2558 = vpack.c.b16 %v2509, %v2508
        %v2559 = vpack.c.b16 %v2511, %v2510
        %v2560 = vpack.c.b16 %v2513, %v2512
        %v2561 = vpack.c.b16 %v2515, %v2514
        %v2562 = vpack.c.b16 %v2517, %v2516
        %v2563 = vpack.c.b16 %v2519, %v2518
        %v2564 = vpack.c.b16 %v2521, %v2520
        %v2565 = vpack.c.b16 %v2523, %v2522
        %v2566 = vpack.c.b16 %v2525, %v2524
        %v2567 = vpack.c.b16 %v2527, %v2526
        %v2568 = vpack.c.b16 %v2529, %v2528
        %v2569 = vpack.c.b16 %v2531, %v2530
        %v2570 = vpack.c.b16 %v2533, %v2532
        %v2571 = vpack.c.b16 %v2535, %v2534
        %v2572 = vpack.c.b16 %v2537, %v2536
        %v2573 = vpack.c.b16 %v2539, %v2538
        %v2574 = vpack.c.b16 %v2541, %v2540
        %v2575 = vpack.c.b16 %v2543, %v2542
        %2608 = vmatpush.bf16.msra.mxu0 %v2551
        %2609 = vmatpush.bf16.msra.mxu0 %v2550
        %2610 = vmatpush.bf16.msra.mxu0 %v2549
        %2611 = vmatpush.bf16.msra.mxu0 %v2548
        %2612 = vmatpush.bf16.msra.mxu0 %v2547
        %2613 = vmatpush.bf16.msra.mxu0 %v2546
        %2614 = vmatpush.bf16.msra.mxu0 %v2545
        %2615 = vmatpush.bf16.msra.mxu0 %v2544
        %2616 = vmatmul.bf16.gmra.mxu0 %v2408
        %v2617 = vpop.f32.mrf.mxu0
        %v2618 = vadd.f32 0.0, %v2617
        %v2619 = vpop.f32.mrf.mxu0
        %2620 = vdwg.mxu0
        %2621 = vmatpush.bf16.msra.mxu0 %v2559
        %2622 = vmatpush.bf16.msra.mxu0 %v2558
        %2623 = vmatpush.bf16.msra.mxu0 %v2557
        %2624 = vmatpush.bf16.msra.mxu0 %v2556
        %2625 = vmatpush.bf16.msra.mxu0 %v2555
        %2626 = vmatpush.bf16.msra.mxu0 %v2554
        %2627 = vmatpush.bf16.msra.mxu0 %v2553
        %2628 = vmatpush.bf16.msra.mxu0 %v2552
        %2629 = vmatmul.bf16.gmra.mxu0 %v2409
        %v2630 = vpop.f32.mrf.mxu0
        %v2631 = vadd.f32 %v2618, %v2630
        %v2632 = vpop.f32.mrf.mxu0
        %2633 = vdwg.mxu0
        %2634 = vmatpush.bf16.msra.mxu0 %v2567
        %2635 = vmatpush.bf16.msra.mxu0 %v2566
        %2636 = vmatpush.bf16.msra.mxu0 %v2565
        %2637 = vmatpush.bf16.msra.mxu0 %v2564
        %2638 = vmatpush.bf16.msra.mxu0 %v2563
        %2639 = vmatpush.bf16.msra.mxu0 %v2562
        %2640 = vmatpush.bf16.msra.mxu0 %v2561
        %2641 = vmatpush.bf16.msra.mxu0 %v2560
        %2642 = vmatmul.bf16.gmra.mxu0 %v2410
        %v2643 = vpop.f32.mrf.mxu0
        %v2644 = vadd.f32 %v2631, %v2643
        %v2645 = vpop.f32.mrf.mxu0
        %2646 = vdwg.mxu0
        %2647 = vmatpush.bf16.msra.mxu0 %v2575
        %2648 = vmatpush.bf16.msra.mxu0 %v2574
        %2649 = vmatpush.bf16.msra.mxu0 %v2573
        %2650 = vmatpush.bf16.msra.mxu0 %v2572
        %2651 = vmatpush.bf16.msra.mxu0 %v2571
        %2652 = vmatpush.bf16.msra.mxu0 %v2570
        %2653 = vmatpush.bf16.msra.mxu0 %v2569
        %2654 = vmatpush.bf16.msra.mxu0 %v2568
        %2655 = vmatmul.bf16.gmra.mxu0 %v2411
        %v2656 = vpop.f32.mrf.mxu0
        %v2657 = vadd.f32 %v2644, %v2656
        %v2658 = vpop.f32.mrf.mxu0
        %2659 = vdwg.mxu0
        %v2662 = vunpack.c.l.b16 %v1364
        %v2663 = vunpack.c.h.b16 %v1364
        %v2664 = vunpack.c.l.b16 %v1365
        %v2665 = vunpack.c.h.b16 %v1365
        %v2666 = vpack.c.b16 %v2662, %v2662
        %v2667 = vpack.c.b16 %v2663, %v2663
        %v2668 = vpack.c.b16 %v2664, %v2664
        %v2669 = vpack.c.b16 %v2665, %v2665
        %v2738 = vunpack.c.l.b16 %v1566
        %v2739 = vunpack.c.l.b16 %v1567
        %v2740 = vunpack.c.l.b16 %v1568
        %v2741 = vunpack.c.l.b16 %v1569
        %v2742 = vunpack.c.l.b16 %v1570
        %v2743 = vunpack.c.l.b16 %v1571
        %v2744 = vunpack.c.l.b16 %v1572
        %v2745 = vunpack.c.l.b16 %v1573
        %v2746 = vunpack.c.l.b16 %v1574
        %v2747 = vunpack.c.l.b16 %v1575
        %v2748 = vunpack.c.l.b16 %v1576
        %v2749 = vunpack.c.l.b16 %v1577
        %v2750 = vunpack.c.l.b16 %v1578
        %v2751 = vunpack.c.l.b16 %v1579
        %v2752 = vunpack.c.l.b16 %v1580
        %v2753 = vunpack.c.l.b16 %v1581
        %v2754 = vunpack.c.l.b16 %v1582
        %v2755 = vunpack.c.l.b16 %v1583
        %v2756 = vunpack.c.l.b16 %v1584
        %v2757 = vunpack.c.l.b16 %v1585
        %v2758 = vunpack.c.l.b16 %v1586
        %v2759 = vunpack.c.l.b16 %v1587
        %v2760 = vunpack.c.l.b16 %v1588
        %v2761 = vunpack.c.l.b16 %v1589
        %v2762 = vunpack.c.l.b16 %v1590
        %v2763 = vunpack.c.l.b16 %v1591
        %v2764 = vunpack.c.l.b16 %v1592
        %v2765 = vunpack.c.l.b16 %v1593
        %v2766 = vunpack.c.l.b16 %v1594
        %v2767 = vunpack.c.l.b16 %v1595
        %v2768 = vunpack.c.l.b16 %v1596
        %v2769 = vunpack.c.l.b16 %v1597
        %v2770 = vunpack.c.l.b16 %v1598
        %v2771 = vunpack.c.l.b16 %v1599
        %v2772 = vunpack.c.l.b16 %v1600
        %v2773 = vunpack.c.l.b16 %v1601
        %v2774 = vunpack.c.l.b16 %v1602
        %v2775 = vunpack.c.l.b16 %v1603
        %v2776 = vunpack.c.l.b16 %v1604
        %v2777 = vunpack.c.l.b16 %v1605
        %v2778 = vunpack.c.l.b16 %v1606
        %v2779 = vunpack.c.l.b16 %v1607
        %v2780 = vunpack.c.l.b16 %v1608
        %v2781 = vunpack.c.l.b16 %v1609
        %v2782 = vunpack.c.l.b16 %v1610
        %v2783 = vunpack.c.l.b16 %v1611
        %v2784 = vunpack.c.l.b16 %v1612
        %v2785 = vunpack.c.l.b16 %v1613
        %v2786 = vunpack.c.l.b16 %v1614
        %v2787 = vunpack.c.l.b16 %v1615
        %v2788 = vunpack.c.l.b16 %v1616
        %v2789 = vunpack.c.l.b16 %v1617
        %v2790 = vunpack.c.l.b16 %v1618
        %v2791 = vunpack.c.l.b16 %v1619
        %v2792 = vunpack.c.l.b16 %v1620
        %v2793 = vunpack.c.l.b16 %v1621
        %v2794 = vunpack.c.l.b16 %v1622
        %v2795 = vunpack.c.l.b16 %v1623
        %v2796 = vunpack.c.l.b16 %v1624
        %v2797 = vunpack.c.l.b16 %v1625
        %v2798 = vunpack.c.l.b16 %v1626
        %v2799 = vunpack.c.l.b16 %v1627
        %v2800 = vunpack.c.l.b16 %v1628
        %v2801 = vunpack.c.l.b16 %v1629
        %v2802 = vpack.c.b16 %v2739, %v2738
        %v2803 = vpack.c.b16 %v2741, %v2740
        %v2804 = vpack.c.b16 %v2743, %v2742
        %v2805 = vpack.c.b16 %v2745, %v2744
        %v2806 = vpack.c.b16 %v2747, %v2746
        %v2807 = vpack.c.b16 %v2749, %v2748
        %v2808 = vpack.c.b16 %v2751, %v2750
        %v2809 = vpack.c.b16 %v2753, %v2752
        %v2810 = vpack.c.b16 %v2755, %v2754
        %v2811 = vpack.c.b16 %v2757, %v2756
        %v2812 = vpack.c.b16 %v2759, %v2758
        %v2813 = vpack.c.b16 %v2761, %v2760
        %v2814 = vpack.c.b16 %v2763, %v2762
        %v2815 = vpack.c.b16 %v2765, %v2764
        %v2816 = vpack.c.b16 %v2767, %v2766
        %v2817 = vpack.c.b16 %v2769, %v2768
        %v2818 = vpack.c.b16 %v2771, %v2770
        %v2819 = vpack.c.b16 %v2773, %v2772
        %v2820 = vpack.c.b16 %v2775, %v2774
        %v2821 = vpack.c.b16 %v2777, %v2776
        %v2822 = vpack.c.b16 %v2779, %v2778
        %v2823 = vpack.c.b16 %v2781, %v2780
        %v2824 = vpack.c.b16 %v2783, %v2782
        %v2825 = vpack.c.b16 %v2785, %v2784
        %v2826 = vpack.c.b16 %v2787, %v2786
        %v2827 = vpack.c.b16 %v2789, %v2788
        %v2828 = vpack.c.b16 %v2791, %v2790
        %v2829 = vpack.c.b16 %v2793, %v2792
        %v2830 = vpack.c.b16 %v2795, %v2794
        %v2831 = vpack.c.b16 %v2797, %v2796
        %v2832 = vpack.c.b16 %v2799, %v2798
        %v2833 = vpack.c.b16 %v2801, %v2800
        %2866 = vmatpush.bf16.msra.mxu0 %v2809
        %2867 = vmatpush.bf16.msra.mxu0 %v2808
        %2868 = vmatpush.bf16.msra.mxu0 %v2807
        %2869 = vmatpush.bf16.msra.mxu0 %v2806
        %2870 = vmatpush.bf16.msra.mxu0 %v2805
        %2871 = vmatpush.bf16.msra.mxu0 %v2804
        %2872 = vmatpush.bf16.msra.mxu0 %v2803
        %2873 = vmatpush.bf16.msra.mxu0 %v2802
        %2874 = vmatmul.bf16.gmra.mxu0 %v2666
        %v2875 = vpop.f32.mrf.mxu0
        %v2876 = vadd.f32 0.0, %v2875
        %v2877 = vpop.f32.mrf.mxu0
        %2878 = vdwg.mxu0
        %2879 = vmatpush.bf16.msra.mxu0 %v2817
        %2880 = vmatpush.bf16.msra.mxu0 %v2816
        %2881 = vmatpush.bf16.msra.mxu0 %v2815
        %2882 = vmatpush.bf16.msra.mxu0 %v2814
        %2883 = vmatpush.bf16.msra.mxu0 %v2813
        %2884 = vmatpush.bf16.msra.mxu0 %v2812
        %2885 = vmatpush.bf16.msra.mxu0 %v2811
        %2886 = vmatpush.bf16.msra.mxu0 %v2810
        %2887 = vmatmul.bf16.gmra.mxu0 %v2667
        %v2888 = vpop.f32.mrf.mxu0
        %v2889 = vadd.f32 %v2876, %v2888
        %v2890 = vpop.f32.mrf.mxu0
        %2891 = vdwg.mxu0
        %2892 = vmatpush.bf16.msra.mxu0 %v2825
        %2893 = vmatpush.bf16.msra.mxu0 %v2824
        %2894 = vmatpush.bf16.msra.mxu0 %v2823
        %2895 = vmatpush.bf16.msra.mxu0 %v2822
        %2896 = vmatpush.bf16.msra.mxu0 %v2821
        %2897 = vmatpush.bf16.msra.mxu0 %v2820
        %2898 = vmatpush.bf16.msra.mxu0 %v2819
        %2899 = vmatpush.bf16.msra.mxu0 %v2818
        %2900 = vmatmul.bf16.gmra.mxu0 %v2668
        %v2901 = vpop.f32.mrf.mxu0
        %v2902 = vadd.f32 %v2889, %v2901
        %v2903 = vpop.f32.mrf.mxu0
        %2904 = vdwg.mxu0
        %2905 = vmatpush.bf16.msra.mxu0 %v2833
        %2906 = vmatpush.bf16.msra.mxu0 %v2832
        %2907 = vmatpush.bf16.msra.mxu0 %v2831
        %2908 = vmatpush.bf16.msra.mxu0 %v2830
        %2909 = vmatpush.bf16.msra.mxu0 %v2829
        %2910 = vmatpush.bf16.msra.mxu0 %v2828
        %2911 = vmatpush.bf16.msra.mxu0 %v2827
        %2912 = vmatpush.bf16.msra.mxu0 %v2826
        %2913 = vmatmul.bf16.gmra.mxu0 %v2669
        %v2914 = vpop.f32.mrf.mxu0
        %v2915 = vadd.f32 %v2902, %v2914
        %v2916 = vpop.f32.mrf.mxu0
        %2917 = vdwg.mxu0
        %v2920 = vunpack.c.l.b16 %v1366
        %v2921 = vunpack.c.h.b16 %v1366
        %v2922 = vunpack.c.l.b16 %v1367
        %v2923 = vunpack.c.h.b16 %v1367
        %v2924 = vpack.c.b16 %v2920, %v2920
        %v2925 = vpack.c.b16 %v2921, %v2921
        %v2926 = vpack.c.b16 %v2922, %v2922
        %v2927 = vpack.c.b16 %v2923, %v2923
        %v2996 = vunpack.c.l.b16 %v1630
        %v2997 = vunpack.c.l.b16 %v1631
        %v2998 = vunpack.c.l.b16 %v1632
        %v2999 = vunpack.c.l.b16 %v1633
        %v3000 = vunpack.c.l.b16 %v1634
        %v3001 = vunpack.c.l.b16 %v1635
        %v3002 = vunpack.c.l.b16 %v1636
        %v3003 = vunpack.c.l.b16 %v1637
        %v3004 = vunpack.c.l.b16 %v1638
        %v3005 = vunpack.c.l.b16 %v1639
        %v3006 = vunpack.c.l.b16 %v1640
        %v3007 = vunpack.c.l.b16 %v1641
        %v3008 = vunpack.c.l.b16 %v1642
        %v3009 = vunpack.c.l.b16 %v1643
        %v3010 = vunpack.c.l.b16 %v1644
        %v3011 = vunpack.c.l.b16 %v1645
        %v3012 = vunpack.c.l.b16 %v1646
        %v3013 = vunpack.c.l.b16 %v1647
        %v3014 = vunpack.c.l.b16 %v1648
        %v3015 = vunpack.c.l.b16 %v1649
        %v3016 = vunpack.c.l.b16 %v1650
        %v3017 = vunpack.c.l.b16 %v1651
        %v3018 = vunpack.c.l.b16 %v1652
        %v3019 = vunpack.c.l.b16 %v1653
        %v3020 = vunpack.c.l.b16 %v1654
        %v3021 = vunpack.c.l.b16 %v1655
        %v3022 = vunpack.c.l.b16 %v1656
        %v3023 = vunpack.c.l.b16 %v1657
        %v3024 = vunpack.c.l.b16 %v1658
        %v3025 = vunpack.c.l.b16 %v1659
        %v3026 = vunpack.c.l.b16 %v1660
        %v3027 = vunpack.c.l.b16 %v1661
        %v3028 = vunpack.c.l.b16 %v1662
        %v3029 = vunpack.c.l.b16 %v1663
        %v3030 = vunpack.c.l.b16 %v1664
        %v3031 = vunpack.c.l.b16 %v1665
        %v3032 = vunpack.c.l.b16 %v1666
        %v3033 = vunpack.c.l.b16 %v1667
        %v3034 = vunpack.c.l.b16 %v1668
        %v3035 = vunpack.c.l.b16 %v1669
        %v3036 = vunpack.c.l.b16 %v1670
        %v3037 = vunpack.c.l.b16 %v1671
        %v3038 = vunpack.c.l.b16 %v1672
        %v3039 = vunpack.c.l.b16 %v1673
        %v3040 = vunpack.c.l.b16 %v1674
        %v3041 = vunpack.c.l.b16 %v1675
        %v3042 = vunpack.c.l.b16 %v1676
        %v3043 = vunpack.c.l.b16 %v1677
        %v3044 = vunpack.c.l.b16 %v1678
        %v3045 = vunpack.c.l.b16 %v1679
        %v3046 = vunpack.c.l.b16 %v1680
        %v3047 = vunpack.c.l.b16 %v1681
        %v3048 = vunpack.c.l.b16 %v1682
        %v3049 = vunpack.c.l.b16 %v1683
        %v3050 = vunpack.c.l.b16 %v1684
        %v3051 = vunpack.c.l.b16 %v1685
        %v3052 = vunpack.c.l.b16 %v1686
        %v3053 = vunpack.c.l.b16 %v1687
        %v3054 = vunpack.c.l.b16 %v1688
        %v3055 = vunpack.c.l.b16 %v1689
        %v3056 = vunpack.c.l.b16 %v1690
        %v3057 = vunpack.c.l.b16 %v1691
        %v3058 = vunpack.c.l.b16 %v1692
        %v3059 = vunpack.c.l.b16 %v1693
        %v3060 = vpack.c.b16 %v2997, %v2996
        %v3061 = vpack.c.b16 %v2999, %v2998
        %v3062 = vpack.c.b16 %v3001, %v3000
        %v3063 = vpack.c.b16 %v3003, %v3002
        %v3064 = vpack.c.b16 %v3005, %v3004
        %v3065 = vpack.c.b16 %v3007, %v3006
        %v3066 = vpack.c.b16 %v3009, %v3008
        %v3067 = vpack.c.b16 %v3011, %v3010
        %v3068 = vpack.c.b16 %v3013, %v3012
        %v3069 = vpack.c.b16 %v3015, %v3014
        %v3070 = vpack.c.b16 %v3017, %v3016
        %v3071 = vpack.c.b16 %v3019, %v3018
        %v3072 = vpack.c.b16 %v3021, %v3020
        %v3073 = vpack.c.b16 %v3023, %v3022
        %v3074 = vpack.c.b16 %v3025, %v3024
        %v3075 = vpack.c.b16 %v3027, %v3026
        %v3076 = vpack.c.b16 %v3029, %v3028
        %v3077 = vpack.c.b16 %v3031, %v3030
        %v3078 = vpack.c.b16 %v3033, %v3032
        %v3079 = vpack.c.b16 %v3035, %v3034
        %v3080 = vpack.c.b16 %v3037, %v3036
        %v3081 = vpack.c.b16 %v3039, %v3038
        %v3082 = vpack.c.b16 %v3041, %v3040
        %v3083 = vpack.c.b16 %v3043, %v3042
        %v3084 = vpack.c.b16 %v3045, %v3044
        %v3085 = vpack.c.b16 %v3047, %v3046
        %v3086 = vpack.c.b16 %v3049, %v3048
        %v3087 = vpack.c.b16 %v3051, %v3050
        %v3088 = vpack.c.b16 %v3053, %v3052
        %v3089 = vpack.c.b16 %v3055, %v3054
        %v3090 = vpack.c.b16 %v3057, %v3056
        %v3091 = vpack.c.b16 %v3059, %v3058
        %3124 = vmatpush.bf16.msra.mxu0 %v3067
        %3125 = vmatpush.bf16.msra.mxu0 %v3066
        %3126 = vmatpush.bf16.msra.mxu0 %v3065
        %3127 = vmatpush.bf16.msra.mxu0 %v3064
        %3128 = vmatpush.bf16.msra.mxu0 %v3063
        %3129 = vmatpush.bf16.msra.mxu0 %v3062
        %3130 = vmatpush.bf16.msra.mxu0 %v3061
        %3131 = vmatpush.bf16.msra.mxu0 %v3060
        %3132 = vmatmul.bf16.gmra.mxu0 %v2924
        %v3133 = vpop.f32.mrf.mxu0
        %v3134 = vadd.f32 0.0, %v3133
        %v3135 = vpop.f32.mrf.mxu0
        %3136 = vdwg.mxu0
        %3137 = vmatpush.bf16.msra.mxu0 %v3075
        %3138 = vmatpush.bf16.msra.mxu0 %v3074
        %3139 = vmatpush.bf16.msra.mxu0 %v3073
        %3140 = vmatpush.bf16.msra.mxu0 %v3072
        %3141 = vmatpush.bf16.msra.mxu0 %v3071
        %3142 = vmatpush.bf16.msra.mxu0 %v3070
        %3143 = vmatpush.bf16.msra.mxu0 %v3069
        %3144 = vmatpush.bf16.msra.mxu0 %v3068
        %3145 = vmatmul.bf16.gmra.mxu0 %v2925
        %v3146 = vpop.f32.mrf.mxu0
        %v3147 = vadd.f32 %v3134, %v3146
        %v3148 = vpop.f32.mrf.mxu0
        %3149 = vdwg.mxu0
        %3150 = vmatpush.bf16.msra.mxu0 %v3083
        %3151 = vmatpush.bf16.msra.mxu0 %v3082
        %3152 = vmatpush.bf16.msra.mxu0 %v3081
        %3153 = vmatpush.bf16.msra.mxu0 %v3080
        %3154 = vmatpush.bf16.msra.mxu0 %v3079
        %3155 = vmatpush.bf16.msra.mxu0 %v3078
        %3156 = vmatpush.bf16.msra.mxu0 %v3077
        %3157 = vmatpush.bf16.msra.mxu0 %v3076
        %3158 = vmatmul.bf16.gmra.mxu0 %v2926
        %v3159 = vpop.f32.mrf.mxu0
        %v3160 = vadd.f32 %v3147, %v3159
        %v3161 = vpop.f32.mrf.mxu0
        %3162 = vdwg.mxu0
        %3163 = vmatpush.bf16.msra.mxu0 %v3091
        %3164 = vmatpush.bf16.msra.mxu0 %v3090
        %3165 = vmatpush.bf16.msra.mxu0 %v3089
        %3166 = vmatpush.bf16.msra.mxu0 %v3088
        %3167 = vmatpush.bf16.msra.mxu0 %v3087
        %3168 = vmatpush.bf16.msra.mxu0 %v3086
        %3169 = vmatpush.bf16.msra.mxu0 %v3085
        %3170 = vmatpush.bf16.msra.mxu0 %v3084
        %3171 = vmatmul.bf16.gmra.mxu0 %v2927
        %v3172 = vpop.f32.mrf.mxu0
        %v3173 = vadd.f32 %v3160, %v3172
        %v3174 = vpop.f32.mrf.mxu0
        %3175 = vdwg.mxu0
        %v3178 = vunpack.c.l.b16 %v1368
        %v3179 = vunpack.c.h.b16 %v1368
        %v3180 = vunpack.c.l.b16 %v1369
        %v3181 = vunpack.c.h.b16 %v1369
        %v3182 = vpack.c.b16 %v3178, %v3178
        %v3183 = vpack.c.b16 %v3179, %v3179
        %v3184 = vpack.c.b16 %v3180, %v3180
        %v3185 = vpack.c.b16 %v3181, %v3181
        %v3254 = vunpack.c.l.b16 %v1694
        %v3255 = vunpack.c.l.b16 %v1695
        %v3256 = vunpack.c.l.b16 %v1696
        %v3257 = vunpack.c.l.b16 %v1697
        %v3258 = vunpack.c.l.b16 %v1698
        %v3259 = vunpack.c.l.b16 %v1699
        %v3260 = vunpack.c.l.b16 %v1700
        %v3261 = vunpack.c.l.b16 %v1701
        %v3262 = vunpack.c.l.b16 %v1702
        %v3263 = vunpack.c.l.b16 %v1703
        %v3264 = vunpack.c.l.b16 %v1704
        %v3265 = vunpack.c.l.b16 %v1705
        %v3266 = vunpack.c.l.b16 %v1706
        %v3267 = vunpack.c.l.b16 %v1707
        %v3268 = vunpack.c.l.b16 %v1708
        %v3269 = vunpack.c.l.b16 %v1709
        %v3270 = vunpack.c.l.b16 %v1710
        %v3271 = vunpack.c.l.b16 %v1711
        %v3272 = vunpack.c.l.b16 %v1712
        %v3273 = vunpack.c.l.b16 %v1713
        %v3274 = vunpack.c.l.b16 %v1714
        %v3275 = vunpack.c.l.b16 %v1715
        %v3276 = vunpack.c.l.b16 %v1716
        %v3277 = vunpack.c.l.b16 %v1717
        %v3278 = vunpack.c.l.b16 %v1718
        %v3279 = vunpack.c.l.b16 %v1719
        %v3280 = vunpack.c.l.b16 %v1720
        %v3281 = vunpack.c.l.b16 %v1721
        %v3282 = vunpack.c.l.b16 %v1722
        %v3283 = vunpack.c.l.b16 %v1723
        %v3284 = vunpack.c.l.b16 %v1724
        %v3285 = vunpack.c.l.b16 %v1725
        %v3286 = vunpack.c.l.b16 %v1726
        %v3287 = vunpack.c.l.b16 %v1727
        %v3288 = vunpack.c.l.b16 %v1728
        %v3289 = vunpack.c.l.b16 %v1729
        %v3290 = vunpack.c.l.b16 %v1730
        %v3291 = vunpack.c.l.b16 %v1731
        %v3292 = vunpack.c.l.b16 %v1732
        %v3293 = vunpack.c.l.b16 %v1733
        %v3294 = vunpack.c.l.b16 %v1734
        %v3295 = vunpack.c.l.b16 %v1735
        %v3296 = vunpack.c.l.b16 %v1736
        %v3297 = vunpack.c.l.b16 %v1737
        %v3298 = vunpack.c.l.b16 %v1738
        %v3299 = vunpack.c.l.b16 %v1739
        %v3300 = vunpack.c.l.b16 %v1740
        %v3301 = vunpack.c.l.b16 %v1741
        %v3302 = vunpack.c.l.b16 %v1742
        %v3303 = vunpack.c.l.b16 %v1743
        %v3304 = vunpack.c.l.b16 %v1744
        %v3305 = vunpack.c.l.b16 %v1745
        %v3306 = vunpack.c.l.b16 %v1746
        %v3307 = vunpack.c.l.b16 %v1747
        %v3308 = vunpack.c.l.b16 %v1748
        %v3309 = vunpack.c.l.b16 %v1749
        %v3310 = vunpack.c.l.b16 %v1750
        %v3311 = vunpack.c.l.b16 %v1751
        %v3312 = vunpack.c.l.b16 %v1752
        %v3313 = vunpack.c.l.b16 %v1753
        %v3314 = vunpack.c.l.b16 %v1754
        %v3315 = vunpack.c.l.b16 %v1755
        %v3316 = vunpack.c.l.b16 %v1756
        %v3317 = vunpack.c.l.b16 %v1757
        %v3318 = vpack.c.b16 %v3255, %v3254
        %v3319 = vpack.c.b16 %v3257, %v3256
        %v3320 = vpack.c.b16 %v3259, %v3258
        %v3321 = vpack.c.b16 %v3261, %v3260
        %v3322 = vpack.c.b16 %v3263, %v3262
        %v3323 = vpack.c.b16 %v3265, %v3264
        %v3324 = vpack.c.b16 %v3267, %v3266
        %v3325 = vpack.c.b16 %v3269, %v3268
        %v3326 = vpack.c.b16 %v3271, %v3270
        %v3327 = vpack.c.b16 %v3273, %v3272
        %v3328 = vpack.c.b16 %v3275, %v3274
        %v3329 = vpack.c.b16 %v3277, %v3276
        %v3330 = vpack.c.b16 %v3279, %v3278
        %v3331 = vpack.c.b16 %v3281, %v3280
        %v3332 = vpack.c.b16 %v3283, %v3282
        %v3333 = vpack.c.b16 %v3285, %v3284
        %v3334 = vpack.c.b16 %v3287, %v3286
        %v3335 = vpack.c.b16 %v3289, %v3288
        %v3336 = vpack.c.b16 %v3291, %v3290
        %v3337 = vpack.c.b16 %v3293, %v3292
        %v3338 = vpack.c.b16 %v3295, %v3294
        %v3339 = vpack.c.b16 %v3297, %v3296
        %v3340 = vpack.c.b16 %v3299, %v3298
        %v3341 = vpack.c.b16 %v3301, %v3300
        %v3342 = vpack.c.b16 %v3303, %v3302
        %v3343 = vpack.c.b16 %v3305, %v3304
        %v3344 = vpack.c.b16 %v3307, %v3306
        %v3345 = vpack.c.b16 %v3309, %v3308
        %v3346 = vpack.c.b16 %v3311, %v3310
        %v3347 = vpack.c.b16 %v3313, %v3312
        %v3348 = vpack.c.b16 %v3315, %v3314
        %v3349 = vpack.c.b16 %v3317, %v3316
        %3382 = vmatpush.bf16.msra.mxu0 %v3325
        %3383 = vmatpush.bf16.msra.mxu0 %v3324
        %3384 = vmatpush.bf16.msra.mxu0 %v3323
        %3385 = vmatpush.bf16.msra.mxu0 %v3322
        %3386 = vmatpush.bf16.msra.mxu0 %v3321
        %3387 = vmatpush.bf16.msra.mxu0 %v3320
        %3388 = vmatpush.bf16.msra.mxu0 %v3319
        %3389 = vmatpush.bf16.msra.mxu0 %v3318
        %3390 = vmatmul.bf16.gmra.mxu0 %v3182
        %v3391 = vpop.f32.mrf.mxu0
        %v3392 = vadd.f32 0.0, %v3391
        %v3393 = vpop.f32.mrf.mxu0
        %3394 = vdwg.mxu0
        %3395 = vmatpush.bf16.msra.mxu0 %v3333
        %3396 = vmatpush.bf16.msra.mxu0 %v3332
        %3397 = vmatpush.bf16.msra.mxu0 %v3331
        %3398 = vmatpush.bf16.msra.mxu0 %v3330
        %3399 = vmatpush.bf16.msra.mxu0 %v3329
        %3400 = vmatpush.bf16.msra.mxu0 %v3328
        %3401 = vmatpush.bf16.msra.mxu0 %v3327
        %3402 = vmatpush.bf16.msra.mxu0 %v3326
        %3403 = vmatmul.bf16.gmra.mxu0 %v3183
        %v3404 = vpop.f32.mrf.mxu0
        %v3405 = vadd.f32 %v3392, %v3404
        %v3406 = vpop.f32.mrf.mxu0
        %3407 = vdwg.mxu0
        %3408 = vmatpush.bf16.msra.mxu0 %v3341
        %3409 = vmatpush.bf16.msra.mxu0 %v3340
        %3410 = vmatpush.bf16.msra.mxu0 %v3339
        %3411 = vmatpush.bf16.msra.mxu0 %v3338
        %3412 = vmatpush.bf16.msra.mxu0 %v3337
        %3413 = vmatpush.bf16.msra.mxu0 %v3336
        %3414 = vmatpush.bf16.msra.mxu0 %v3335
        %3415 = vmatpush.bf16.msra.mxu0 %v3334
        %3416 = vmatmul.bf16.gmra.mxu0 %v3184
        %v3417 = vpop.f32.mrf.mxu0
        %v3418 = vadd.f32 %v3405, %v3417
        %v3419 = vpop.f32.mrf.mxu0
        %3420 = vdwg.mxu0
        %3421 = vmatpush.bf16.msra.mxu0 %v3349
        %3422 = vmatpush.bf16.msra.mxu0 %v3348
        %3423 = vmatpush.bf16.msra.mxu0 %v3347
        %3424 = vmatpush.bf16.msra.mxu0 %v3346
        %3425 = vmatpush.bf16.msra.mxu0 %v3345
        %3426 = vmatpush.bf16.msra.mxu0 %v3344
        %3427 = vmatpush.bf16.msra.mxu0 %v3343
        %3428 = vmatpush.bf16.msra.mxu0 %v3342
        %3429 = vmatmul.bf16.gmra.mxu0 %v3185
        %v3430 = vpop.f32.mrf.mxu0
        %v3431 = vadd.f32 %v3418, %v3430
        %v3432 = vpop.f32.mrf.mxu0
        %3433 = vdwg.mxu0
        %v3436 = vunpack.c.l.b16 %v1370
        %v3437 = vunpack.c.h.b16 %v1370
        %v3438 = vunpack.c.l.b16 %v1371
        %v3439 = vunpack.c.h.b16 %v1371
        %v3440 = vpack.c.b16 %v3436, %v3436
        %v3441 = vpack.c.b16 %v3437, %v3437
        %v3442 = vpack.c.b16 %v3438, %v3438
        %v3443 = vpack.c.b16 %v3439, %v3439
        %v3512 = vunpack.c.l.b16 %v1758
        %v3513 = vunpack.c.l.b16 %v1759
        %v3514 = vunpack.c.l.b16 %v1760
        %v3515 = vunpack.c.l.b16 %v1761
        %v3516 = vunpack.c.l.b16 %v1762
        %v3517 = vunpack.c.l.b16 %v1763
        %v3518 = vunpack.c.l.b16 %v1764
        %v3519 = vunpack.c.l.b16 %v1765
        %v3520 = vunpack.c.l.b16 %v1766
        %v3521 = vunpack.c.l.b16 %v1767
        %v3522 = vunpack.c.l.b16 %v1768
        %v3523 = vunpack.c.l.b16 %v1769
        %v3524 = vunpack.c.l.b16 %v1770
        %v3525 = vunpack.c.l.b16 %v1771
        %v3526 = vunpack.c.l.b16 %v1772
        %v3527 = vunpack.c.l.b16 %v1773
        %v3528 = vunpack.c.l.b16 %v1774
        %v3529 = vunpack.c.l.b16 %v1775
        %v3530 = vunpack.c.l.b16 %v1776
        %v3531 = vunpack.c.l.b16 %v1777
        %v3532 = vunpack.c.l.b16 %v1778
        %v3533 = vunpack.c.l.b16 %v1779
        %v3534 = vunpack.c.l.b16 %v1780
        %v3535 = vunpack.c.l.b16 %v1781
        %v3536 = vunpack.c.l.b16 %v1782
        %v3537 = vunpack.c.l.b16 %v1783
        %v3538 = vunpack.c.l.b16 %v1784
        %v3539 = vunpack.c.l.b16 %v1785
        %v3540 = vunpack.c.l.b16 %v1786
        %v3541 = vunpack.c.l.b16 %v1787
        %v3542 = vunpack.c.l.b16 %v1788
        %v3543 = vunpack.c.l.b16 %v1789
        %v3544 = vunpack.c.l.b16 %v1790
        %v3545 = vunpack.c.l.b16 %v1791
        %v3546 = vunpack.c.l.b16 %v1792
        %v3547 = vunpack.c.l.b16 %v1793
        %v3548 = vunpack.c.l.b16 %v1794
        %v3549 = vunpack.c.l.b16 %v1795
        %v3550 = vunpack.c.l.b16 %v1796
        %v3551 = vunpack.c.l.b16 %v1797
        %v3552 = vunpack.c.l.b16 %v1798
        %v3553 = vunpack.c.l.b16 %v1799
        %v3554 = vunpack.c.l.b16 %v1800
        %v3555 = vunpack.c.l.b16 %v1801
        %v3556 = vunpack.c.l.b16 %v1802
        %v3557 = vunpack.c.l.b16 %v1803
        %v3558 = vunpack.c.l.b16 %v1804
        %v3559 = vunpack.c.l.b16 %v1805
        %v3560 = vunpack.c.l.b16 %v1806
        %v3561 = vunpack.c.l.b16 %v1807
        %v3562 = vunpack.c.l.b16 %v1808
        %v3563 = vunpack.c.l.b16 %v1809
        %v3564 = vunpack.c.l.b16 %v1810
        %v3565 = vunpack.c.l.b16 %v1811
        %v3566 = vunpack.c.l.b16 %v1812
        %v3567 = vunpack.c.l.b16 %v1813
        %v3568 = vunpack.c.l.b16 %v1814
        %v3569 = vunpack.c.l.b16 %v1815
        %v3570 = vunpack.c.l.b16 %v1816
        %v3571 = vunpack.c.l.b16 %v1817
        %v3572 = vunpack.c.l.b16 %v1818
        %v3573 = vunpack.c.l.b16 %v1819
        %v3574 = vunpack.c.l.b16 %v1820
        %v3575 = vunpack.c.l.b16 %v1821
        %v3576 = vpack.c.b16 %v3513, %v3512
        %v3577 = vpack.c.b16 %v3515, %v3514
        %v3578 = vpack.c.b16 %v3517, %v3516
        %v3579 = vpack.c.b16 %v3519, %v3518
        %v3580 = vpack.c.b16 %v3521, %v3520
        %v3581 = vpack.c.b16 %v3523, %v3522
        %v3582 = vpack.c.b16 %v3525, %v3524
        %v3583 = vpack.c.b16 %v3527, %v3526
        %v3584 = vpack.c.b16 %v3529, %v3528
        %v3585 = vpack.c.b16 %v3531, %v3530
        %v3586 = vpack.c.b16 %v3533, %v3532
        %v3587 = vpack.c.b16 %v3535, %v3534
        %v3588 = vpack.c.b16 %v3537, %v3536
        %v3589 = vpack.c.b16 %v3539, %v3538
        %v3590 = vpack.c.b16 %v3541, %v3540
        %v3591 = vpack.c.b16 %v3543, %v3542
        %v3592 = vpack.c.b16 %v3545, %v3544
        %v3593 = vpack.c.b16 %v3547, %v3546
        %v3594 = vpack.c.b16 %v3549, %v3548
        %v3595 = vpack.c.b16 %v3551, %v3550
        %v3596 = vpack.c.b16 %v3553, %v3552
        %v3597 = vpack.c.b16 %v3555, %v3554
        %v3598 = vpack.c.b16 %v3557, %v3556
        %v3599 = vpack.c.b16 %v3559, %v3558
        %v3600 = vpack.c.b16 %v3561, %v3560
        %v3601 = vpack.c.b16 %v3563, %v3562
        %v3602 = vpack.c.b16 %v3565, %v3564
        %v3603 = vpack.c.b16 %v3567, %v3566
        %v3604 = vpack.c.b16 %v3569, %v3568
        %v3605 = vpack.c.b16 %v3571, %v3570
        %v3606 = vpack.c.b16 %v3573, %v3572
        %v3607 = vpack.c.b16 %v3575, %v3574
        %3640 = vmatpush.bf16.msra.mxu0 %v3583
        %3641 = vmatpush.bf16.msra.mxu0 %v3582
        %3642 = vmatpush.bf16.msra.mxu0 %v3581
        %3643 = vmatpush.bf16.msra.mxu0 %v3580
        %3644 = vmatpush.bf16.msra.mxu0 %v3579
        %3645 = vmatpush.bf16.msra.mxu0 %v3578
        %3646 = vmatpush.bf16.msra.mxu0 %v3577
        %3647 = vmatpush.bf16.msra.mxu0 %v3576
        %3648 = vmatmul.bf16.gmra.mxu0 %v3440
        %v3649 = vpop.f32.mrf.mxu0
        %v3650 = vadd.f32 0.0, %v3649
        %v3651 = vpop.f32.mrf.mxu0
        %3652 = vdwg.mxu0
        %3653 = vmatpush.bf16.msra.mxu0 %v3591
        %3654 = vmatpush.bf16.msra.mxu0 %v3590
        %3655 = vmatpush.bf16.msra.mxu0 %v3589
        %3656 = vmatpush.bf16.msra.mxu0 %v3588
        %3657 = vmatpush.bf16.msra.mxu0 %v3587
        %3658 = vmatpush.bf16.msra.mxu0 %v3586
        %3659 = vmatpush.bf16.msra.mxu0 %v3585
        %3660 = vmatpush.bf16.msra.mxu0 %v3584
        %3661 = vmatmul.bf16.gmra.mxu0 %v3441
        %v3662 = vpop.f32.mrf.mxu0
        %v3663 = vadd.f32 %v3650, %v3662
        %v3664 = vpop.f32.mrf.mxu0
        %3665 = vdwg.mxu0
        %3666 = vmatpush.bf16.msra.mxu0 %v3599
        %3667 = vmatpush.bf16.msra.mxu0 %v3598
        %3668 = vmatpush.bf16.msra.mxu0 %v3597
        %3669 = vmatpush.bf16.msra.mxu0 %v3596
        %3670 = vmatpush.bf16.msra.mxu0 %v3595
        %3671 = vmatpush.bf16.msra.mxu0 %v3594
        %3672 = vmatpush.bf16.msra.mxu0 %v3593
        %3673 = vmatpush.bf16.msra.mxu0 %v3592
        %3674 = vmatmul.bf16.gmra.mxu0 %v3442
        %v3675 = vpop.f32.mrf.mxu0
        %v3676 = vadd.f32 %v3663, %v3675
        %v3677 = vpop.f32.mrf.mxu0
        %3678 = vdwg.mxu0
        %3679 = vmatpush.bf16.msra.mxu0 %v3607
        %3680 = vmatpush.bf16.msra.mxu0 %v3606
        %3681 = vmatpush.bf16.msra.mxu0 %v3605
        %3682 = vmatpush.bf16.msra.mxu0 %v3604
        %3683 = vmatpush.bf16.msra.mxu0 %v3603
        %3684 = vmatpush.bf16.msra.mxu0 %v3602
        %3685 = vmatpush.bf16.msra.mxu0 %v3601
        %3686 = vmatpush.bf16.msra.mxu0 %v3600
        %3687 = vmatmul.bf16.gmra.mxu0 %v3443
        %v3688 = vpop.f32.mrf.mxu0
        %v3689 = vadd.f32 %v3676, %v3688
        %v3690 = vpop.f32.mrf.mxu0
        %3691 = vdwg.mxu0
        %v3694 = vunpack.c.l.b16 %v1372
        %v3695 = vunpack.c.h.b16 %v1372
        %v3696 = vunpack.c.l.b16 %v1373
        %v3697 = vunpack.c.h.b16 %v1373
        %v3698 = vpack.c.b16 %v3694, %v3694
        %v3699 = vpack.c.b16 %v3695, %v3695
        %v3700 = vpack.c.b16 %v3696, %v3696
        %v3701 = vpack.c.b16 %v3697, %v3697
        %v3770 = vunpack.c.l.b16 %v1822
        %v3771 = vunpack.c.l.b16 %v1823
        %v3772 = vunpack.c.l.b16 %v1824
        %v3773 = vunpack.c.l.b16 %v1825
        %v3774 = vunpack.c.l.b16 %v1826
        %v3775 = vunpack.c.l.b16 %v1827
        %v3776 = vunpack.c.l.b16 %v1828
        %v3777 = vunpack.c.l.b16 %v1829
        %v3778 = vunpack.c.l.b16 %v1830
        %v3779 = vunpack.c.l.b16 %v1831
        %v3780 = vunpack.c.l.b16 %v1832
        %v3781 = vunpack.c.l.b16 %v1833
        %v3782 = vunpack.c.l.b16 %v1834
        %v3783 = vunpack.c.l.b16 %v1835
        %v3784 = vunpack.c.l.b16 %v1836
        %v3785 = vunpack.c.l.b16 %v1837
        %v3786 = vunpack.c.l.b16 %v1838
        %v3787 = vunpack.c.l.b16 %v1839
        %v3788 = vunpack.c.l.b16 %v1840
        %v3789 = vunpack.c.l.b16 %v1841
        %v3790 = vunpack.c.l.b16 %v1842
        %v3791 = vunpack.c.l.b16 %v1843
        %v3792 = vunpack.c.l.b16 %v1844
        %v3793 = vunpack.c.l.b16 %v1845
        %v3794 = vunpack.c.l.b16 %v1846
        %v3795 = vunpack.c.l.b16 %v1847
        %v3796 = vunpack.c.l.b16 %v1848
        %v3797 = vunpack.c.l.b16 %v1849
        %v3798 = vunpack.c.l.b16 %v1850
        %v3799 = vunpack.c.l.b16 %v1851
        %v3800 = vunpack.c.l.b16 %v1852
        %v3801 = vunpack.c.l.b16 %v1853
        %v3802 = vunpack.c.l.b16 %v1854
        %v3803 = vunpack.c.l.b16 %v1855
        %v3804 = vunpack.c.l.b16 %v1856
        %v3805 = vunpack.c.l.b16 %v1857
        %v3806 = vunpack.c.l.b16 %v1858
        %v3807 = vunpack.c.l.b16 %v1859
        %v3808 = vunpack.c.l.b16 %v1860
        %v3809 = vunpack.c.l.b16 %v1861
        %v3810 = vunpack.c.l.b16 %v1862
        %v3811 = vunpack.c.l.b16 %v1863
        %v3812 = vunpack.c.l.b16 %v1864
        %v3813 = vunpack.c.l.b16 %v1865
        %v3814 = vunpack.c.l.b16 %v1866
        %v3815 = vunpack.c.l.b16 %v1867
        %v3816 = vunpack.c.l.b16 %v1868
        %v3817 = vunpack.c.l.b16 %v1869
        %v3818 = vunpack.c.l.b16 %v1870
        %v3819 = vunpack.c.l.b16 %v1871
        %v3820 = vunpack.c.l.b16 %v1872
        %v3821 = vunpack.c.l.b16 %v1873
        %v3822 = vunpack.c.l.b16 %v1874
        %v3823 = vunpack.c.l.b16 %v1875
        %v3824 = vunpack.c.l.b16 %v1876
        %v3825 = vunpack.c.l.b16 %v1877
        %v3826 = vunpack.c.l.b16 %v1878
        %v3827 = vunpack.c.l.b16 %v1879
        %v3828 = vunpack.c.l.b16 %v1880
        %v3829 = vunpack.c.l.b16 %v1881
        %v3830 = vunpack.c.l.b16 %v1882
        %v3831 = vunpack.c.l.b16 %v1883
        %v3832 = vunpack.c.l.b16 %v1884
        %v3833 = vunpack.c.l.b16 %v1885
        %v3834 = vpack.c.b16 %v3771, %v3770
        %v3835 = vpack.c.b16 %v3773, %v3772
        %v3836 = vpack.c.b16 %v3775, %v3774
        %v3837 = vpack.c.b16 %v3777, %v3776
        %v3838 = vpack.c.b16 %v3779, %v3778
        %v3839 = vpack.c.b16 %v3781, %v3780
        %v3840 = vpack.c.b16 %v3783, %v3782
        %v3841 = vpack.c.b16 %v3785, %v3784
        %v3842 = vpack.c.b16 %v3787, %v3786
        %v3843 = vpack.c.b16 %v3789, %v3788
        %v3844 = vpack.c.b16 %v3791, %v3790
        %v3845 = vpack.c.b16 %v3793, %v3792
        %v3846 = vpack.c.b16 %v3795, %v3794
        %v3847 = vpack.c.b16 %v3797, %v3796
        %v3848 = vpack.c.b16 %v3799, %v3798
        %v3849 = vpack.c.b16 %v3801, %v3800
        %v3850 = vpack.c.b16 %v3803, %v3802
        %v3851 = vpack.c.b16 %v3805, %v3804
        %v3852 = vpack.c.b16 %v3807, %v3806
        %v3853 = vpack.c.b16 %v3809, %v3808
        %v3854 = vpack.c.b16 %v3811, %v3810
        %v3855 = vpack.c.b16 %v3813, %v3812
        %v3856 = vpack.c.b16 %v3815, %v3814
        %v3857 = vpack.c.b16 %v3817, %v3816
        %v3858 = vpack.c.b16 %v3819, %v3818
        %v3859 = vpack.c.b16 %v3821, %v3820
        %v3860 = vpack.c.b16 %v3823, %v3822
        %v3861 = vpack.c.b16 %v3825, %v3824
        %v3862 = vpack.c.b16 %v3827, %v3826
        %v3863 = vpack.c.b16 %v3829, %v3828
        %v3864 = vpack.c.b16 %v3831, %v3830
        %v3865 = vpack.c.b16 %v3833, %v3832
        %3898 = vmatpush.bf16.msra.mxu0 %v3841
        %3899 = vmatpush.bf16.msra.mxu0 %v3840
        %3900 = vmatpush.bf16.msra.mxu0 %v3839
        %3901 = vmatpush.bf16.msra.mxu0 %v3838
        %3902 = vmatpush.bf16.msra.mxu0 %v3837
        %3903 = vmatpush.bf16.msra.mxu0 %v3836
        %3904 = vmatpush.bf16.msra.mxu0 %v3835
        %3905 = vmatpush.bf16.msra.mxu0 %v3834
        %3906 = vmatmul.bf16.gmra.mxu0 %v3698
        %v3907 = vpop.f32.mrf.mxu0
        %v3908 = vadd.f32 0.0, %v3907
        %v3909 = vpop.f32.mrf.mxu0
        %3910 = vdwg.mxu0
        %3911 = vmatpush.bf16.msra.mxu0 %v3849
        %3912 = vmatpush.bf16.msra.mxu0 %v3848
        %3913 = vmatpush.bf16.msra.mxu0 %v3847
        %3914 = vmatpush.bf16.msra.mxu0 %v3846
        %3915 = vmatpush.bf16.msra.mxu0 %v3845
        %3916 = vmatpush.bf16.msra.mxu0 %v3844
        %3917 = vmatpush.bf16.msra.mxu0 %v3843
        %3918 = vmatpush.bf16.msra.mxu0 %v3842
        %3919 = vmatmul.bf16.gmra.mxu0 %v3699
        %v3920 = vpop.f32.mrf.mxu0
        %v3921 = vadd.f32 %v3908, %v3920
        %v3922 = vpop.f32.mrf.mxu0
        %3923 = vdwg.mxu0
        %3924 = vmatpush.bf16.msra.mxu0 %v3857
        %3925 = vmatpush.bf16.msra.mxu0 %v3856
        %3926 = vmatpush.bf16.msra.mxu0 %v3855
        %3927 = vmatpush.bf16.msra.mxu0 %v3854
        %3928 = vmatpush.bf16.msra.mxu0 %v3853
        %3929 = vmatpush.bf16.msra.mxu0 %v3852
        %3930 = vmatpush.bf16.msra.mxu0 %v3851
        %3931 = vmatpush.bf16.msra.mxu0 %v3850
        %3932 = vmatmul.bf16.gmra.mxu0 %v3700
        %v3933 = vpop.f32.mrf.mxu0
        %v3934 = vadd.f32 %v3921, %v3933
        %v3935 = vpop.f32.mrf.mxu0
        %3936 = vdwg.mxu0
        %3937 = vmatpush.bf16.msra.mxu0 %v3865
        %3938 = vmatpush.bf16.msra.mxu0 %v3864
        %3939 = vmatpush.bf16.msra.mxu0 %v3863
        %3940 = vmatpush.bf16.msra.mxu0 %v3862
        %3941 = vmatpush.bf16.msra.mxu0 %v3861
        %3942 = vmatpush.bf16.msra.mxu0 %v3860
        %3943 = vmatpush.bf16.msra.mxu0 %v3859
        %3944 = vmatpush.bf16.msra.mxu0 %v3858
        %3945 = vmatmul.bf16.gmra.mxu0 %v3701
        %v3946 = vpop.f32.mrf.mxu0
        %v3947 = vadd.f32 %v3934, %v3946
        %v3948 = vpop.f32.mrf.mxu0
        %3949 = vdwg.mxu0
        %vm3950 = vcmask 122880
        %v3951 = vsel %vm3950, %v2141, 0.0
        %v3952 = vsel %vm3950, %v2399, 0.0
        %v3953 = vadd.f32 %v3951, %v3952
        %v3954 = vsel %vm3950, %v2657, 0.0
        %v3955 = vadd.f32 %v3953, %v3954
        %v3956 = vsel %vm3950, %v2915, 0.0
        %v3957 = vadd.f32 %v3955, %v3956
        %v3958 = vsel %vm3950, %v3173, 0.0
        %v3959 = vadd.f32 %v3957, %v3958
        %v3960 = vsel %vm3950, %v3431, 0.0
        %v3961 = vadd.f32 %v3959, %v3960
        %v3962 = vsel %vm3950, %v3689, 0.0
        %v3963 = vadd.f32 %v3961, %v3962
        %v3964 = vsel %vm3950, %v3947, 0.0
        %v3965 = vadd.f32 %v3963, %v3964
        %v3966 = vld [vmem:[%s16] sm:$0x1]
        %v3967 = vadd.f32 %v3965, %v3966
        %v3968 = vmax.f32 %v3967, 0.0
        %v3969 = vpack.c.bf16 %v3968, %v3968
        %v3970 = vld [vmem:[%s17] sm:$0xf]
        %v3971 = vld [vmem:[%s17 + $0x4] sm:$0xf]
        %v3972 = vld [vmem:[%s18] sm:$0x1]
        %v3975 = vunpack.c.l.b16 %v3970
        %v3976 = vunpack.c.l.b16 %v3971
        %v3977 = vpack.c.b16 %v3976, %v3975
        %v3980 = vsel %vm882, %v3969, 0
        %3982 = vmatpush.bf16.msra.mxu0 0
        %3983 = vmatpush.bf16.msra.mxu0 0
        %3984 = vmatpush.bf16.msra.mxu0 0
        %3985 = vmatpush.bf16.msra.mxu0 0
        %3986 = vmatpush.bf16.msra.mxu0 0
        %3987 = vmatpush.bf16.msra.mxu0 0
        %3988 = vmatpush.bf16.msra.mxu0 0
        %3989 = vmatpush.bf16.msra.mxu0 %v3977
        %3990 = vmatmul.bf16.gmra.mxu0 %v3980
        %v3991 = vpop.f32.mrf.mxu0
        %v3992 = vadd.f32 %v3972, %v3991
        %v3993 = vpop.f32.mrf.mxu0
        %3994 = vdwg.mxu0
        %vm3995 = vcmask 16384
        %3996 = vst.msk [vmem:[%s595] sm:$0x1] %vm3995, %v3992
        %s3997 = sand.u32 %s445, 1
        %s3998 = scalar_lea.sflag [#allocation3], %s3997
        %s3999 = sand.u32 %s445, 1
        %s4000 = scalar_lea.vmem [#allocation2], %s3999
        // Predicated region
        $region97: #{tpu_custom_call.1} parent=95 // pred_check
          %p4001 = pneg %p455
        $region98: #{tpu_custom_call.1} parent=95 // pred_check_branch
          %4003 = sbr.rel (%p4001) target = $region100
        $region99: #{tpu_custom_call.1} parent=95 // pred_region
          %4005 = vsyncadd %s3998, 0
          %s4006 = scalar_lea.hbm %s19, %s33
          %s4008 = sshll.u32 %s4000, 4
          %s4009 = int_to_ptr.vmem [resolvable:$true] %s4008
          %s4010 = sshll.u32 %s4006, 4
          %s4011 = int_to_ptr.hbm [resolvable:$true] %s4010
          %4013 = dma.vmem_to_hbm [thread:$0]  %s4009, 16, %s4011, %s3998
        $region100: #{tpu_custom_call.1} parent=95 // pred_fallthru
          _
      $region96: #{tpu_custom_call.1} parent=5 // pred_fallthru
        _
      %p4014 = scmp.le.s32.totalorder 2, %s28
      // Predicated region
      $region101: #{tpu_custom_call.1} parent=5 // pred_check
        %p4015 = pneg %p4014
      $region102: #{tpu_custom_call.1} parent=5 // pred_check_branch
        %4017 = sbr.rel (%p4015) target = $region104
      $region103: #{tpu_custom_call.1} parent=5 // pred_region
        %s4018 = ssub.s32 %s28, 2
        // Predicated region
        $region105: #{tpu_custom_call.1} parent=103 // pred_check
          %p4019 = pneg %p461
        $region106: #{tpu_custom_call.1} parent=103 // pred_check_branch
          %4021 = sbr.rel (%p4019) target = $region108
        $region107: #{tpu_custom_call.1} parent=103 // pred_region
          %s4022 = sand.u32 %s446, 1
          %s4023 = scalar_lea.sflag [#allocation3], %s4022
          %s4024 = sand.u32 %s446, 1
          %s4025 = scalar_lea.vmem [#allocation2], %s4024
          %4027 = dma.done %s4023, 16
        $region108: #{tpu_custom_call.1} parent=103 // pred_fallthru
          _
      $region104: #{tpu_custom_call.1} parent=5 // pred_fallthru
        _
    $region6: #{tpu_custom_call.1} parent=1 // loop_footer
      %s32 = sadd.s32 1, %s28
    $region7: #{tpu_custom_call.1} parent=1 // loop_footer_branch
      %27 = sbr.rel target = $region3
    $region8: #{tpu_custom_call.1} parent=1 // loop_exit
      _
    %4028 = vsyncpa [#allocation3], 1
    %s4029 = scalar_lea.sflag [#allocation3], 1
    %4030 = vsyncpa %s4029, 1

</llo_original>
